<compile_context>
chip_gen: v7x
topology: tpu7x:2x2x1
jax: 0.10.0
libtpu: 0.0.40
codegen_flags: <defaults>
</compile_context>

<pallas_src>
import functools

import jax
import jax.numpy as jnp
from jax import lax
from jax.experimental import pallas as pl
from jax.experimental.pallas import tpu as pltpu

_VMEM = pl.BlockSpec(memory_space=pltpu.MemorySpace.VMEM)


# ----------------------------- Pallas kernels ------------------------------ #

def _l2_normalize(y):
    # F.normalize(dim=1): y / max(||y||, 1e-12)  ==  y * rsqrt(max(||y||^2, 1e-24))
    ss = jnp.sum(y * y, axis=1, keepdims=True)
    return y * lax.rsqrt(jnp.maximum(ss, 1e-24))


def _fused_modality_kernel(x_ref,
                           eq_w, eq_b,                       # query encoder
                           ek_w, ek_b,                       # key encoder (old)
                           pq_w1, pq_b1, pq_w2, pq_b2,       # query projector
                           pk_w1, pk_b1, pk_w2, pk_b2,       # key projector (old)
                           q_ref, k_ref,                     # outputs: q, k (normalized)
                           ek_w_o, ek_b_o,                   # outputs: updated key params
                           pk_w1_o, pk_b1_o, pk_w2_o, pk_b2_o,
                           *, m):
    one_m = 1.0 - m

    # ---- query path: encoder -> projector (Linear/ReLU/Linear) -> L2 norm ----
    x = x_ref[...]
    z = jnp.dot(x, eq_w[...], preferred_element_type=jnp.float32) + eq_b[...]
    hq = jnp.maximum(
        jnp.dot(z, pq_w1[...], preferred_element_type=jnp.float32) + pq_b1[...], 0.0)
    q = _l2_normalize(
        jnp.dot(hq, pq_w2[...], preferred_element_type=jnp.float32) + pq_b2[...])
    q_ref[...] = q

    # ---- momentum update of key params (VPU work hidden next to the MXU dots) ----
    w_ek = m * ek_w[...] + one_m * eq_w[...]
    b_ek = m * ek_b[...] + one_m * eq_b[...]
    w1k = m * pk_w1[...] + one_m * pq_w1[...]
    b1k = m * pk_b1[...] + one_m * pq_b1[...]
    w2k = m * pk_w2[...] + one_m * pq_w2[...]
    b2k = m * pk_b2[...] + one_m * pq_b2[...]
    ek_w_o[...] = w_ek
    ek_b_o[...] = b_ek
    pk_w1_o[...] = w1k
    pk_b1_o[...] = b1k
    pk_w2_o[...] = w2k
    pk_b2_o[...] = b2k

    # ---- key path: the torch forward re-encodes the *query-encoded* features z ----
    zk = jnp.dot(z, w_ek, preferred_element_type=jnp.float32) + b_ek
    hk = jnp.maximum(
        jnp.dot(zk, w1k, preferred_element_type=jnp.float32) + b1k, 0.0)
    k = _l2_normalize(
        jnp.dot(hk, w2k, preferred_element_type=jnp.float32) + b2k)
    k_ref[...] = k


def _moco_logits_kernel(ptrs_ref,                            # scalar prefetch (SMEM)
                        q_ref, k_ref, queue_ref,
                        lpos_ref, lneg_ref, loss_ref, queue_out_ref,
                        *, inv_T, inv_B, batch):
    d = pl.program_id(0)

    q = q_ref[...] * inv_T          # (B, C); scaling q scales l_pos and l_neg by 1/T
    k = k_ref[...]                  # (B, C)

    # l_pos = einsum('nc,nc->n') / T ; l_neg = q/T @ queue^T (contract feature axis,
    # row-major (K, C) queue -> no materialized transpose).
    l_pos = jnp.sum(q * k, axis=1, keepdims=True)                          # (B, 1)
    l_neg = lax.dot_general(q, queue_ref[...], (((1,), (1,)), ((), ())),
                            preferred_element_type=jnp.float32)            # (B, K)
    lpos_ref[...] = l_pos
    lneg_ref[...] = l_neg

    # Cross-entropy with labels == 0, without materializing concat([l_pos, l_neg]).
    mx = jnp.maximum(jnp.max(l_neg, axis=1, keepdims=True), l_pos)         # (B, 1)
    sum_exp = jnp.exp(l_pos - mx) + jnp.sum(jnp.exp(l_neg - mx), axis=1, keepdims=True)
    lse = mx + jnp.log(sum_exp)
    per_example = lse - l_pos                                              # (B, 1)
    loss_ref[...] = jnp.sum(per_example, axis=0, keepdims=True) * inv_B    # (1, 1)

    # In-kernel enqueue: lane-dense contiguous row write of the new keys at ptr.
    # ptr is always a multiple of the batch size (K % B == 0, no wraparound),
    # so the store start is sublane-aligned.
    ptr = pl.multiple_of(ptrs_ref[d], batch)
    queue_out_ref[...] = queue_ref[...]
    queue_out_ref[pl.ds(ptr, batch), :] = k


# ------------------------------ kernel wrappers ----------------------------- #

def fused_modality(x, enc_q, enc_k, proj_q, proj_k, m):
    """One pallas_call: query path, momentum update, key path for one modality."""
    B = x.shape[0]
    C = proj_q["w2"].shape[1]
    outs = pl.pallas_call(
        functools.partial(_fused_modality_kernel, m=m),
        out_shape=(
            jax.ShapeDtypeStruct((B, C), jnp.float32),                 # q
            jax.ShapeDtypeStruct((B, C), jnp.float32),                 # k
            jax.ShapeDtypeStruct(enc_k["w"].shape, jnp.float32),       # updated key params
            jax.ShapeDtypeStruct(enc_k["b"].shape, jnp.float32),
            jax.ShapeDtypeStruct(proj_k["w1"].shape, jnp.float32),
            jax.ShapeDtypeStruct(proj_k["b1"].shape, jnp.float32),
            jax.ShapeDtypeStruct(proj_k["w2"].shape, jnp.float32),
            jax.ShapeDtypeStruct(proj_k["b2"].shape, jnp.float32),
        ),
        in_specs=[_VMEM] * 13,
        out_specs=(_VMEM,) * 8,
    )(x,
      enc_q["w"], enc_q["b"], enc_k["w"], enc_k["b"],
      proj_q["w1"], proj_q["b1"], proj_q["w2"], proj_q["b2"],
      proj_k["w1"], proj_k["b1"], proj_k["w2"], proj_k["b2"])
    q, k, wk, bk, w1k, b1k, w2k, b2k = outs
    return q, k, {"w": wk, "b": bk}, {"w1": w1k, "b1": b1k, "w2": w2k, "b2": b2k}


def moco_logits_and_enqueue(q_stack, k_stack, queue_stack, ptr_stack, *, T):
    """grid=(n_dir,) over the contrastive directions (parallel -> v7x 2 TCs)."""
    n_dir, B, C = q_stack.shape
    K = queue_stack.shape[1]
    kern = functools.partial(_moco_logits_kernel,
                             inv_T=1.0 / T, inv_B=1.0 / B, batch=B)
    grid_spec = pltpu.PrefetchScalarGridSpec(
        num_scalar_prefetch=1,                                # queue ptrs -> SMEM
        grid=(n_dir,),
        in_specs=[
            pl.BlockSpec((None, B, C), lambda d, ptrs: (d, 0, 0)),   # q
            pl.BlockSpec((None, B, C), lambda d, ptrs: (d, 0, 0)),   # k
            pl.BlockSpec((None, K, C), lambda d, ptrs: (d, 0, 0)),   # queue
        ],
        out_specs=[
            pl.BlockSpec((None, B, 1), lambda d, ptrs: (d, 0, 0)),   # l_pos (already /T)
            pl.BlockSpec((None, B, K), lambda d, ptrs: (d, 0, 0)),   # l_neg (already /T)
            pl.BlockSpec((None, 1, 1), lambda d, ptrs: (d, 0, 0)),   # per-direction mean CE
            pl.BlockSpec((None, K, C), lambda d, ptrs: (d, 0, 0)),   # updated queue
        ],
    )
    return pl.pallas_call(
        kern,
        grid_spec=grid_spec,
        out_shape=(
            jax.ShapeDtypeStruct((n_dir, B, 1), jnp.float32),
            jax.ShapeDtypeStruct((n_dir, B, K), jnp.float32),
            jax.ShapeDtypeStruct((n_dir, 1, 1), jnp.float32),
            jax.ShapeDtypeStruct((n_dir, K, C), jnp.float32),
        ),
        compiler_params=pltpu.CompilerParams(
            dimension_semantics=("parallel",)),
    )(ptr_stack, q_stack, k_stack, queue_stack)


# ------------------------------ forward pass -------------------------------- #

def multimodal_moco_forward(params, state, spectra, lightcurves,
                            *, m=0.999, T=0.07, K=256, bidirectional=True):
    B = spectra.shape[0]
    # Same assumption as PyTorch MoCo: no queue wraparound within a batch.
    assert K % B == 0, "MoCo requires K % batch_size == 0"

    # ---- per-modality fused query/key paths + momentum update ----
    q_s, k_s, enc_s_k, proj_s_k = fused_modality(
        spectra, params["enc_s_q"], params["enc_s_k"],
        params["proj_s_q"], params["proj_s_k"], m)
    q_l, k_l, enc_l_k, proj_l_k = fused_modality(
        lightcurves, params["enc_l_q"], params["enc_l_k"],
        params["proj_l_q"], params["proj_l_k"], m)

    # state["queues"][0] <-> lightcurve_queue (negatives for the s->l direction),
    # state["queues"][1] <-> spectra_queue    (negatives for the l->s direction).
    if bidirectional:
        q_stack = jnp.stack([q_s, q_l])           # direction 0: s->l, direction 1: l->s
        k_stack = jnp.stack([k_l, k_s])
        queue_stack = state["queues"]
        ptr_stack = state["queue_ptrs"]
    else:
        q_stack = q_s[None]
        k_stack = k_l[None]
        queue_stack = state["queues"][0:1]
        ptr_stack = state["queue_ptrs"][0:1]

    l_pos, l_neg, loss_dir, new_queues = moco_logits_and_enqueue(
        q_stack, k_stack, queue_stack, ptr_stack, T=T)

    # logits_s + logits_l == concat(sum_d l_pos, sum_d l_neg); /T already applied.
    logits = jnp.concatenate(
        [jnp.sum(l_pos, axis=0), jnp.sum(l_neg, axis=0)], axis=1)   # (B, 1 + K)
    loss = jnp.sum(loss_dir)
    labels = jnp.zeros((B,), dtype=jnp.int32)

    if bidirectional:
        new_ptrs = (ptr_stack + B) % K
        new_state = {"queues": new_queues, "queue_ptrs": new_ptrs}
    else:
        new_state = {
            "queues": jnp.concatenate([new_queues, state["queues"][1:2]], axis=0),
            "queue_ptrs": state["queue_ptrs"].at[0].set(
                (state["queue_ptrs"][0] + B) % K),
        }

    new_params = dict(params,
                      enc_s_k=enc_s_k, enc_l_k=enc_l_k,
                      proj_s_k=proj_s_k, proj_l_k=proj_l_k)
    return {"loss": loss, "logits": logits, "labels": labels}, new_params, new_state


# ------------------------------ initialization ------------------------------ #

def _init_linear(key, din, dout, scale=0.05):
    kw, kb = jax.random.split(key)
    return {"w": scale * jax.random.normal(kw, (din, dout), jnp.float32),
            "b": scale * jax.random.normal(kb, (1, dout), jnp.float32)}


def _init_projector(key, din, dout, scale=0.05):
    k1, k2 = jax.random.split(key)
    l1 = _init_linear(k1, din, din, scale)
    l2 = _init_linear(k2, din, dout, scale)
    return {"w1": l1["w"], "b1": l1["b"], "w2": l2["w"], "b2": l2["b"]}


def init_all(key, d_spec, d_lc, proj_dim, K):
    keys = jax.random.split(key, 6)
    enc_s_q = _init_linear(keys[0], d_spec, d_spec)
    enc_l_q = _init_linear(keys[1], d_lc, d_lc)
    proj_s_q = _init_projector(keys[2], d_spec, proj_dim)
    proj_l_q = _init_projector(keys[3], d_lc, proj_dim)
    params = {
        "enc_s_q": enc_s_q, "enc_l_q": enc_l_q,
        "proj_s_q": proj_s_q, "proj_l_q": proj_l_q,
        # key branches start as deep copies of the query branches (torch init)
        "enc_s_k": jax.tree_util.tree_map(jnp.copy, enc_s_q),
        "enc_l_k": jax.tree_util.tree_map(jnp.copy, enc_l_q),
        "proj_s_k": jax.tree_util.tree_map(jnp.copy, proj_s_q),
        "proj_l_k": jax.tree_util.tree_map(jnp.copy, proj_l_q),
    }
    # Queues stored row-major (K, proj_dim); each row is an L2-normalized key.
    # Stack index 0 = lightcurve queue, 1 = spectra queue.
    lq = jax.random.normal(keys[4], (K, proj_dim), jnp.float32)
    sq = jax.random.normal(keys[5], (K, proj_dim), jnp.float32)
    lq = lq / jnp.maximum(jnp.linalg.norm(lq, axis=1, keepdims=True), 1e-12)
    sq = sq / jnp.maximum(jnp.linalg.norm(sq, axis=1, keepdims=True), 1e-12)
    state = {"queues": jnp.stack([lq, sq]),
             "queue_ptrs": jnp.zeros((2,), jnp.int32)}
    return params, state


# ----------------------------------- main ----------------------------------- #

if __name__ == "__main__":
    B = 8                              # sublane-aligned batch
    D_SPEC = D_LC = 128                # lane-dense encoder dims (output_dim == input_dim)
    PROJ_DIM, K_QUEUE = 128, 256
    M, T = 0.999, 0.07

    key = jax.random.PRNGKey(0)
    k_params, k_spec, k_lc = jax.random.split(key, 3)

    params, state = init_all(k_params, D_SPEC, D_LC, PROJ_DIM, K_QUEUE)
    spectra = jax.random.normal(k_spec, (B, D_SPEC), jnp.float32)
    lightcurves = jax.random.normal(k_lc, (B, D_LC), jnp.float32)

    fwd = jax.jit(functools.partial(multimodal_moco_forward,
                                    m=M, T=T, K=K_QUEUE, bidirectional=True))
    out, new_params, new_state = fwd(params, state, spectra, lightcurves)

    jax.block_until_ready(out["loss"])
    jax.block_until_ready(out["logits"])
    jax.block_until_ready(new_state["queues"])

    assert out["logits"].shape == (B, 1 + K_QUEUE)
    assert out["labels"].shape == (B,)
    assert new_state["queues"].shape == (2, K_QUEUE, PROJ_DIM)
    assert bool(jnp.isfinite(out["loss"]))
    print("KERNEL_OK")
</pallas_src>

<mosaic_0001>
module attributes {stable_mosaic.version = 11 : i64} {
  func.func @_fused_modality_kernel(%arg0: memref<8x128xf32, #tpu.memory_space<vmem>>, %arg1: memref<128x128xf32, #tpu.memory_space<vmem>>, %arg2: memref<1x128xf32, #tpu.memory_space<vmem>>, %arg3: memref<128x128xf32, #tpu.memory_space<vmem>>, %arg4: memref<1x128xf32, #tpu.memory_space<vmem>>, %arg5: memref<128x128xf32, #tpu.memory_space<vmem>>, %arg6: memref<1x128xf32, #tpu.memory_space<vmem>>, %arg7: memref<128x128xf32, #tpu.memory_space<vmem>>, %arg8: memref<1x128xf32, #tpu.memory_space<vmem>>, %arg9: memref<128x128xf32, #tpu.memory_space<vmem>>, %arg10: memref<1x128xf32, #tpu.memory_space<vmem>>, %arg11: memref<128x128xf32, #tpu.memory_space<vmem>>, %arg12: memref<1x128xf32, #tpu.memory_space<vmem>>, %arg13: memref<8x128xf32, #tpu.memory_space<vmem>>, %arg14: memref<8x128xf32, #tpu.memory_space<vmem>>, %arg15: memref<128x128xf32, #tpu.memory_space<vmem>>, %arg16: memref<1x128xf32, #tpu.memory_space<vmem>>, %arg17: memref<128x128xf32, #tpu.memory_space<vmem>>, %arg18: memref<1x128xf32, #tpu.memory_space<vmem>>, %arg19: memref<128x128xf32, #tpu.memory_space<vmem>>, %arg20: memref<1x128xf32, #tpu.memory_space<vmem>>) attributes {dimension_semantics = [], scalar_prefetch = 0 : i64, scratch_operands = 0 : i64, tpu.core_type = #tpu.core_type<tc>} {
    %c0 = arith.constant 0 : index
    %c0_0 = arith.constant 0 : index
    %0 = vector.load %arg0[%c0, %c0_0] : memref<8x128xf32, #tpu.memory_space<vmem>>, vector<8x128xf32>
    %c0_1 = arith.constant 0 : index
    %c0_2 = arith.constant 0 : index
    %1 = vector.load %arg1[%c0_1, %c0_2] : memref<128x128xf32, #tpu.memory_space<vmem>>, vector<128x128xf32>
    %cst = arith.constant dense<0.000000e+00> : vector<8x128xf32>
    %2 = tpu.matmul %0, %1, %cst {dimension_numbers = #tpu.dot_dimension_numbers<[1], [0], [0], [1], [0, 0, 1, 1], [], []>} : vector<8x128xf32>, vector<128x128xf32>, vector<8x128xf32> -> vector<8x128xf32>
    %c0_3 = arith.constant 0 : index
    %c0_4 = arith.constant 0 : index
    %3 = vector.load %arg2[%c0_3, %c0_4] : memref<1x128xf32, #tpu.memory_space<vmem>>, vector<1x128xf32>
    %4 = vector.broadcast %3 : vector<1x128xf32> to vector<8x128xf32>
    %5 = arith.addf %2, %4 : vector<8x128xf32>
    %c0_5 = arith.constant 0 : index
    %c0_6 = arith.constant 0 : index
    %6 = vector.load %arg5[%c0_5, %c0_6] : memref<128x128xf32, #tpu.memory_space<vmem>>, vector<128x128xf32>
    %cst_7 = arith.constant dense<0.000000e+00> : vector<8x128xf32>
    %7 = tpu.matmul %5, %6, %cst_7 {dimension_numbers = #tpu.dot_dimension_numbers<[1], [0], [0], [1], [0, 0, 1, 1], [], []>} : vector<8x128xf32>, vector<128x128xf32>, vector<8x128xf32> -> vector<8x128xf32>
    %c0_8 = arith.constant 0 : index
    %c0_9 = arith.constant 0 : index
    %8 = vector.load %arg6[%c0_8, %c0_9] : memref<1x128xf32, #tpu.memory_space<vmem>>, vector<1x128xf32>
    %9 = vector.broadcast %8 : vector<1x128xf32> to vector<8x128xf32>
    %10 = arith.addf %7, %9 : vector<8x128xf32>
    %cst_10 = arith.constant 0.000000e+00 : f32
    %11 = vector.broadcast %cst_10 : f32 to vector<8x128xf32>
    %12 = arith.maximumf %10, %11 : vector<8x128xf32>
    %c0_11 = arith.constant 0 : index
    %c0_12 = arith.constant 0 : index
    %13 = vector.load %arg7[%c0_11, %c0_12] : memref<128x128xf32, #tpu.memory_space<vmem>>, vector<128x128xf32>
    %cst_13 = arith.constant dense<0.000000e+00> : vector<8x128xf32>
    %14 = tpu.matmul %12, %13, %cst_13 {dimension_numbers = #tpu.dot_dimension_numbers<[1], [0], [0], [1], [0, 0, 1, 1], [], []>} : vector<8x128xf32>, vector<128x128xf32>, vector<8x128xf32> -> vector<8x128xf32>
    %c0_14 = arith.constant 0 : index
    %c0_15 = arith.constant 0 : index
    %15 = vector.load %arg8[%c0_14, %c0_15] : memref<1x128xf32, #tpu.memory_space<vmem>>, vector<1x128xf32>
    %16 = vector.broadcast %15 : vector<1x128xf32> to vector<8x128xf32>
    %17 = arith.addf %14, %16 : vector<8x128xf32>
    %18 = arith.mulf %17, %17 : vector<8x128xf32>
    %cst_16 = arith.constant dense<0.000000e+00> : vector<8xf32>
    %19 = vector.multi_reduction <add>, %18, %cst_16 [1] : vector<8x128xf32> to vector<8xf32>
    %20 = vector.shape_cast %19 : vector<8xf32> to vector<8x1xf32>
    %cst_17 = arith.constant 1.000000e-24 : f32
    %21 = vector.broadcast %cst_17 : f32 to vector<8x1xf32>
    %22 = arith.maximumf %20, %21 : vector<8x1xf32>
    %23 = math.rsqrt %22 : vector<8x1xf32>
    %24 = vector.broadcast %23 : vector<8x1xf32> to vector<8x128xf32>
    %25 = arith.mulf %17, %24 : vector<8x128xf32>
    %c0_18 = arith.constant 0 : index
    %c0_19 = arith.constant 0 : index
    %26 = vector.load %arg13[%c0_18, %c0_19] : memref<8x128xf32, #tpu.memory_space<vmem>>, vector<8x128xf32>
    tpu.vector_store %arg13[%c0_18, %c0_19], %25 {strides = array<i32>} : memref<8x128xf32, #tpu.memory_space<vmem>>, vector<8x128xf32>,
    %c0_20 = arith.constant 0 : index
    %c0_21 = arith.constant 0 : index
    %27 = vector.load %arg3[%c0_20, %c0_21] : memref<128x128xf32, #tpu.memory_space<vmem>>, vector<128x128xf32>
    %cst_22 = arith.constant 9.990000e-01 : f32
    %28 = vector.broadcast %cst_22 : f32 to vector<128x128xf32>
    %29 = arith.mulf %28, %27 : vector<128x128xf32>
    %c0_23 = arith.constant 0 : index
    %c0_24 = arith.constant 0 : index
    %30 = vector.load %arg1[%c0_23, %c0_24] : memref<128x128xf32, #tpu.memory_space<vmem>>, vector<128x128xf32>
    %cst_25 = arith.constant 1.000000e-03 : f32
    %31 = vector.broadcast %cst_25 : f32 to vector<128x128xf32>
    %32 = arith.mulf %31, %30 : vector<128x128xf32>
    %33 = arith.addf %29, %32 : vector<128x128xf32>
    %c0_26 = arith.constant 0 : index
    %c0_27 = arith.constant 0 : index
    %34 = vector.load %arg4[%c0_26, %c0_27] : memref<1x128xf32, #tpu.memory_space<vmem>>, vector<1x128xf32>
    %cst_28 = arith.constant 9.990000e-01 : f32
    %35 = vector.broadcast %cst_28 : f32 to vector<1x128xf32>
    %36 = arith.mulf %35, %34 : vector<1x128xf32>
    %c0_29 = arith.constant 0 : index
    %c0_30 = arith.constant 0 : index
    %37 = vector.load %arg2[%c0_29, %c0_30] : memref<1x128xf32, #tpu.memory_space<vmem>>, vector<1x128xf32>
    %cst_31 = arith.constant 1.000000e-03 : f32
    %38 = vector.broadcast %cst_31 : f32 to vector<1x128xf32>
    %39 = arith.mulf %38, %37 : vector<1x128xf32>
    %40 = arith.addf %36, %39 : vector<1x128xf32>
    %c0_32 = arith.constant 0 : index
    %c0_33 = arith.constant 0 : index
    %41 = vector.load %arg9[%c0_32, %c0_33] : memref<128x128xf32, #tpu.memory_space<vmem>>, vector<128x128xf32>
    %cst_34 = arith.constant 9.990000e-01 : f32
    %42 = vector.broadcast %cst_34 : f32 to vector<128x128xf32>
    %43 = arith.mulf %42, %41 : vector<128x128xf32>
    %c0_35 = arith.constant 0 : index
    %c0_36 = arith.constant 0 : index
    %44 = vector.load %arg5[%c0_35, %c0_36] : memref<128x128xf32, #tpu.memory_space<vmem>>, vector<128x128xf32>
    %cst_37 = arith.constant 1.000000e-03 : f32
    %45 = vector.broadcast %cst_37 : f32 to vector<128x128xf32>
    %46 = arith.mulf %45, %44 : vector<128x128xf32>
    %47 = arith.addf %43, %46 : vector<128x128xf32>
    %c0_38 = arith.constant 0 : index
    %c0_39 = arith.constant 0 : index
    %48 = vector.load %arg10[%c0_38, %c0_39] : memref<1x128xf32, #tpu.memory_space<vmem>>, vector<1x128xf32>
    %cst_40 = arith.constant 9.990000e-01 : f32
    %49 = vector.broadcast %cst_40 : f32 to vector<1x128xf32>
    %50 = arith.mulf %49, %48 : vector<1x128xf32>
    %c0_41 = arith.constant 0 : index
    %c0_42 = arith.constant 0 : index
    %51 = vector.load %arg6[%c0_41, %c0_42] : memref<1x128xf32, #tpu.memory_space<vmem>>, vector<1x128xf32>
    %cst_43 = arith.constant 1.000000e-03 : f32
    %52 = vector.broadcast %cst_43 : f32 to vector<1x128xf32>
    %53 = arith.mulf %52, %51 : vector<1x128xf32>
    %54 = arith.addf %50, %53 : vector<1x128xf32>
    %c0_44 = arith.constant 0 : index
    %c0_45 = arith.constant 0 : index
    %55 = vector.load %arg11[%c0_44, %c0_45] : memref<128x128xf32, #tpu.memory_space<vmem>>, vector<128x128xf32>
    %cst_46 = arith.constant 9.990000e-01 : f32
    %56 = vector.broadcast %cst_46 : f32 to vector<128x128xf32>
    %57 = arith.mulf %56, %55 : vector<128x128xf32>
    %c0_47 = arith.constant 0 : index
    %c0_48 = arith.constant 0 : index
    %58 = vector.load %arg7[%c0_47, %c0_48] : memref<128x128xf32, #tpu.memory_space<vmem>>, vector<128x128xf32>
    %cst_49 = arith.constant 1.000000e-03 : f32
    %59 = vector.broadcast %cst_49 : f32 to vector<128x128xf32>
    %60 = arith.mulf %59, %58 : vector<128x128xf32>
    %61 = arith.addf %57, %60 : vector<128x128xf32>
    %c0_50 = arith.constant 0 : index
    %c0_51 = arith.constant 0 : index
    %62 = vector.load %arg12[%c0_50, %c0_51] : memref<1x128xf32, #tpu.memory_space<vmem>>, vector<1x128xf32>
    %cst_52 = arith.constant 9.990000e-01 : f32
    %63 = vector.broadcast %cst_52 : f32 to vector<1x128xf32>
    %64 = arith.mulf %63, %62 : vector<1x128xf32>
    %c0_53 = arith.constant 0 : index
    %c0_54 = arith.constant 0 : index
    %65 = vector.load %arg8[%c0_53, %c0_54] : memref<1x128xf32, #tpu.memory_space<vmem>>, vector<1x128xf32>
    %cst_55 = arith.constant 1.000000e-03 : f32
    %66 = vector.broadcast %cst_55 : f32 to vector<1x128xf32>
    %67 = arith.mulf %66, %65 : vector<1x128xf32>
    %68 = arith.addf %64, %67 : vector<1x128xf32>
    %c0_56 = arith.constant 0 : index
    %c0_57 = arith.constant 0 : index
    %69 = vector.load %arg15[%c0_56, %c0_57] : memref<128x128xf32, #tpu.memory_space<vmem>>, vector<128x128xf32>
    tpu.vector_store %arg15[%c0_56, %c0_57], %33 {strides = array<i32>} : memref<128x128xf32, #tpu.memory_space<vmem>>, vector<128x128xf32>,
    %c0_58 = arith.constant 0 : index
    %c0_59 = arith.constant 0 : index
    %70 = vector.load %arg16[%c0_58, %c0_59] : memref<1x128xf32, #tpu.memory_space<vmem>>, vector<1x128xf32>
    tpu.vector_store %arg16[%c0_58, %c0_59], %40 {strides = array<i32>} : memref<1x128xf32, #tpu.memory_space<vmem>>, vector<1x128xf32>,
    %c0_60 = arith.constant 0 : index
    %c0_61 = arith.constant 0 : index
    %71 = vector.load %arg17[%c0_60, %c0_61] : memref<128x128xf32, #tpu.memory_space<vmem>>, vector<128x128xf32>
    tpu.vector_store %arg17[%c0_60, %c0_61], %47 {strides = array<i32>} : memref<128x128xf32, #tpu.memory_space<vmem>>, vector<128x128xf32>,
    %c0_62 = arith.constant 0 : index
    %c0_63 = arith.constant 0 : index
    %72 = vector.load %arg18[%c0_62, %c0_63] : memref<1x128xf32, #tpu.memory_space<vmem>>, vector<1x128xf32>
    tpu.vector_store %arg18[%c0_62, %c0_63], %54 {strides = array<i32>} : memref<1x128xf32, #tpu.memory_space<vmem>>, vector<1x128xf32>,
    %c0_64 = arith.constant 0 : index
    %c0_65 = arith.constant 0 : index
    %73 = vector.load %arg19[%c0_64, %c0_65] : memref<128x128xf32, #tpu.memory_space<vmem>>, vector<128x128xf32>
    tpu.vector_store %arg19[%c0_64, %c0_65], %61 {strides = array<i32>} : memref<128x128xf32, #tpu.memory_space<vmem>>, vector<128x128xf32>,
    %c0_66 = arith.constant 0 : index
    %c0_67 = arith.constant 0 : index
    %74 = vector.load %arg20[%c0_66, %c0_67] : memref<1x128xf32, #tpu.memory_space<vmem>>, vector<1x128xf32>
    tpu.vector_store %arg20[%c0_66, %c0_67], %68 {strides = array<i32>} : memref<1x128xf32, #tpu.memory_space<vmem>>, vector<1x128xf32>,
    %cst_68 = arith.constant dense<0.000000e+00> : vector<8x128xf32>
    %75 = tpu.matmul %5, %33, %cst_68 {dimension_numbers = #tpu.dot_dimension_numbers<[1], [0], [0], [1], [0, 0, 1, 1], [], []>} : vector<8x128xf32>, vector<128x128xf32>, vector<8x128xf32> -> vector<8x128xf32>
    %76 = vector.broadcast %40 : vector<1x128xf32> to vector<8x128xf32>
    %77 = arith.addf %75, %76 : vector<8x128xf32>
    %cst_69 = arith.constant dense<0.000000e+00> : vector<8x128xf32>
    %78 = tpu.matmul %77, %47, %cst_69 {dimension_numbers = #tpu.dot_dimension_numbers<[1], [0], [0], [1], [0, 0, 1, 1], [], []>} : vector<8x128xf32>, vector<128x128xf32>, vector<8x128xf32> -> vector<8x128xf32>
    %79 = vector.broadcast %54 : vector<1x128xf32> to vector<8x128xf32>
    %80 = arith.addf %78, %79 : vector<8x128xf32>
    %cst_70 = arith.constant 0.000000e+00 : f32
    %81 = vector.broadcast %cst_70 : f32 to vector<8x128xf32>
    %82 = arith.maximumf %80, %81 : vector<8x128xf32>
    %cst_71 = arith.constant dense<0.000000e+00> : vector<8x128xf32>
    %83 = tpu.matmul %82, %61, %cst_71 {dimension_numbers = #tpu.dot_dimension_numbers<[1], [0], [0], [1], [0, 0, 1, 1], [], []>} : vector<8x128xf32>, vector<128x128xf32>, vector<8x128xf32> -> vector<8x128xf32>
    %84 = vector.broadcast %68 : vector<1x128xf32> to vector<8x128xf32>
    %85 = arith.addf %83, %84 : vector<8x128xf32>
    %86 = arith.mulf %85, %85 : vector<8x128xf32>
    %cst_72 = arith.constant dense<0.000000e+00> : vector<8xf32>
    %87 = vector.multi_reduction <add>, %86, %cst_72 [1] : vector<8x128xf32> to vector<8xf32>
    %88 = vector.shape_cast %87 : vector<8xf32> to vector<8x1xf32>
    %cst_73 = arith.constant 1.000000e-24 : f32
    %89 = vector.broadcast %cst_73 : f32 to vector<8x1xf32>
    %90 = arith.maximumf %88, %89 : vector<8x1xf32>
    %91 = math.rsqrt %90 : vector<8x1xf32>
    %92 = vector.broadcast %91 : vector<8x1xf32> to vector<8x128xf32>
    %93 = arith.mulf %85, %92 : vector<8x128xf32>
    %c0_74 = arith.constant 0 : index
    %c0_75 = arith.constant 0 : index
    %94 = vector.load %arg14[%c0_74, %c0_75] : memref<8x128xf32, #tpu.memory_space<vmem>>, vector<8x128xf32>
    tpu.vector_store %arg14[%c0_74, %c0_75], %93 {strides = array<i32>} : memref<8x128xf32, #tpu.memory_space<vmem>>, vector<8x128xf32>,
    return
  }
}

module attributes {stable_mosaic.version = 11 : i64} {
  func.func @_moco_logits_kernel(%arg0: i32, %arg1: memref<2xi32, #tpu.memory_space<smem>>, %arg2: memref<1x8x128xf32, #tpu.memory_space<vmem>>, %arg3: memref<1x8x128xf32, #tpu.memory_space<vmem>>, %arg4: memref<1x256x128xf32, #tpu.memory_space<vmem>>, %arg5: memref<1x8x1xf32, #tpu.memory_space<vmem>>, %arg6: memref<1x8x256xf32, #tpu.memory_space<vmem>>, %arg7: memref<1x1x1xf32, #tpu.memory_space<vmem>>, %arg8: memref<1x256x128xf32, #tpu.memory_space<vmem>>) attributes {dimension_semantics = [#tpu.dimension_semantics<parallel>], iteration_bounds = array<i64: 2>, scalar_prefetch = 1 : i64, scratch_operands = 0 : i64, tpu.core_type = #tpu.core_type<tc>, window_params = [{transform_indices = @transform_0, window_bounds = array<i64: 1, 8, 128>}, {transform_indices = @transform_1, window_bounds = array<i64: 1, 8, 128>}, {transform_indices = @transform_2, window_bounds = array<i64: 1, 256, 128>}, {transform_indices = @transform_3, window_bounds = array<i64: 1, 8, 1>}, {transform_indices = @transform_4, window_bounds = array<i64: 1, 8, 256>}, {transform_indices = @transform_5, window_bounds = array<i64: 1, 1, 1>}, {transform_indices = @transform_6, window_bounds = array<i64: 1, 256, 128>}]} {
    %c0 = arith.constant 0 : index
    %c0_0 = arith.constant 0 : index
    %c0_1 = arith.constant 0 : index
    %0 = vector.load %arg2[%c0, %c0_0, %c0_1] : memref<1x8x128xf32, #tpu.memory_space<vmem>>, vector<1x8x128xf32>
    %1 = vector.shape_cast %0 : vector<1x8x128xf32> to vector<8x128xf32>
    %cst = arith.constant 14.2857141 : f32
    %2 = vector.broadcast %cst : f32 to vector<8x128xf32>
    %3 = arith.mulf %1, %2 : vector<8x128xf32>
    %c0_2 = arith.constant 0 : index
    %c0_3 = arith.constant 0 : index
    %c0_4 = arith.constant 0 : index
    %4 = vector.load %arg3[%c0_2, %c0_3, %c0_4] : memref<1x8x128xf32, #tpu.memory_space<vmem>>, vector<1x8x128xf32>
    %5 = vector.shape_cast %4 : vector<1x8x128xf32> to vector<8x128xf32>
    %6 = arith.mulf %3, %5 : vector<8x128xf32>
    %cst_5 = arith.constant dense<0.000000e+00> : vector<8xf32>
    %7 = vector.multi_reduction <add>, %6, %cst_5 [1] : vector<8x128xf32> to vector<8xf32>
    %8 = vector.shape_cast %7 : vector<8xf32> to vector<8x1xf32>
    %c0_6 = arith.constant 0 : index
    %c0_7 = arith.constant 0 : index
    %c0_8 = arith.constant 0 : index
    %9 = vector.load %arg4[%c0_6, %c0_7, %c0_8] : memref<1x256x128xf32, #tpu.memory_space<vmem>>, vector<1x256x128xf32>
    %10 = vector.shape_cast %9 : vector<1x256x128xf32> to vector<256x128xf32>
    %cst_9 = arith.constant dense<0.000000e+00> : vector<8x256xf32>
    %11 = tpu.matmul %3, %10, %cst_9 {dimension_numbers = #tpu.dot_dimension_numbers<[1], [1], [0], [0], [0, 0, 1, 0], [], []>} : vector<8x128xf32>, vector<256x128xf32>, vector<8x256xf32> -> vector<8x256xf32>
    %c0_10 = arith.constant 0 : index
    %c0_11 = arith.constant 0 : index
    %c0_12 = arith.constant 0 : index
    %12 = vector.load %arg5[%c0_10, %c0_11, %c0_12] : memref<1x8x1xf32, #tpu.memory_space<vmem>>, vector<1x8x1xf32>
    %13 = vector.shape_cast %12 : vector<1x8x1xf32> to vector<8x1xf32>
    %14 = vector.shape_cast %8 : vector<8x1xf32> to vector<1x8x1xf32>
    tpu.vector_store %arg5[%c0_10, %c0_11, %c0_12], %14 {strides = array<i32>} : memref<1x8x1xf32, #tpu.memory_space<vmem>>, vector<1x8x1xf32>,
    %c0_13 = arith.constant 0 : index
    %c0_14 = arith.constant 0 : index
    %c0_15 = arith.constant 0 : index
    %15 = vector.load %arg6[%c0_13, %c0_14, %c0_15] : memref<1x8x256xf32, #tpu.memory_space<vmem>>, vector<1x8x256xf32>
    %16 = vector.shape_cast %15 : vector<1x8x256xf32> to vector<8x256xf32>
    %17 = vector.shape_cast %11 : vector<8x256xf32> to vector<1x8x256xf32>
    tpu.vector_store %arg6[%c0_13, %c0_14, %c0_15], %17 {strides = array<i32>} : memref<1x8x256xf32, #tpu.memory_space<vmem>>, vector<1x8x256xf32>,
    %cst_16 = arith.constant dense<0xFF800000> : vector<8xf32>
    %18 = vector.multi_reduction <maximumf>, %11, %cst_16 [1] : vector<8x256xf32> to vector<8xf32>
    %19 = vector.shape_cast %18 : vector<8xf32> to vector<8x1xf32>
    %20 = arith.maximumf %19, %8 : vector<8x1xf32>
    %21 = arith.subf %8, %20 : vector<8x1xf32>
    %22 = math.exp %21 : vector<8x1xf32>
    %23 = vector.broadcast %20 : vector<8x1xf32> to vector<8x256xf32>
    %24 = arith.subf %11, %23 : vector<8x256xf32>
    %25 = math.exp %24 : vector<8x256xf32>
    %cst_17 = arith.constant dense<0.000000e+00> : vector<8xf32>
    %26 = vector.multi_reduction <add>, %25, %cst_17 [1] : vector<8x256xf32> to vector<8xf32>
    %27 = vector.shape_cast %26 : vector<8xf32> to vector<8x1xf32>
    %28 = arith.addf %22, %27 : vector<8x1xf32>
    %29 = math.log %28 : vector<8x1xf32>
    %30 = arith.addf %20, %29 : vector<8x1xf32>
    %31 = arith.subf %30, %8 : vector<8x1xf32>
    %cst_18 = arith.constant dense<0.000000e+00> : vector<1xf32>
    %32 = vector.multi_reduction <add>, %31, %cst_18 [0] : vector<8x1xf32> to vector<1xf32>
    %33 = vector.shape_cast %32 : vector<1xf32> to vector<1x1xf32>
    %cst_19 = arith.constant 1.250000e-01 : f32
    %34 = vector.broadcast %cst_19 : f32 to vector<1x1xf32>
    %35 = arith.mulf %33, %34 : vector<1x1xf32>
    %c0_20 = arith.constant 0 : index
    %c0_21 = arith.constant 0 : index
    %c0_22 = arith.constant 0 : index
    %36 = vector.load %arg7[%c0_20, %c0_21, %c0_22] : memref<1x1x1xf32, #tpu.memory_space<vmem>>, vector<1x1x1xf32>
    %37 = vector.shape_cast %36 : vector<1x1x1xf32> to vector<1x1xf32>
    %38 = vector.shape_cast %35 : vector<1x1xf32> to vector<1x1x1xf32>
    tpu.vector_store %arg7[%c0_20, %c0_21, %c0_22], %38 {strides = array<i32>} : memref<1x1x1xf32, #tpu.memory_space<vmem>>, vector<1x1x1xf32>,
    %39 = arith.index_cast %arg0 : i32 to index
    %40 = memref.load %arg1[%39] : memref<2xi32, #tpu.memory_space<smem>>
    %41 = tpu.assume_multiple %40, 8 : i32
    %c0_23 = arith.constant 0 : index
    %c0_24 = arith.constant 0 : index
    %c0_25 = arith.constant 0 : index
    %42 = vector.load %arg4[%c0_23, %c0_24, %c0_25] : memref<1x256x128xf32, #tpu.memory_space<vmem>>, vector<1x256x128xf32>
    %43 = vector.shape_cast %42 : vector<1x256x128xf32> to vector<256x128xf32>
    %c0_26 = arith.constant 0 : index
    %c0_27 = arith.constant 0 : index
    %c0_28 = arith.constant 0 : index
    %44 = vector.load %arg8[%c0_26, %c0_27, %c0_28] : memref<1x256x128xf32, #tpu.memory_space<vmem>>, vector<1x256x128xf32>
    %45 = vector.shape_cast %44 : vector<1x256x128xf32> to vector<256x128xf32>
    %46 = vector.shape_cast %43 : vector<256x128xf32> to vector<1x256x128xf32>
    tpu.vector_store %arg8[%c0_26, %c0_27, %c0_28], %46 {strides = array<i32>} : memref<1x256x128xf32, #tpu.memory_space<vmem>>, vector<1x256x128xf32>,
    %c0_29 = arith.constant 0 : index
    %47 = arith.index_cast %41 : i32 to index
    %c0_30 = arith.constant 0 : index
    %48 = vector.load %arg8[%c0_29, %47, %c0_30] : memref<1x256x128xf32, #tpu.memory_space<vmem>>, vector<1x8x128xf32>
    %49 = vector.shape_cast %48 : vector<1x8x128xf32> to vector<8x128xf32>
    %50 = vector.shape_cast %5 : vector<8x128xf32> to vector<1x8x128xf32>
    tpu.vector_store %arg8[%c0_29, %47, %c0_30], %50 {strides = array<i32>} : memref<1x256x128xf32, #tpu.memory_space<vmem>>, vector<1x8x128xf32>,
    return
  }
  func.func @transform_0(%arg0: i32, %arg1: memref<2xi32, #tpu.memory_space<smem>>) -> (i32, i32, i32) {
    %c0_i32 = arith.constant 0 : i32
    %c0_i32_0 = arith.constant 0 : i32
    %c0_i32_1 = arith.constant 0 : i32
    return %arg0, %c0_i32, %c0_i32_0 : i32, i32, i32
  }
  func.func @transform_1(%arg0: i32, %arg1: memref<2xi32, #tpu.memory_space<smem>>) -> (i32, i32, i32) {
    %c0_i32 = arith.constant 0 : i32
    %c0_i32_0 = arith.constant 0 : i32
    %c0_i32_1 = arith.constant 0 : i32
    return %arg0, %c0_i32, %c0_i32_0 : i32, i32, i32
  }
  func.func @transform_2(%arg0: i32, %arg1: memref<2xi32, #tpu.memory_space<smem>>) -> (i32, i32, i32) {
    %c0_i32 = arith.constant 0 : i32
    %c0_i32_0 = arith.constant 0 : i32
    %c0_i32_1 = arith.constant 0 : i32
    return %arg0, %c0_i32, %c0_i32_0 : i32, i32, i32
  }
  func.func @transform_3(%arg0: i32, %arg1: memref<2xi32, #tpu.memory_space<smem>>) -> (i32, i32, i32) {
    %c0_i32 = arith.constant 0 : i32
    %c0_i32_0 = arith.constant 0 : i32
    %c0_i32_1 = arith.constant 0 : i32
    return %arg0, %c0_i32, %c0_i32_0 : i32, i32, i32
  }
  func.func @transform_4(%arg0: i32, %arg1: memref<2xi32, #tpu.memory_space<smem>>) -> (i32, i32, i32) {
    %c0_i32 = arith.constant 0 : i32
    %c0_i32_0 = arith.constant 0 : i32
    %c0_i32_1 = arith.constant 0 : i32
    return %arg0, %c0_i32, %c0_i32_0 : i32, i32, i32
  }
  func.func @transform_5(%arg0: i32, %arg1: memref<2xi32, #tpu.memory_space<smem>>) -> (i32, i32, i32) {
    %c0_i32 = arith.constant 0 : i32
    %c0_i32_0 = arith.constant 0 : i32
    %c0_i32_1 = arith.constant 0 : i32
    return %arg0, %c0_i32, %c0_i32_0 : i32, i32, i32
  }
  func.func @transform_6(%arg0: i32, %arg1: memref<2xi32, #tpu.memory_space<smem>>) -> (i32, i32, i32) {
    %c0_i32 = arith.constant 0 : i32
    %c0_i32_0 = arith.constant 0 : i32
    %c0_i32_1 = arith.constant 0 : i32
    return %arg0, %c0_i32, %c0_i32_0 : i32, i32, i32
  }
}

module attributes {stable_mosaic.version = 11 : i64} {
  func.func @_fused_modality_kernel(%arg0: memref<8x128xf32, #tpu.memory_space<vmem>>, %arg1: memref<128x128xf32, #tpu.memory_space<vmem>>, %arg2: memref<1x128xf32, #tpu.memory_space<vmem>>, %arg3: memref<128x128xf32, #tpu.memory_space<vmem>>, %arg4: memref<1x128xf32, #tpu.memory_space<vmem>>, %arg5: memref<128x128xf32, #tpu.memory_space<vmem>>, %arg6: memref<1x128xf32, #tpu.memory_space<vmem>>, %arg7: memref<128x128xf32, #tpu.memory_space<vmem>>, %arg8: memref<1x128xf32, #tpu.memory_space<vmem>>, %arg9: memref<128x128xf32, #tpu.memory_space<vmem>>, %arg10: memref<1x128xf32, #tpu.memory_space<vmem>>, %arg11: memref<128x128xf32, #tpu.memory_space<vmem>>, %arg12: memref<1x128xf32, #tpu.memory_space<vmem>>, %arg13: memref<8x128xf32, #tpu.memory_space<vmem>>, %arg14: memref<8x128xf32, #tpu.memory_space<vmem>>, %arg15: memref<128x128xf32, #tpu.memory_space<vmem>>, %arg16: memref<1x128xf32, #tpu.memory_space<vmem>>, %arg17: memref<128x128xf32, #tpu.memory_space<vmem>>, %arg18: memref<1x128xf32, #tpu.memory_space<vmem>>, %arg19: memref<128x128xf32, #tpu.memory_space<vmem>>, %arg20: memref<1x128xf32, #tpu.memory_space<vmem>>) attributes {dimension_semantics = [], scalar_prefetch = 0 : i64, scratch_operands = 0 : i64, tpu.core_type = #tpu.core_type<tc>} {
    %c0 = arith.constant 0 : index
    %c0_0 = arith.constant 0 : index
    %0 = vector.load %arg0[%c0, %c0_0] : memref<8x128xf32, #tpu.memory_space<vmem>>, vector<8x128xf32>
    %c0_1 = arith.constant 0 : index
    %c0_2 = arith.constant 0 : index
    %1 = vector.load %arg1[%c0_1, %c0_2] : memref<128x128xf32, #tpu.memory_space<vmem>>, vector<128x128xf32>
    %cst = arith.constant dense<0.000000e+00> : vector<8x128xf32>
    %2 = tpu.matmul %0, %1, %cst {dimension_numbers = #tpu.dot_dimension_numbers<[1], [0], [0], [1], [0, 0, 1, 1], [], []>} : vector<8x128xf32>, vector<128x128xf32>, vector<8x128xf32> -> vector<8x128xf32>
    %c0_3 = arith.constant 0 : index
    %c0_4 = arith.constant 0 : index
    %3 = vector.load %arg2[%c0_3, %c0_4] : memref<1x128xf32, #tpu.memory_space<vmem>>, vector<1x128xf32>
    %4 = vector.broadcast %3 : vector<1x128xf32> to vector<8x128xf32>
    %5 = arith.addf %2, %4 : vector<8x128xf32>
    %c0_5 = arith.constant 0 : index
    %c0_6 = arith.constant 0 : index
    %6 = vector.load %arg5[%c0_5, %c0_6] : memref<128x128xf32, #tpu.memory_space<vmem>>, vector<128x128xf32>
    %cst_7 = arith.constant dense<0.000000e+00> : vector<8x128xf32>
    %7 = tpu.matmul %5, %6, %cst_7 {dimension_numbers = #tpu.dot_dimension_numbers<[1], [0], [0], [1], [0, 0, 1, 1], [], []>} : vector<8x128xf32>, vector<128x128xf32>, vector<8x128xf32> -> vector<8x128xf32>
    %c0_8 = arith.constant 0 : index
    %c0_9 = arith.constant 0 : index
    %8 = vector.load %arg6[%c0_8, %c0_9] : memref<1x128xf32, #tpu.memory_space<vmem>>, vector<1x128xf32>
    %9 = vector.broadcast %8 : vector<1x128xf32> to vector<8x128xf32>
    %10 = arith.addf %7, %9 : vector<8x128xf32>
    %cst_10 = arith.constant 0.000000e+00 : f32
    %11 = vector.broadcast %cst_10 : f32 to vector<8x128xf32>
    %12 = arith.maximumf %10, %11 : vector<8x128xf32>
    %c0_11 = arith.constant 0 : index
    %c0_12 = arith.constant 0 : index
    %13 = vector.load %arg7[%c0_11, %c0_12] : memref<128x128xf32, #tpu.memory_space<vmem>>, vector<128x128xf32>
    %cst_13 = arith.constant dense<0.000000e+00> : vector<8x128xf32>
    %14 = tpu.matmul %12, %13, %cst_13 {dimension_numbers = #tpu.dot_dimension_numbers<[1], [0], [0], [1], [0, 0, 1, 1], [], []>} : vector<8x128xf32>, vector<128x128xf32>, vector<8x128xf32> -> vector<8x128xf32>
    %c0_14 = arith.constant 0 : index
    %c0_15 = arith.constant 0 : index
    %15 = vector.load %arg8[%c0_14, %c0_15] : memref<1x128xf32, #tpu.memory_space<vmem>>, vector<1x128xf32>
    %16 = vector.broadcast %15 : vector<1x128xf32> to vector<8x128xf32>
    %17 = arith.addf %14, %16 : vector<8x128xf32>
    %18 = arith.mulf %17, %17 : vector<8x128xf32>
    %cst_16 = arith.constant dense<0.000000e+00> : vector<8xf32>
    %19 = vector.multi_reduction <add>, %18, %cst_16 [1] : vector<8x128xf32> to vector<8xf32>
    %20 = vector.shape_cast %19 : vector<8xf32> to vector<8x1xf32>
    %cst_17 = arith.constant 1.000000e-24 : f32
    %21 = vector.broadcast %cst_17 : f32 to vector<8x1xf32>
    %22 = arith.maximumf %20, %21 : vector<8x1xf32>
    %23 = math.rsqrt %22 : vector<8x1xf32>
    %24 = vector.broadcast %23 : vector<8x1xf32> to vector<8x128xf32>
    %25 = arith.mulf %17, %24 : vector<8x128xf32>
    %c0_18 = arith.constant 0 : index
    %c0_19 = arith.constant 0 : index
    %26 = vector.load %arg13[%c0_18, %c0_19] : memref<8x128xf32, #tpu.memory_space<vmem>>, vector<8x128xf32>
    tpu.vector_store %arg13[%c0_18, %c0_19], %25 {strides = array<i32>} : memref<8x128xf32, #tpu.memory_space<vmem>>, vector<8x128xf32>,
    %c0_20 = arith.constant 0 : index
    %c0_21 = arith.constant 0 : index
    %27 = vector.load %arg3[%c0_20, %c0_21] : memref<128x128xf32, #tpu.memory_space<vmem>>, vector<128x128xf32>
    %cst_22 = arith.constant 9.990000e-01 : f32
    %28 = vector.broadcast %cst_22 : f32 to vector<128x128xf32>
    %29 = arith.mulf %28, %27 : vector<128x128xf32>
    %c0_23 = arith.constant 0 : index
    %c0_24 = arith.constant 0 : index
    %30 = vector.load %arg1[%c0_23, %c0_24] : memref<128x128xf32, #tpu.memory_space<vmem>>, vector<128x128xf32>
    %cst_25 = arith.constant 1.000000e-03 : f32
    %31 = vector.broadcast %cst_25 : f32 to vector<128x128xf32>
    %32 = arith.mulf %31, %30 : vector<128x128xf32>
    %33 = arith.addf %29, %32 : vector<128x128xf32>
    %c0_26 = arith.constant 0 : index
    %c0_27 = arith.constant 0 : index
    %34 = vector.load %arg4[%c0_26, %c0_27] : memref<1x128xf32, #tpu.memory_space<vmem>>, vector<1x128xf32>
    %cst_28 = arith.constant 9.990000e-01 : f32
    %35 = vector.broadcast %cst_28 : f32 to vector<1x128xf32>
    %36 = arith.mulf %35, %34 : vector<1x128xf32>
    %c0_29 = arith.constant 0 : index
    %c0_30 = arith.constant 0 : index
    %37 = vector.load %arg2[%c0_29, %c0_30] : memref<1x128xf32, #tpu.memory_space<vmem>>, vector<1x128xf32>
    %cst_31 = arith.constant 1.000000e-03 : f32
    %38 = vector.broadcast %cst_31 : f32 to vector<1x128xf32>
    %39 = arith.mulf %38, %37 : vector<1x128xf32>
    %40 = arith.addf %36, %39 : vector<1x128xf32>
    %c0_32 = arith.constant 0 : index
    %c0_33 = arith.constant 0 : index
    %41 = vector.load %arg9[%c0_32, %c0_33] : memref<128x128xf32, #tpu.memory_space<vmem>>, vector<128x128xf32>
    %cst_34 = arith.constant 9.990000e-01 : f32
    %42 = vector.broadcast %cst_34 : f32 to vector<128x128xf32>
    %43 = arith.mulf %42, %41 : vector<128x128xf32>
    %c0_35 = arith.constant 0 : index
    %c0_36 = arith.constant 0 : index
    %44 = vector.load %arg5[%c0_35, %c0_36] : memref<128x128xf32, #tpu.memory_space<vmem>>, vector<128x128xf32>
    %cst_37 = arith.constant 1.000000e-03 : f32
    %45 = vector.broadcast %cst_37 : f32 to vector<128x128xf32>
    %46 = arith.mulf %45, %44 : vector<128x128xf32>
    %47 = arith.addf %43, %46 : vector<128x128xf32>
    %c0_38 = arith.constant 0 : index
    %c0_39 = arith.constant 0 : index
    %48 = vector.load %arg10[%c0_38, %c0_39] : memref<1x128xf32, #tpu.memory_space<vmem>>, vector<1x128xf32>
    %cst_40 = arith.constant 9.990000e-01 : f32
    %49 = vector.broadcast %cst_40 : f32 to vector<1x128xf32>
    %50 = arith.mulf %49, %48 : vector<1x128xf32>
    %c0_41 = arith.constant 0 : index
    %c0_42 = arith.constant 0 : index
    %51 = vector.load %arg6[%c0_41, %c0_42] : memref<1x128xf32, #tpu.memory_space<vmem>>, vector<1x128xf32>
    %cst_43 = arith.constant 1.000000e-03 : f32
    %52 = vector.broadcast %cst_43 : f32 to vector<1x128xf32>
    %53 = arith.mulf %52, %51 : vector<1x128xf32>
    %54 = arith.addf %50, %53 : vector<1x128xf32>
    %c0_44 = arith.constant 0 : index
    %c0_45 = arith.constant 0 : index
    %55 = vector.load %arg11[%c0_44, %c0_45] : memref<128x128xf32, #tpu.memory_space<vmem>>, vector<128x128xf32>
    %cst_46 = arith.constant 9.990000e-01 : f32
    %56 = vector.broadcast %cst_46 : f32 to vector<128x128xf32>
    %57 = arith.mulf %56, %55 : vector<128x128xf32>
    %c0_47 = arith.constant 0 : index
    %c0_48 = arith.constant 0 : index
    %58 = vector.load %arg7[%c0_47, %c0_48] : memref<128x128xf32, #tpu.memory_space<vmem>>, vector<128x128xf32>
    %cst_49 = arith.constant 1.000000e-03 : f32
    %59 = vector.broadcast %cst_49 : f32 to vector<128x128xf32>
    %60 = arith.mulf %59, %58 : vector<128x128xf32>
    %61 = arith.addf %57, %60 : vector<128x128xf32>
    %c0_50 = arith.constant 0 : index
    %c0_51 = arith.constant 0 : index
    %62 = vector.load %arg12[%c0_50, %c0_51] : memref<1x128xf32, #tpu.memory_space<vmem>>, vector<1x128xf32>
    %cst_52 = arith.constant 9.990000e-01 : f32
    %63 = vector.broadcast %cst_52 : f32 to vector<1x128xf32>
    %64 = arith.mulf %63, %62 : vector<1x128xf32>
    %c0_53 = arith.constant 0 : index
    %c0_54 = arith.constant 0 : index
    %65 = vector.load %arg8[%c0_53, %c0_54] : memref<1x128xf32, #tpu.memory_space<vmem>>, vector<1x128xf32>
    %cst_55 = arith.constant 1.000000e-03 : f32
    %66 = vector.broadcast %cst_55 : f32 to vector<1x128xf32>
    %67 = arith.mulf %66, %65 : vector<1x128xf32>
    %68 = arith.addf %64, %67 : vector<1x128xf32>
    %c0_56 = arith.constant 0 : index
    %c0_57 = arith.constant 0 : index
    %69 = vector.load %arg15[%c0_56, %c0_57] : memref<128x128xf32, #tpu.memory_space<vmem>>, vector<128x128xf32>
    tpu.vector_store %arg15[%c0_56, %c0_57], %33 {strides = array<i32>} : memref<128x128xf32, #tpu.memory_space<vmem>>, vector<128x128xf32>,
    %c0_58 = arith.constant 0 : index
    %c0_59 = arith.constant 0 : index
    %70 = vector.load %arg16[%c0_58, %c0_59] : memref<1x128xf32, #tpu.memory_space<vmem>>, vector<1x128xf32>
    tpu.vector_store %arg16[%c0_58, %c0_59], %40 {strides = array<i32>} : memref<1x128xf32, #tpu.memory_space<vmem>>, vector<1x128xf32>,
    %c0_60 = arith.constant 0 : index
    %c0_61 = arith.constant 0 : index
    %71 = vector.load %arg17[%c0_60, %c0_61] : memref<128x128xf32, #tpu.memory_space<vmem>>, vector<128x128xf32>
    tpu.vector_store %arg17[%c0_60, %c0_61], %47 {strides = array<i32>} : memref<128x128xf32, #tpu.memory_space<vmem>>, vector<128x128xf32>,
    %c0_62 = arith.constant 0 : index
    %c0_63 = arith.constant 0 : index
    %72 = vector.load %arg18[%c0_62, %c0_63] : memref<1x128xf32, #tpu.memory_space<vmem>>, vector<1x128xf32>
    tpu.vector_store %arg18[%c0_62, %c0_63], %54 {strides = array<i32>} : memref<1x128xf32, #tpu.memory_space<vmem>>, vector<1x128xf32>,
    %c0_64 = arith.constant 0 : index
    %c0_65 = arith.constant 0 : index
    %73 = vector.load %arg19[%c0_64, %c0_65] : memref<128x128xf32, #tpu.memory_space<vmem>>, vector<128x128xf32>
    tpu.vector_store %arg19[%c0_64, %c0_65], %61 {strides = array<i32>} : memref<128x128xf32, #tpu.memory_space<vmem>>, vector<128x128xf32>,
    %c0_66 = arith.constant 0 : index
    %c0_67 = arith.constant 0 : index
    %74 = vector.load %arg20[%c0_66, %c0_67] : memref<1x128xf32, #tpu.memory_space<vmem>>, vector<1x128xf32>
    tpu.vector_store %arg20[%c0_66, %c0_67], %68 {strides = array<i32>} : memref<1x128xf32, #tpu.memory_space<vmem>>, vector<1x128xf32>,
    %cst_68 = arith.constant dense<0.000000e+00> : vector<8x128xf32>
    %75 = tpu.matmul %5, %33, %cst_68 {dimension_numbers = #tpu.dot_dimension_numbers<[1], [0], [0], [1], [0, 0, 1, 1], [], []>} : vector<8x128xf32>, vector<128x128xf32>, vector<8x128xf32> -> vector<8x128xf32>
    %76 = vector.broadcast %40 : vector<1x128xf32> to vector<8x128xf32>
    %77 = arith.addf %75, %76 : vector<8x128xf32>
    %cst_69 = arith.constant dense<0.000000e+00> : vector<8x128xf32>
    %78 = tpu.matmul %77, %47, %cst_69 {dimension_numbers = #tpu.dot_dimension_numbers<[1], [0], [0], [1], [0, 0, 1, 1], [], []>} : vector<8x128xf32>, vector<128x128xf32>, vector<8x128xf32> -> vector<8x128xf32>
    %79 = vector.broadcast %54 : vector<1x128xf32> to vector<8x128xf32>
    %80 = arith.addf %78, %79 : vector<8x128xf32>
    %cst_70 = arith.constant 0.000000e+00 : f32
    %81 = vector.broadcast %cst_70 : f32 to vector<8x128xf32>
    %82 = arith.maximumf %80, %81 : vector<8x128xf32>
    %cst_71 = arith.constant dense<0.000000e+00> : vector<8x128xf32>
    %83 = tpu.matmul %82, %61, %cst_71 {dimension_numbers = #tpu.dot_dimension_numbers<[1], [0], [0], [1], [0, 0, 1, 1], [], []>} : vector<8x128xf32>, vector<128x128xf32>, vector<8x128xf32> -> vector<8x128xf32>
    %84 = vector.broadcast %68 : vector<1x128xf32> to vector<8x128xf32>
    %85 = arith.addf %83, %84 : vector<8x128xf32>
    %86 = arith.mulf %85, %85 : vector<8x128xf32>
    %cst_72 = arith.constant dense<0.000000e+00> : vector<8xf32>
    %87 = vector.multi_reduction <add>, %86, %cst_72 [1] : vector<8x128xf32> to vector<8xf32>
    %88 = vector.shape_cast %87 : vector<8xf32> to vector<8x1xf32>
    %cst_73 = arith.constant 1.000000e-24 : f32
    %89 = vector.broadcast %cst_73 : f32 to vector<8x1xf32>
    %90 = arith.maximumf %88, %89 : vector<8x1xf32>
    %91 = math.rsqrt %90 : vector<8x1xf32>
    %92 = vector.broadcast %91 : vector<8x1xf32> to vector<8x128xf32>
    %93 = arith.mulf %85, %92 : vector<8x128xf32>
    %c0_74 = arith.constant 0 : index
    %c0_75 = arith.constant 0 : index
    %94 = vector.load %arg14[%c0_74, %c0_75] : memref<8x128xf32, #tpu.memory_space<vmem>>, vector<8x128xf32>
    tpu.vector_store %arg14[%c0_74, %c0_75], %93 {strides = array<i32>} : memref<8x128xf32, #tpu.memory_space<vmem>>, vector<8x128xf32>,
    return
  }
}

</mosaic_0001>

<llo_original>
// kernel: multimodal_moco_forward.5
$region0: #{multimodal_moco_forward.5}
  #allocation0 [shape = 'u32[]', space=smem, size = 0x4, offset = 0x4, fixed_abs, tag = 'smem constant byte address 0x4 - core index']
  #allocation1 [shape = 'u32[144,128]{1,0:T(1,128)}', space=vmem, size = 0x12000, scoped, tag = 'internal scratch']
  #allocation2 [shape = 's32[1]{0}', space=sflag, size = 0x4, scoped, tag = 'scoped memory for multimodal_moco_forward.5']
  #allocation3 [shape = 'u8[512]{0}', space=smem, size = 0x200, scoped, tag = 'prefetched SMEM operand 0']
  %s0 = inlined_call_operand.vmem [shape: s32[2], index: 0, kind: input, shape index: {}]
  %s1 = inlined_call_operand.vmem [shape: f32[2,8,128], index: 1, kind: input, shape index: {}]
  %s2 = inlined_call_operand.vmem [shape: f32[2,8,128], index: 2, kind: input, shape index: {}]
  %s3 = inlined_call_operand.vmem [shape: f32[2,256,128], index: 3, kind: input, shape index: {}]
  %s4 = inlined_call_operand.vmem [shape: f32[2,8,1], index: 4, kind: output, shape index: {0}]
  %s5 = inlined_call_operand.vmem [shape: f32[2,8,256], index: 5, kind: output, shape index: {1}]
  %s6 = inlined_call_operand.vmem [shape: f32[2,1,1], index: 6, kind: output, shape index: {2}]
  %s7 = inlined_call_operand.hbm [shape: f32[2,256,128], index: 7, kind: output, shape index: {3}]
  %8 = xla_tuple %s4, %s5, %s6, %s7
  %s9 = sld [smem:[#allocation0]]
  $region69: #{multimodal_moco_forward.5} parent=0
    _
  %s11 = ssub.s32 1, %s9
  %s12 = scalar_select 0, %s11, %s9
  %s13 = sshll.u32 %s0, 4
  %s14 = int_to_ptr.vmem [resolvable:$true] %s13
  %16 = dma.vmem_to_smem %s14, 16, [#allocation3], [#allocation2]
  %17 = dma.done [#allocation2], 16
  %18 = sfence
  $region1: #{multimodal_moco_forward.5} parent=0
    #allocation4 [shape = 'u8[262144]{0}', space=vmem, size = 0x40000, scoped, tag = 'output window, operand 3']
    #allocation5 [shape = 's32[2]{0}', space=sflag, size = 0x8, scoped, tag = 'scoped memory for multimodal_moco_forward.5']
    %19 = vsyncpa [#allocation5], 0
    %s20 = scalar_lea.sflag [#allocation5], 1
    %21 = vsyncpa %s20, 0
    loop: start=0, step=1, limit=4
    $region2: #{multimodal_moco_forward.5} parent=1 // loop_pre_header
      _
    $region3: #{multimodal_moco_forward.5} parent=1 // loop_header
      %s23 = sphi 0, %s27
      %p24 = scmp.ge.s32.totalorder %s23, 4
      %s33 = sphi 0, %s35
      %s36 = sphi 0, %s33
      %s37 = sphi 0, %s36
      %s53 = sphi 0, %s37
      %s59 = sphi 0, %s61
      %s62 = sphi 0, %s59
      %s63 = sphi 0, %s62
      %s79 = sphi 0, %s63
      %s85 = sphi 0, %s87
      %s88 = sphi 0, %s85
      %s89 = sphi 0, %s88
      %s105 = sphi 0, %s89
      %s111 = sphi 0, %s113
      %s114 = sphi 0, %s111
      %s115 = sphi 0, %s114
      %s131 = sphi 0, %s115
      %s137 = sphi 0, %s139
      %s140 = sphi 0, %s137
      %s141 = sphi 0, %s140
      %s157 = sphi 0, %s141
      %s163 = sphi 0, %s165
      %s166 = sphi 0, %s163
      %s167 = sphi 0, %s166
      %s183 = sphi 0, %s167
      %s189 = sphi 0, %s191
      %s192 = sphi 0, %s189
      %s193 = sphi 0, %s192
      %s209 = sphi 0, %s193
    $region4: #{multimodal_moco_forward.5} parent=1 // loop_header_branch
      %26 = sbr.rel (%p24) target = $region8
    $region5: #{multimodal_moco_forward.5} parent=1 // loop_body
      %s28 = ssub.s32 %s23, 1
      %s29 = ssub.s32 %s23, 2
      %s30 = sadd.s32 %s23, 1
      %s31 = ssub.s32 %s23, %s30
      %p32 = scmp.eq.s32.totalorder %s31, 0
      %s34 = sadd.s32 %s33, 1
      %s35 = scalar_select %p32, %s33, %s34
      %p38 = pneg %p32
      %p39 = scmp.eq.s32.totalorder %s23, 1
      %p40 = por %p38, %p39
      %p41 = scmp.ne.s32.totalorder %s33, %s36
      %p42 = scmp.eq.s32.totalorder %s23, 0
      %p43 = por %p41, %p42
      %p44 = scmp.ne.s32.totalorder %s33, %s36
      %p45 = scmp.eq.s32.totalorder %s28, 1
      %p46 = por %p44, %p45
      %p47 = scmp.ne.s32.totalorder %s36, %s37
      %p48 = scmp.eq.s32.totalorder %s28, 0
      %p49 = por %p47, %p48
      %p50 = scmp.ne.s32.totalorder %s36, %s37
      %p51 = scmp.eq.s32.totalorder %s29, 1
      %p52 = por %p50, %p51
      %p54 = scmp.ne.s32.totalorder %s37, %s53
      %p55 = scmp.eq.s32.totalorder %s29, 0
      %p56 = por %p54, %p55
      %s57 = ssub.s32 %s23, %s30
      %p58 = scmp.eq.s32.totalorder %s57, 0
      %s60 = sadd.s32 %s59, 1
      %s61 = scalar_select %p58, %s59, %s60
      %p64 = pneg %p58
      %p65 = scmp.eq.s32.totalorder %s23, 1
      %p66 = por %p64, %p65
      %p67 = scmp.ne.s32.totalorder %s59, %s62
      %p68 = scmp.eq.s32.totalorder %s23, 0
      %p69 = por %p67, %p68
      %p70 = scmp.ne.s32.totalorder %s59, %s62
      %p71 = scmp.eq.s32.totalorder %s28, 1
      %p72 = por %p70, %p71
      %p73 = scmp.ne.s32.totalorder %s62, %s63
      %p74 = scmp.eq.s32.totalorder %s28, 0
      %p75 = por %p73, %p74
      %p76 = scmp.ne.s32.totalorder %s62, %s63
      %p77 = scmp.eq.s32.totalorder %s29, 1
      %p78 = por %p76, %p77
      %p80 = scmp.ne.s32.totalorder %s63, %s79
      %p81 = scmp.eq.s32.totalorder %s29, 0
      %p82 = por %p80, %p81
      %s83 = ssub.s32 %s23, %s30
      %p84 = scmp.eq.s32.totalorder %s83, 0
      %s86 = sadd.s32 %s85, 1
      %s87 = scalar_select %p84, %s85, %s86
      %p90 = pneg %p84
      %p91 = scmp.eq.s32.totalorder %s23, 1
      %p92 = por %p90, %p91
      %p93 = scmp.ne.s32.totalorder %s85, %s88
      %p94 = scmp.eq.s32.totalorder %s23, 0
      %p95 = por %p93, %p94
      %p96 = scmp.ne.s32.totalorder %s85, %s88
      %p97 = scmp.eq.s32.totalorder %s28, 1
      %p98 = por %p96, %p97
      %p99 = scmp.ne.s32.totalorder %s88, %s89
      %p100 = scmp.eq.s32.totalorder %s28, 0
      %p101 = por %p99, %p100
      %p102 = scmp.ne.s32.totalorder %s88, %s89
      %p103 = scmp.eq.s32.totalorder %s29, 1
      %p104 = por %p102, %p103
      %p106 = scmp.ne.s32.totalorder %s89, %s105
      %p107 = scmp.eq.s32.totalorder %s29, 0
      %p108 = por %p106, %p107
      %s109 = ssub.s32 %s23, %s30
      %p110 = scmp.eq.s32.totalorder %s109, 0
      %s112 = sadd.s32 %s111, 1
      %s113 = scalar_select %p110, %s111, %s112
      %p116 = pneg %p110
      %p117 = scmp.eq.s32.totalorder %s23, 1
      %p118 = por %p116, %p117
      %p119 = scmp.ne.s32.totalorder %s111, %s114
      %p120 = scmp.eq.s32.totalorder %s23, 0
      %p121 = por %p119, %p120
      %p122 = scmp.ne.s32.totalorder %s111, %s114
      %p123 = scmp.eq.s32.totalorder %s28, 1
      %p124 = por %p122, %p123
      %p125 = scmp.ne.s32.totalorder %s114, %s115
      %p126 = scmp.eq.s32.totalorder %s28, 0
      %p127 = por %p125, %p126
      %p128 = scmp.ne.s32.totalorder %s114, %s115
      %p129 = scmp.eq.s32.totalorder %s29, 1
      %p130 = por %p128, %p129
      %p132 = scmp.ne.s32.totalorder %s115, %s131
      %p133 = scmp.eq.s32.totalorder %s29, 0
      %p134 = por %p132, %p133
      %s135 = ssub.s32 %s23, %s30
      %p136 = scmp.eq.s32.totalorder %s135, 0
      %s138 = sadd.s32 %s137, 1
      %s139 = scalar_select %p136, %s137, %s138
      %p142 = pneg %p136
      %p143 = scmp.eq.s32.totalorder %s23, 1
      %p144 = por %p142, %p143
      %p145 = scmp.ne.s32.totalorder %s137, %s140
      %p146 = scmp.eq.s32.totalorder %s23, 0
      %p147 = por %p145, %p146
      %p148 = scmp.ne.s32.totalorder %s137, %s140
      %p149 = scmp.eq.s32.totalorder %s28, 1
      %p150 = por %p148, %p149
      %p151 = scmp.ne.s32.totalorder %s140, %s141
      %p152 = scmp.eq.s32.totalorder %s28, 0
      %p153 = por %p151, %p152
      %p154 = scmp.ne.s32.totalorder %s140, %s141
      %p155 = scmp.eq.s32.totalorder %s29, 1
      %p156 = por %p154, %p155
      %p158 = scmp.ne.s32.totalorder %s141, %s157
      %p159 = scmp.eq.s32.totalorder %s29, 0
      %p160 = por %p158, %p159
      %s161 = ssub.s32 %s23, %s30
      %p162 = scmp.eq.s32.totalorder %s161, 0
      %s164 = sadd.s32 %s163, 1
      %s165 = scalar_select %p162, %s163, %s164
      %p168 = pneg %p162
      %p169 = scmp.eq.s32.totalorder %s23, 1
      %p170 = por %p168, %p169
      %p171 = scmp.ne.s32.totalorder %s163, %s166
      %p172 = scmp.eq.s32.totalorder %s23, 0
      %p173 = por %p171, %p172
      %p174 = scmp.ne.s32.totalorder %s163, %s166
      %p175 = scmp.eq.s32.totalorder %s28, 1
      %p176 = por %p174, %p175
      %p177 = scmp.ne.s32.totalorder %s166, %s167
      %p178 = scmp.eq.s32.totalorder %s28, 0
      %p179 = por %p177, %p178
      %p180 = scmp.ne.s32.totalorder %s166, %s167
      %p181 = scmp.eq.s32.totalorder %s29, 1
      %p182 = por %p180, %p181
      %p184 = scmp.ne.s32.totalorder %s167, %s183
      %p185 = scmp.eq.s32.totalorder %s29, 0
      %p186 = por %p184, %p185
      %s187 = ssub.s32 %s23, %s30
      %p188 = scmp.eq.s32.totalorder %s187, 0
      %s190 = sadd.s32 %s189, 1
      %s191 = scalar_select %p188, %s189, %s190
      %p194 = pneg %p188
      %p195 = scmp.eq.s32.totalorder %s23, 1
      %p196 = por %p194, %p195
      %p197 = scmp.ne.s32.totalorder %s189, %s192
      %p198 = scmp.eq.s32.totalorder %s23, 0
      %p199 = por %p197, %p198
      %p200 = scmp.ne.s32.totalorder %s189, %s192
      %p201 = scmp.eq.s32.totalorder %s28, 1
      %p202 = por %p200, %p201
      %p203 = scmp.ne.s32.totalorder %s192, %s193
      %p204 = scmp.eq.s32.totalorder %s28, 0
      %p205 = por %p203, %p204
      %p206 = scmp.ne.s32.totalorder %s192, %s193
      %p207 = scmp.eq.s32.totalorder %s29, 1
      %p208 = por %p206, %p207
      %p210 = scmp.ne.s32.totalorder %s193, %s209
      %p211 = scmp.eq.s32.totalorder %s29, 0
      %p212 = por %p210, %p211
      %p213 = scmp.le.s32.totalorder 1, %s23
      %p214 = scmp.lt.s32.totalorder %s23, 3
      %p215 = pnand %p213, %p214
      %p216 = pneg %p215
      // Predicated region
      $region9: #{multimodal_moco_forward.5} parent=5 // pred_check
        _
      $region10: #{multimodal_moco_forward.5} parent=5 // pred_check_branch
        %218 = sbr.rel (%p215) target = $region12
      $region11: #{multimodal_moco_forward.5} parent=5 // pred_region
        %s219 = ssub.s32 %s23, 1
      $region12: #{multimodal_moco_forward.5} parent=5 // pred_fallthru
        _
      %p220 = scmp.lt.s32.totalorder %s23, 2
      // Predicated region
      $region13: #{multimodal_moco_forward.5} parent=5 // pred_check
        %p221 = pneg %p220
      $region14: #{multimodal_moco_forward.5} parent=5 // pred_check_branch
        %223 = sbr.rel (%p221) target = $region16
      $region15: #{multimodal_moco_forward.5} parent=5 // pred_region
        // Predicated region
        $region17: #{multimodal_moco_forward.5} parent=15 // pred_check
          %p224 = pneg %p43
        $region18: #{multimodal_moco_forward.5} parent=15 // pred_check_branch
          %226 = sbr.rel (%p224) target = $region20
        $region19: #{multimodal_moco_forward.5} parent=15 // pred_region
          %p227 = scmp.lt.s32.totalorder %s23, 1
          %s228 = scalar_select %p227, %s23, 1
          %s229 = smul.addr %s228, 8
          %s230 = scalar_lea.vmem %s1, %s229
        $region20: #{multimodal_moco_forward.5} parent=15 // pred_fallthru
          _
        // Predicated region
        $region21: #{multimodal_moco_forward.5} parent=15 // pred_check
          %p231 = pneg %p69
        $region22: #{multimodal_moco_forward.5} parent=15 // pred_check_branch
          %233 = sbr.rel (%p231) target = $region24
        $region23: #{multimodal_moco_forward.5} parent=15 // pred_region
          %p234 = scmp.lt.s32.totalorder %s23, 1
          %s235 = scalar_select %p234, %s23, 1
          %s236 = smul.addr %s235, 8
          %s237 = scalar_lea.vmem %s2, %s236
        $region24: #{multimodal_moco_forward.5} parent=15 // pred_fallthru
          _
        // Predicated region
        $region25: #{multimodal_moco_forward.5} parent=15 // pred_check
          %p238 = pneg %p95
        $region26: #{multimodal_moco_forward.5} parent=15 // pred_check_branch
          %240 = sbr.rel (%p238) target = $region28
        $region27: #{multimodal_moco_forward.5} parent=15 // pred_region
          %p241 = scmp.lt.s32.totalorder %s23, 1
          %s242 = scalar_select %p241, %s23, 1
          %s243 = smul.addr %s242, 32
          %s244 = smul.addr %s243, 8
          %s245 = scalar_lea.vmem %s3, %s244
        $region28: #{multimodal_moco_forward.5} parent=15 // pred_fallthru
          _
      $region16: #{multimodal_moco_forward.5} parent=5 // pred_fallthru
        _
      %p246 = scmp.le.s32.totalorder 1, %s23
      %p247 = scmp.lt.s32.totalorder %s23, 3
      %p248 = pnand %p246, %p247
      %p249 = pneg %p248
      // Predicated region
      $region29: #{multimodal_moco_forward.5} parent=5 // pred_check
        _
      $region30: #{multimodal_moco_forward.5} parent=5 // pred_check_branch
        %251 = sbr.rel (%p248) target = $region32
      $region31: #{multimodal_moco_forward.5} parent=5 // pred_region
        %s252 = ssub.s32 %s23, 1
        %p253 = scmp.lt.s32.totalorder %s28, 1
        %s254 = scalar_select %p253, %s28, 1
        %s255 = smul.addr %s254, 8
        %s256 = scalar_lea.vmem %s1, %s255
        %p257 = pneg %p49
        %p258 = pneg %p46
        %p259 = scmp.lt.s32.totalorder %s28, 1
        %s260 = scalar_select %p259, %s28, 1
        %s261 = smul.addr %s260, 8
        %s262 = scalar_lea.vmem %s2, %s261
        %p263 = pneg %p75
        %p264 = pneg %p72
        %p265 = scmp.lt.s32.totalorder %s28, 1
        %s266 = scalar_select %p265, %s28, 1
        %s267 = smul.addr %s266, 32
        %s268 = smul.addr %s267, 8
        %s269 = scalar_lea.vmem %s3, %s268
        %p270 = pneg %p101
        %p271 = pneg %p98
        %p272 = pneg %p127
        %p273 = pneg %p124
        %p274 = scmp.lt.s32.totalorder %s28, 1
        %s275 = scalar_select %p274, %s28, 1
        %s276 = smul.addr %s275, 8
        %s277 = scalar_lea.vmem %s4, %s276
        %p278 = pneg %p153
        %p279 = pneg %p150
        %p280 = scmp.lt.s32.totalorder %s28, 1
        %s281 = scalar_select %p280, %s28, 1
        %s282 = smul.addr %s281, 2
        %s283 = smul.addr %s282, 8
        %s284 = scalar_lea.vmem %s5, %s283
        %p285 = pneg %p179
        %p286 = pneg %p176
        %p287 = scmp.lt.s32.totalorder %s28, 1
        %s288 = scalar_select %p287, %s28, 1
        %s289 = scalar_lea.vmem %s6, %s288
        %p290 = pneg %p205
        %p291 = pneg %p202
        %s292 = sand.u32 %s192, 1
        %s293 = scalar_lea.sflag [#allocation5], %s292
        %s294 = sand.u32 %s192, 1
        %s295 = smul.addr %s294, 256
        %s296 = scalar_lea.vmem [#allocation4], %s295
        %p297 = scmp.lt.s32.totalorder %s28, 1
        %s298 = scalar_select %p297, %s28, 1
        %s299 = smul.addr %s298, 8
        %s300 = scalar_lea.vmem %s1, %s299
        %p301 = scmp.lt.s32.totalorder %s28, 1
        %s302 = scalar_select %p301, %s28, 1
        %s303 = smul.addr %s302, 8
        %s304 = scalar_lea.vmem %s2, %s303
        %p305 = scmp.lt.s32.totalorder %s28, 1
        %s306 = scalar_select %p305, %s28, 1
        %s307 = smul.addr %s306, 32
        %s308 = smul.addr %s307, 8
        %s309 = scalar_lea.vmem %s3, %s308
        %p310 = scmp.lt.s32.totalorder %s28, 1
        %s311 = scalar_select %p310, %s28, 1
        %s312 = smul.addr %s311, 8
        %s313 = scalar_lea.vmem %s4, %s312
        %p314 = scmp.lt.s32.totalorder %s28, 1
        %s315 = scalar_select %p314, %s28, 1
        %s316 = smul.addr %s315, 2
        %s317 = smul.addr %s316, 8
        %s318 = scalar_lea.vmem %s5, %s317
        %p319 = scmp.lt.s32.totalorder %s28, 1
        %s320 = scalar_select %p319, %s28, 1
        %s321 = scalar_lea.vmem %s6, %s320
        %v322 = vld [vmem:[%s300] sm:$0xff]
        %v323 = vmul.f32 %v322, 14.285714
        %v324 = vld [vmem:[%s304] sm:$0xff]
        %v325 = vmul.f32 %v323, %v324
        %326 = vadd.xlane.f32.xlu0 %v325
        %v327 = vpop.xlane.xlu0 %326
        %v328 = vld [vmem:[%s309] sm:$0xff]
        %v329 = vld [vmem:[%s309 + $0x8] sm:$0xff]
        %v330 = vld [vmem:[%s309 + $0x10] sm:$0xff]
        %v331 = vld [vmem:[%s309 + $0x18] sm:$0xff]
        %v332 = vld [vmem:[%s309 + $0x20] sm:$0xff]
        %v333 = vld [vmem:[%s309 + $0x28] sm:$0xff]
        %v334 = vld [vmem:[%s309 + $0x30] sm:$0xff]
        %v335 = vld [vmem:[%s309 + $0x38] sm:$0xff]
        %v336 = vld [vmem:[%s309 + $0x40] sm:$0xff]
        %v337 = vld [vmem:[%s309 + $0x48] sm:$0xff]
        %v338 = vld [vmem:[%s309 + $0x50] sm:$0xff]
        %v339 = vld [vmem:[%s309 + $0x58] sm:$0xff]
        %v340 = vld [vmem:[%s309 + $0x60] sm:$0xff]
        %v341 = vld [vmem:[%s309 + $0x68] sm:$0xff]
        %v342 = vld [vmem:[%s309 + $0x70] sm:$0xff]
        %v343 = vld [vmem:[%s309 + $0x78] sm:$0xff]
        %v344 = vld [vmem:[%s309 + $0x80] sm:$0xff]
        %v345 = vld [vmem:[%s309 + $0x88] sm:$0xff]
        %v346 = vld [vmem:[%s309 + $0x90] sm:$0xff]
        %v347 = vld [vmem:[%s309 + $0x98] sm:$0xff]
        %v348 = vld [vmem:[%s309 + $0xa0] sm:$0xff]
        %v349 = vld [vmem:[%s309 + $0xa8] sm:$0xff]
        %v350 = vld [vmem:[%s309 + $0xb0] sm:$0xff]
        %v351 = vld [vmem:[%s309 + $0xb8] sm:$0xff]
        %v352 = vld [vmem:[%s309 + $0xc0] sm:$0xff]
        %v353 = vld [vmem:[%s309 + $0xc8] sm:$0xff]
        %v354 = vld [vmem:[%s309 + $0xd0] sm:$0xff]
        %v355 = vld [vmem:[%s309 + $0xd8] sm:$0xff]
        %v356 = vld [vmem:[%s309 + $0xe0] sm:$0xff]
        %v357 = vld [vmem:[%s309 + $0xe8] sm:$0xff]
        %v358 = vld [vmem:[%s309 + $0xf0] sm:$0xff]
        %v359 = vld [vmem:[%s309 + $0xf8] sm:$0xff]
        %360 = vmatprep.subr.mxu0 0.0
        %361 = vmatpush1.xpose.msra.mxu0 %v328
        %362 = vmatprep.subr.mxu0 0.0
        %363 = vmatpush1.xpose.msra.mxu0 %v329
        %364 = vmatprep.subr.mxu0 0.0
        %365 = vmatpush1.xpose.msra.mxu0 %v330
        %366 = vmatprep.subr.mxu0 0.0
        %367 = vmatpush1.xpose.msra.mxu0 %v331
        %368 = vmatprep.subr.mxu0 0.0
        %369 = vmatpush1.xpose.msra.mxu0 %v332
        %370 = vmatprep.subr.mxu0 0.0
        %371 = vmatpush1.xpose.msra.mxu0 %v333
        %372 = vmatprep.subr.mxu0 0.0
        %373 = vmatpush1.xpose.msra.mxu0 %v334
        %374 = vmatprep.subr.mxu0 0.0
        %375 = vmatpush1.xpose.msra.mxu0 %v335
        %376 = vmatprep.subr.mxu0 0.0
        %377 = vmatpush1.xpose.msra.mxu0 %v336
        %378 = vmatprep.subr.mxu0 0.0
        %379 = vmatpush1.xpose.msra.mxu0 %v337
        %380 = vmatprep.subr.mxu0 0.0
        %381 = vmatpush1.xpose.msra.mxu0 %v338
        %382 = vmatprep.subr.mxu0 0.0
        %383 = vmatpush1.xpose.msra.mxu0 %v339
        %384 = vmatprep.subr.mxu0 0.0
        %385 = vmatpush1.xpose.msra.mxu0 %v340
        %386 = vmatprep.subr.mxu0 0.0
        %387 = vmatpush1.xpose.msra.mxu0 %v341
        %388 = vmatprep.subr.mxu0 0.0
        %389 = vmatpush1.xpose.msra.mxu0 %v342
        %390 = vmatprep.subr.mxu0 0.0
        %391 = vmatpush1.xpose.msra.mxu0 %v343
        %392 = vmatprep.subr.mxu0 0.0
        %393 = vmatpush1.xpose.msra.mxu0 %v344
        %394 = vmatprep.subr.mxu0 0.0
        %395 = vmatpush1.xpose.msra.mxu0 %v345
        %396 = vmatprep.subr.mxu0 0.0
        %397 = vmatpush1.xpose.msra.mxu0 %v346
        %398 = vmatprep.subr.mxu0 0.0
        %399 = vmatpush1.xpose.msra.mxu0 %v347
        %400 = vmatprep.subr.mxu0 0.0
        %401 = vmatpush1.xpose.msra.mxu0 %v348
        %402 = vmatprep.subr.mxu0 0.0
        %403 = vmatpush1.xpose.msra.mxu0 %v349
        %404 = vmatprep.subr.mxu0 0.0
        %405 = vmatpush1.xpose.msra.mxu0 %v350
        %406 = vmatprep.subr.mxu0 0.0
        %407 = vmatpush1.xpose.msra.mxu0 %v351
        %408 = vmatprep.subr.mxu0 0.0
        %409 = vmatpush1.xpose.msra.mxu0 %v352
        %410 = vmatprep.subr.mxu0 0.0
        %411 = vmatpush1.xpose.msra.mxu0 %v353
        %412 = vmatprep.subr.mxu0 0.0
        %413 = vmatpush1.xpose.msra.mxu0 %v354
        %414 = vmatprep.subr.mxu0 0.0
        %415 = vmatpush1.xpose.msra.mxu0 %v355
        %416 = vmatprep.subr.mxu0 0.0
        %417 = vmatpush1.xpose.msra.mxu0 %v356
        %418 = vmatprep.subr.mxu0 0.0
        %419 = vmatpush1.xpose.msra.mxu0 %v357
        %420 = vmatprep.subr.mxu0 0.0
        %421 = vmatpush1.xpose.msra.mxu0 %v358
        %422 = vmatprep.subr.mxu0 0.0
        %423 = vmatpush1.xpose.msra.mxu0 %v359
        %424 = vmatprep.mubr.f32.mxu0 0.0
        %425 = vmatmul.mubr.f32.gmra.mrb[0].mxu0 %v323
        %v426 = vpop.f32.mrb[0].mxu0
        %v427 = vadd.f32 0.0, %v426
        %v428 = vpop.f32.mrb[0].mxu0
        %v429 = vadd.f32 0.0, %v428
        %430 = vdwg.mxu0
        %vm431 = vcmask 7168
        %432 = vst.msk [vmem:[%s313] sm:$0xff] %vm431, %v327
        %433 = vst [vmem:[%s318] sm:$0xff] %v427
        %434 = vst [vmem:[%s318 + $0x8] sm:$0xff] %v429
        %v435 = vmax.f32 %v427, %v429
        %436 = vmax.xlane.f32.xlu0 %v435
        %v437 = vpop.xlane.xlu0 %436
        %v438 = vmax.f32 %v437, %v327
        %v439 = vsub.f32 %v327, %v438
        %v440 = vmul.f32 %v439, 1.442695
        %v441 = vpow.pop %v440
        %v442 = vsub.f32 %v427, %v438
        %v443 = vsub.f32 %v429, %v438
        %v444 = vmul.f32 %v442, 1.442695
        %v445 = vpow.pop %v444
        %v446 = vmul.f32 %v443, 1.442695
        %v447 = vpow.pop %v446
        %v448 = vadd.f32 %v445, %v447
        %449 = vadd.xlane.f32.xlu0 %v448
        %v450 = vpop.xlane.xlu0 %449
        %v451 = vadd.f32 %v441, %v450
        %v452 = vlog2.pop %v451
        %v453 = vmul.f32 %v452, 0.6931472
        %v454 = vadd.f32 %v438, %v453
        %v455 = vsub.f32 %v454, %v327
        %v456 = vrot.slane %v455, 4
        %v457 = vadd.f32 %v455, %v456
        %v458 = vrot.slane %v457, 2
        %v459 = vadd.f32 %v457, %v458
        %v460 = vrot.slane %v459, 1
        %v461 = vadd.f32 %v459, %v460
        %v462 = vmul.f32 %v461, 0.125
        %vm463 = vcmask 0
        %464 = vst.msk [vmem:[%s321] sm:$0x1] %vm463, %v462
        %s465 = sld [smem:[#allocation3 + %s28]]
        %v466 = vld [vmem:[%s309] sm:$0xff]
        %v467 = vld [vmem:[%s309 + $0x8] sm:$0xff]
        %v468 = vld [vmem:[%s309 + $0x10] sm:$0xff]
        %v469 = vld [vmem:[%s309 + $0x18] sm:$0xff]
        %v470 = vld [vmem:[%s309 + $0x20] sm:$0xff]
        %v471 = vld [vmem:[%s309 + $0x28] sm:$0xff]
        %v472 = vld [vmem:[%s309 + $0x30] sm:$0xff]
        %v473 = vld [vmem:[%s309 + $0x38] sm:$0xff]
        %v474 = vld [vmem:[%s309 + $0x40] sm:$0xff]
        %v475 = vld [vmem:[%s309 + $0x48] sm:$0xff]
        %v476 = vld [vmem:[%s309 + $0x50] sm:$0xff]
        %v477 = vld [vmem:[%s309 + $0x58] sm:$0xff]
        %v478 = vld [vmem:[%s309 + $0x60] sm:$0xff]
        %v479 = vld [vmem:[%s309 + $0x68] sm:$0xff]
        %v480 = vld [vmem:[%s309 + $0x70] sm:$0xff]
        %v481 = vld [vmem:[%s309 + $0x78] sm:$0xff]
        %v482 = vld [vmem:[%s309 + $0x80] sm:$0xff]
        %v483 = vld [vmem:[%s309 + $0x88] sm:$0xff]
        %v484 = vld [vmem:[%s309 + $0x90] sm:$0xff]
        %v485 = vld [vmem:[%s309 + $0x98] sm:$0xff]
        %v486 = vld [vmem:[%s309 + $0xa0] sm:$0xff]
        %v487 = vld [vmem:[%s309 + $0xa8] sm:$0xff]
        %v488 = vld [vmem:[%s309 + $0xb0] sm:$0xff]
        %v489 = vld [vmem:[%s309 + $0xb8] sm:$0xff]
        %v490 = vld [vmem:[%s309 + $0xc0] sm:$0xff]
        %v491 = vld [vmem:[%s309 + $0xc8] sm:$0xff]
        %v492 = vld [vmem:[%s309 + $0xd0] sm:$0xff]
        %v493 = vld [vmem:[%s309 + $0xd8] sm:$0xff]
        %v494 = vld [vmem:[%s309 + $0xe0] sm:$0xff]
        %v495 = vld [vmem:[%s309 + $0xe8] sm:$0xff]
        %v496 = vld [vmem:[%s309 + $0xf0] sm:$0xff]
        %v497 = vld [vmem:[%s309 + $0xf8] sm:$0xff]
        %498 = vst [vmem:[%s296] sm:$0xff] %v466
        %499 = vst [vmem:[%s296 + $0x8] sm:$0xff] %v467
        %500 = vst [vmem:[%s296 + $0x10] sm:$0xff] %v468
        %501 = vst [vmem:[%s296 + $0x18] sm:$0xff] %v469
        %502 = vst [vmem:[%s296 + $0x20] sm:$0xff] %v470
        %503 = vst [vmem:[%s296 + $0x28] sm:$0xff] %v471
        %504 = vst [vmem:[%s296 + $0x30] sm:$0xff] %v472
        %505 = vst [vmem:[%s296 + $0x38] sm:$0xff] %v473
        %506 = vst [vmem:[%s296 + $0x40] sm:$0xff] %v474
        %507 = vst [vmem:[%s296 + $0x48] sm:$0xff] %v475
        %508 = vst [vmem:[%s296 + $0x50] sm:$0xff] %v476
        %509 = vst [vmem:[%s296 + $0x58] sm:$0xff] %v477
        %510 = vst [vmem:[%s296 + $0x60] sm:$0xff] %v478
        %511 = vst [vmem:[%s296 + $0x68] sm:$0xff] %v479
        %512 = vst [vmem:[%s296 + $0x70] sm:$0xff] %v480
        %513 = vst [vmem:[%s296 + $0x78] sm:$0xff] %v481
        %514 = vst [vmem:[%s296 + $0x80] sm:$0xff] %v482
        %515 = vst [vmem:[%s296 + $0x88] sm:$0xff] %v483
        %516 = vst [vmem:[%s296 + $0x90] sm:$0xff] %v484
        %517 = vst [vmem:[%s296 + $0x98] sm:$0xff] %v485
        %518 = vst [vmem:[%s296 + $0xa0] sm:$0xff] %v486
        %519 = vst [vmem:[%s296 + $0xa8] sm:$0xff] %v487
        %520 = vst [vmem:[%s296 + $0xb0] sm:$0xff] %v488
        %521 = vst [vmem:[%s296 + $0xb8] sm:$0xff] %v489
        %522 = vst [vmem:[%s296 + $0xc0] sm:$0xff] %v490
        %523 = vst [vmem:[%s296 + $0xc8] sm:$0xff] %v491
        %524 = vst [vmem:[%s296 + $0xd0] sm:$0xff] %v492
        %525 = vst [vmem:[%s296 + $0xd8] sm:$0xff] %v493
        %526 = vst [vmem:[%s296 + $0xe0] sm:$0xff] %v494
        %527 = vst [vmem:[%s296 + $0xe8] sm:$0xff] %v495
        %528 = vst [vmem:[%s296 + $0xf0] sm:$0xff] %v496
        %529 = vst [vmem:[%s296 + $0xf8] sm:$0xff] %v497
        %s530 = scalar_lea.vmem %s296, %s465 [#allocation4]
        %531 = vst [vmem:[%s530] sm:$0xff] %v324
        %p532 = scmp.lt.s32.totalorder %s28, 1
        %s533 = scalar_select %p532, %s28, 1
        %s534 = smul.addr %s533, 8
        %s535 = scalar_lea.vmem %s4, %s534
        %p536 = scmp.lt.s32.totalorder %s28, 1
        %s537 = scalar_select %p536, %s28, 1
        %s538 = smul.addr %s537, 2
        %s539 = smul.addr %s538, 8
        %s540 = scalar_lea.vmem %s5, %s539
        %p541 = scmp.lt.s32.totalorder %s28, 1
        %s542 = scalar_select %p541, %s28, 1
        %s543 = scalar_lea.vmem %s6, %s542
        %s544 = sand.u32 %s192, 1
        %s545 = scalar_lea.sflag [#allocation5], %s544
        %s546 = sand.u32 %s192, 1
        %s547 = smul.addr %s546, 256
        %s548 = scalar_lea.vmem [#allocation4], %s547
        // Predicated region
        $region33: #{multimodal_moco_forward.5} parent=31 // pred_check
          %p549 = pneg %p124
        $region34: #{multimodal_moco_forward.5} parent=31 // pred_check_branch
          %551 = sbr.rel (%p549) target = $region36
        $region35: #{multimodal_moco_forward.5} parent=31 // pred_region
          _
        $region36: #{multimodal_moco_forward.5} parent=31 // pred_fallthru
          _
        // Predicated region
        $region37: #{multimodal_moco_forward.5} parent=31 // pred_check
          %p552 = pneg %p150
        $region38: #{multimodal_moco_forward.5} parent=31 // pred_check_branch
          %554 = sbr.rel (%p552) target = $region40
        $region39: #{multimodal_moco_forward.5} parent=31 // pred_region
          _
        $region40: #{multimodal_moco_forward.5} parent=31 // pred_fallthru
          _
        // Predicated region
        $region41: #{multimodal_moco_forward.5} parent=31 // pred_check
          %p555 = pneg %p176
        $region42: #{multimodal_moco_forward.5} parent=31 // pred_check_branch
          %557 = sbr.rel (%p555) target = $region44
        $region43: #{multimodal_moco_forward.5} parent=31 // pred_region
          _
        $region44: #{multimodal_moco_forward.5} parent=31 // pred_fallthru
          _
        // Predicated region
        $region45: #{multimodal_moco_forward.5} parent=31 // pred_check
          %p558 = pneg %p202
        $region46: #{multimodal_moco_forward.5} parent=31 // pred_check_branch
          %560 = sbr.rel (%p558) target = $region48
        $region47: #{multimodal_moco_forward.5} parent=31 // pred_region
          %s562 = ssub.s32 4096, 4096
          %563 = vsyncadd %s545, %s562
          %s564 = smul.addr %s28, 32
          %s565 = smul.addr %s564, 128
          %s566 = scalar_lea.hbm %s7, %s565
          %s567 = sshll.u32 %s548, 4
          %s568 = int_to_ptr.vmem [resolvable:$true] %s567
          %573 = dma.vmem_to_hbm [thread:$0]  %s568, 4096, %s566, %s545, 128, 128, 8
        $region48: #{multimodal_moco_forward.5} parent=31 // pred_fallthru
          _
      $region32: #{multimodal_moco_forward.5} parent=5 // pred_fallthru
        _
      %p574 = scmp.le.s32.totalorder 2, %s23
      // Predicated region
      $region49: #{multimodal_moco_forward.5} parent=5 // pred_check
        %p575 = pneg %p574
      $region50: #{multimodal_moco_forward.5} parent=5 // pred_check_branch
        %577 = sbr.rel (%p575) target = $region52
      $region51: #{multimodal_moco_forward.5} parent=5 // pred_region
        %s578 = ssub.s32 %s23, 2
        // Predicated region
        $region53: #{multimodal_moco_forward.5} parent=51 // pred_check
          %p579 = pneg %p130
        $region54: #{multimodal_moco_forward.5} parent=51 // pred_check_branch
          %581 = sbr.rel (%p579) target = $region56
        $region55: #{multimodal_moco_forward.5} parent=51 // pred_region
          %p582 = scmp.lt.s32.totalorder %s29, 1
          %s583 = scalar_select %p582, %s29, 1
          %s584 = smul.addr %s583, 8
          %s585 = scalar_lea.vmem %s4, %s584
        $region56: #{multimodal_moco_forward.5} parent=51 // pred_fallthru
          _
        // Predicated region
        $region57: #{multimodal_moco_forward.5} parent=51 // pred_check
          %p586 = pneg %p156
        $region58: #{multimodal_moco_forward.5} parent=51 // pred_check_branch
          %588 = sbr.rel (%p586) target = $region60
        $region59: #{multimodal_moco_forward.5} parent=51 // pred_region
          %p589 = scmp.lt.s32.totalorder %s29, 1
          %s590 = scalar_select %p589, %s29, 1
          %s591 = smul.addr %s590, 2
          %s592 = smul.addr %s591, 8
          %s593 = scalar_lea.vmem %s5, %s592
        $region60: #{multimodal_moco_forward.5} parent=51 // pred_fallthru
          _
        // Predicated region
        $region61: #{multimodal_moco_forward.5} parent=51 // pred_check
          %p594 = pneg %p182
        $region62: #{multimodal_moco_forward.5} parent=51 // pred_check_branch
          %596 = sbr.rel (%p594) target = $region64
        $region63: #{multimodal_moco_forward.5} parent=51 // pred_region
          %p597 = scmp.lt.s32.totalorder %s29, 1
          %s598 = scalar_select %p597, %s29, 1
          %s599 = scalar_lea.vmem %s6, %s598
        $region64: #{multimodal_moco_forward.5} parent=51 // pred_fallthru
          _
        // Predicated region
        $region65: #{multimodal_moco_forward.5} parent=51 // pred_check
          %p600 = pneg %p208
        $region66: #{multimodal_moco_forward.5} parent=51 // pred_check_branch
          %602 = sbr.rel (%p600) target = $region68
        $region67: #{multimodal_moco_forward.5} parent=51 // pred_region
          %s603 = sand.u32 %s193, 1
          %s604 = scalar_lea.sflag [#allocation5], %s603
          %s605 = sand.u32 %s193, 1
          %s606 = smul.addr %s605, 256
          %s607 = scalar_lea.vmem [#allocation4], %s606
          %608 = dma.done %s604, 4096
        $region68: #{multimodal_moco_forward.5} parent=51 // pred_fallthru
          _
      $region52: #{multimodal_moco_forward.5} parent=5 // pred_fallthru
        _
    $region6: #{multimodal_moco_forward.5} parent=1 // loop_footer
      %s27 = sadd.s32 1, %s23
    $region7: #{multimodal_moco_forward.5} parent=1 // loop_footer_branch
      %22 = sbr.rel target = $region3
    $region8: #{multimodal_moco_forward.5} parent=1 // loop_exit
      _
    %609 = vsyncpa [#allocation5], 1
    %s610 = scalar_lea.sflag [#allocation5], 1
    %611 = vsyncpa %s610, 1

// kernel: multimodal_moco_forward.3
$region0: #{multimodal_moco_forward.3}
  #allocation0 [shape = 'u32[]', space=smem, size = 0x4, offset = 0x4, fixed_abs, tag = 'smem constant byte address 0x4 - core index']
  #allocation1 [shape = 'u32[144,128]{1,0:T(1,128)}', space=vmem, size = 0x12000, scoped, tag = 'internal scratch']
  %s0 = inlined_call_operand.vmem [shape: f32[8,128], index: 0, kind: input, shape index: {}]
  %s1 = inlined_call_operand.hbm [shape: f32[128,128], index: 1, kind: input, shape index: {}]
  %s2 = inlined_call_operand.vmem [shape: f32[1,128], index: 2, kind: input, shape index: {}]
  %s3 = inlined_call_operand.hbm [shape: f32[128,128], index: 3, kind: input, shape index: {}]
  %s4 = inlined_call_operand.vmem [shape: f32[1,128], index: 4, kind: input, shape index: {}]
  %s5 = inlined_call_operand.hbm [shape: f32[128,128], index: 5, kind: input, shape index: {}]
  %s6 = inlined_call_operand.vmem [shape: f32[1,128], index: 6, kind: input, shape index: {}]
  %s7 = inlined_call_operand.hbm [shape: f32[128,128], index: 7, kind: input, shape index: {}]
  %s8 = inlined_call_operand.vmem [shape: f32[1,128], index: 8, kind: input, shape index: {}]
  %s9 = inlined_call_operand.hbm [shape: f32[128,128], index: 9, kind: input, shape index: {}]
  %s10 = inlined_call_operand.vmem [shape: f32[1,128], index: 10, kind: input, shape index: {}]
  %s11 = inlined_call_operand.hbm [shape: f32[128,128], index: 11, kind: input, shape index: {}]
  %s12 = inlined_call_operand.vmem [shape: f32[1,128], index: 12, kind: input, shape index: {}]
  %s13 = inlined_call_operand.vmem [shape: f32[8,128], index: 13, kind: output, shape index: {0}]
  %s14 = inlined_call_operand.vmem [shape: f32[8,128], index: 14, kind: output, shape index: {1}]
  %s15 = inlined_call_operand.hbm [shape: f32[128,128], index: 15, kind: output, shape index: {2}]
  %s16 = inlined_call_operand.hbm [shape: f32[1,128], index: 16, kind: output, shape index: {3}]
  %s17 = inlined_call_operand.hbm [shape: f32[128,128], index: 17, kind: output, shape index: {4}]
  %s18 = inlined_call_operand.hbm [shape: f32[1,128], index: 18, kind: output, shape index: {5}]
  %s19 = inlined_call_operand.hbm [shape: f32[128,128], index: 19, kind: output, shape index: {6}]
  %s20 = inlined_call_operand.hbm [shape: f32[1,128], index: 20, kind: output, shape index: {7}]
  %21 = xla_tuple %s13, %s14, %s15, %s16, %s17, %s18, %s19, %s20
  %s22 = sld [smem:[#allocation0]]
  $region142: #{multimodal_moco_forward.3} parent=0
    _
  %s24 = ssub.s32 1, %s22
  %s25 = scalar_select 0, %s24, %s22
  $region1: #{multimodal_moco_forward.3} parent=0
    #allocation2 [shape = 'u8[65536]{0}', space=vmem, size = 0x10000, scoped, tag = 'input window, operand 1, single buffered']
    #allocation3 [shape = 's32[1]{0}', space=sflag, size = 0x4, scoped, tag = 'scoped memory for multimodal_moco_forward.3']
    #allocation4 [shape = 's32[1]{0}', space=sflag, size = 0x4, scoped, tag = 'scoped memory for multimodal_moco_forward.3']
    #allocation5 [shape = 'u8[65536]{0}', space=vmem, size = 0x10000, scoped, tag = 'input window, operand 3, single buffered']
    #allocation6 [shape = 's32[1]{0}', space=sflag, size = 0x4, scoped, tag = 'scoped memory for multimodal_moco_forward.3']
    #allocation7 [shape = 'u8[65536]{0}', space=vmem, size = 0x10000, scoped, tag = 'input window, operand 5, single buffered']
    #allocation8 [shape = 'u8[65536]{0}', space=vmem, size = 0x10000, scoped, tag = 'input window, operand 7, single buffered']
    #allocation9 [shape = 's32[1]{0}', space=sflag, size = 0x4, scoped, tag = 'scoped memory for multimodal_moco_forward.3']
    #allocation10 [shape = 'u8[65536]{0}', space=vmem, size = 0x10000, scoped, tag = 'input window, operand 9, single buffered']
    #allocation11 [shape = 'u8[65536]{0}', space=vmem, size = 0x10000, scoped, tag = 'input window, operand 11, single buffered']
    #allocation12 [shape = 's32[1]{0}', space=sflag, size = 0x4, scoped, tag = 'scoped memory for multimodal_moco_forward.3']
    #allocation13 [shape = 'u8[65536]{0}', space=vmem, size = 0x10000, scoped, tag = 'output window, operand 2, single buffered']
    #allocation14 [shape = 'u8[512]{0}', space=vmem, size = 0x400, scoped, tag = 'output window, operand 3, single buffered']
    #allocation15 [shape = 's32[1]{0}', space=sflag, size = 0x4, scoped, tag = 'scoped memory for multimodal_moco_forward.3']
    #allocation16 [shape = 'u8[65536]{0}', space=vmem, size = 0x10000, scoped, tag = 'output window, operand 4, single buffered']
    #allocation17 [shape = 'u8[512]{0}', space=vmem, size = 0x400, scoped, tag = 'output window, operand 5, single buffered']
    #allocation18 [shape = 's32[1]{0}', space=sflag, size = 0x4, scoped, tag = 'scoped memory for multimodal_moco_forward.3']
    #allocation19 [shape = 'u8[65536]{0}', space=vmem, size = 0x10000, scoped, tag = 'output window, operand 6, single buffered']
    #allocation20 [shape = 'u8[512]{0}', space=vmem, size = 0x400, scoped, tag = 'output window, operand 7, single buffered']
    #allocation21 [shape = 's32[1]{0}', space=sflag, size = 0x4, scoped, tag = 'scoped memory for multimodal_moco_forward.3']
    %26 = vsyncpa [#allocation3], 0
    %27 = vsyncpa [#allocation6], 0
    %28 = vsyncpa [#allocation9], 0
    %29 = vsyncpa [#allocation12], 0
    %30 = vsyncpa [#allocation4], 0
    %31 = vsyncpa [#allocation15], 0
    %32 = vsyncpa [#allocation18], 0
    %33 = vsyncpa [#allocation21], 0
    // Predicated region
    $region2: #{multimodal_moco_forward.3} parent=1 // pred_check
      _
    $region3: #{multimodal_moco_forward.3} parent=1 // pred_check_branch
      %35 = sbr.rel (0) target = $region5
    $region4: #{multimodal_moco_forward.3} parent=1 // pred_region
      _
    $region5: #{multimodal_moco_forward.3} parent=1 // pred_fallthru
      _
    // Predicated region
    $region6: #{multimodal_moco_forward.3} parent=1 // pred_check
      _
    $region7: #{multimodal_moco_forward.3} parent=1 // pred_check_branch
      %37 = sbr.rel (0) target = $region9
    $region8: #{multimodal_moco_forward.3} parent=1 // pred_region
      %s39 = ssub.s32 2048, 2048
      %40 = vsyncadd [#allocation3], %s39
      %s41 = sshll.u32 [#allocation2], 4
      %s42 = int_to_ptr.vmem [resolvable:$true] %s41
      %47 = dma.hbm_to_vmem [thread:$0]  %s1, 2048, %s42, [#allocation3], 128, 128, 8
    $region9: #{multimodal_moco_forward.3} parent=1 // pred_fallthru
      _
    // Predicated region
    $region10: #{multimodal_moco_forward.3} parent=1 // pred_check
      _
    $region11: #{multimodal_moco_forward.3} parent=1 // pred_check_branch
      %49 = sbr.rel (0) target = $region13
    $region12: #{multimodal_moco_forward.3} parent=1 // pred_region
      _
    $region13: #{multimodal_moco_forward.3} parent=1 // pred_fallthru
      _
    // Predicated region
    $region14: #{multimodal_moco_forward.3} parent=1 // pred_check
      _
    $region15: #{multimodal_moco_forward.3} parent=1 // pred_check_branch
      %51 = sbr.rel (0) target = $region17
    $region16: #{multimodal_moco_forward.3} parent=1 // pred_region
      %s53 = ssub.s32 2048, 2048
      %54 = vsyncadd [#allocation6], %s53
      %s55 = sshll.u32 [#allocation5], 4
      %s56 = int_to_ptr.vmem [resolvable:$true] %s55
      %61 = dma.hbm_to_vmem [thread:$0]  %s3, 2048, %s56, [#allocation6], 128, 128, 8
    $region17: #{multimodal_moco_forward.3} parent=1 // pred_fallthru
      _
    // Predicated region
    $region18: #{multimodal_moco_forward.3} parent=1 // pred_check
      _
    $region19: #{multimodal_moco_forward.3} parent=1 // pred_check_branch
      %63 = sbr.rel (0) target = $region21
    $region20: #{multimodal_moco_forward.3} parent=1 // pred_region
      _
    $region21: #{multimodal_moco_forward.3} parent=1 // pred_fallthru
      _
    // Predicated region
    $region22: #{multimodal_moco_forward.3} parent=1 // pred_check
      _
    $region23: #{multimodal_moco_forward.3} parent=1 // pred_check_branch
      %65 = sbr.rel (0) target = $region25
    $region24: #{multimodal_moco_forward.3} parent=1 // pred_region
      %s67 = ssub.s32 2048, 2048
      %68 = vsyncadd [#allocation6], %s67
      %s69 = sshll.u32 [#allocation7], 4
      %s70 = int_to_ptr.vmem [resolvable:$true] %s69
      %75 = dma.hbm_to_vmem [thread:$0]  %s5, 2048, %s70, [#allocation6], 128, 128, 8
    $region25: #{multimodal_moco_forward.3} parent=1 // pred_fallthru
      _
    // Predicated region
    $region26: #{multimodal_moco_forward.3} parent=1 // pred_check
      _
    $region27: #{multimodal_moco_forward.3} parent=1 // pred_check_branch
      %77 = sbr.rel (0) target = $region29
    $region28: #{multimodal_moco_forward.3} parent=1 // pred_region
      _
    $region29: #{multimodal_moco_forward.3} parent=1 // pred_fallthru
      _
    // Predicated region
    $region30: #{multimodal_moco_forward.3} parent=1 // pred_check
      _
    $region31: #{multimodal_moco_forward.3} parent=1 // pred_check_branch
      %79 = sbr.rel (0) target = $region33
    $region32: #{multimodal_moco_forward.3} parent=1 // pred_region
      %s81 = ssub.s32 2048, 2048
      %82 = vsyncadd [#allocation9], %s81
      %s83 = sshll.u32 [#allocation8], 4
      %s84 = int_to_ptr.vmem [resolvable:$true] %s83
      %89 = dma.hbm_to_vmem [thread:$0]  %s7, 2048, %s84, [#allocation9], 128, 128, 8
    $region33: #{multimodal_moco_forward.3} parent=1 // pred_fallthru
      _
    // Predicated region
    $region34: #{multimodal_moco_forward.3} parent=1 // pred_check
      _
    $region35: #{multimodal_moco_forward.3} parent=1 // pred_check_branch
      %91 = sbr.rel (0) target = $region37
    $region36: #{multimodal_moco_forward.3} parent=1 // pred_region
      _
    $region37: #{multimodal_moco_forward.3} parent=1 // pred_fallthru
      _
    // Predicated region
    $region38: #{multimodal_moco_forward.3} parent=1 // pred_check
      _
    $region39: #{multimodal_moco_forward.3} parent=1 // pred_check_branch
      %93 = sbr.rel (0) target = $region41
    $region40: #{multimodal_moco_forward.3} parent=1 // pred_region
      %s95 = ssub.s32 2048, 2048
      %96 = vsyncadd [#allocation9], %s95
      %s97 = sshll.u32 [#allocation10], 4
      %s98 = int_to_ptr.vmem [resolvable:$true] %s97
      %103 = dma.hbm_to_vmem [thread:$0]  %s9, 2048, %s98, [#allocation9], 128, 128, 8
    $region41: #{multimodal_moco_forward.3} parent=1 // pred_fallthru
      _
    // Predicated region
    $region42: #{multimodal_moco_forward.3} parent=1 // pred_check
      _
    $region43: #{multimodal_moco_forward.3} parent=1 // pred_check_branch
      %105 = sbr.rel (0) target = $region45
    $region44: #{multimodal_moco_forward.3} parent=1 // pred_region
      _
    $region45: #{multimodal_moco_forward.3} parent=1 // pred_fallthru
      _
    // Predicated region
    $region46: #{multimodal_moco_forward.3} parent=1 // pred_check
      _
    $region47: #{multimodal_moco_forward.3} parent=1 // pred_check_branch
      %107 = sbr.rel (0) target = $region49
    $region48: #{multimodal_moco_forward.3} parent=1 // pred_region
      %s109 = ssub.s32 2048, 2048
      %110 = vsyncadd [#allocation12], %s109
      %s111 = sshll.u32 [#allocation11], 4
      %s112 = int_to_ptr.vmem [resolvable:$true] %s111
      %117 = dma.hbm_to_vmem [thread:$0]  %s11, 2048, %s112, [#allocation12], 128, 128, 8
    $region49: #{multimodal_moco_forward.3} parent=1 // pred_fallthru
      _
    // Predicated region
    $region50: #{multimodal_moco_forward.3} parent=1 // pred_check
      _
    $region51: #{multimodal_moco_forward.3} parent=1 // pred_check_branch
      %119 = sbr.rel (0) target = $region53
    $region52: #{multimodal_moco_forward.3} parent=1 // pred_region
      _
    $region53: #{multimodal_moco_forward.3} parent=1 // pred_fallthru
      _
    // Predicated region
    $region54: #{multimodal_moco_forward.3} parent=1 // pred_check
      _
    $region55: #{multimodal_moco_forward.3} parent=1 // pred_check_branch
      %121 = sbr.rel (0) target = $region57
    $region56: #{multimodal_moco_forward.3} parent=1 // pred_region
      %122 = dma.done [#allocation3], 2048
    $region57: #{multimodal_moco_forward.3} parent=1 // pred_fallthru
      _
    // Predicated region
    $region58: #{multimodal_moco_forward.3} parent=1 // pred_check
      _
    $region59: #{multimodal_moco_forward.3} parent=1 // pred_check_branch
      %124 = sbr.rel (0) target = $region61
    $region60: #{multimodal_moco_forward.3} parent=1 // pred_region
      %125 = dma.done [#allocation6], 2048
    $region61: #{multimodal_moco_forward.3} parent=1 // pred_fallthru
      _
    // Predicated region
    $region62: #{multimodal_moco_forward.3} parent=1 // pred_check
      _
    $region63: #{multimodal_moco_forward.3} parent=1 // pred_check_branch
      %127 = sbr.rel (0) target = $region65
    $region64: #{multimodal_moco_forward.3} parent=1 // pred_region
      %128 = dma.done [#allocation6], 2048
    $region65: #{multimodal_moco_forward.3} parent=1 // pred_fallthru
      _
    // Predicated region
    $region66: #{multimodal_moco_forward.3} parent=1 // pred_check
      _
    $region67: #{multimodal_moco_forward.3} parent=1 // pred_check_branch
      %130 = sbr.rel (0) target = $region69
    $region68: #{multimodal_moco_forward.3} parent=1 // pred_region
      %131 = dma.done [#allocation9], 2048
    $region69: #{multimodal_moco_forward.3} parent=1 // pred_fallthru
      _
    // Predicated region
    $region70: #{multimodal_moco_forward.3} parent=1 // pred_check
      _
    $region71: #{multimodal_moco_forward.3} parent=1 // pred_check_branch
      %133 = sbr.rel (0) target = $region73
    $region72: #{multimodal_moco_forward.3} parent=1 // pred_region
      %134 = dma.done [#allocation9], 2048
    $region73: #{multimodal_moco_forward.3} parent=1 // pred_fallthru
      _
    // Predicated region
    $region74: #{multimodal_moco_forward.3} parent=1 // pred_check
      _
    $region75: #{multimodal_moco_forward.3} parent=1 // pred_check_branch
      %136 = sbr.rel (0) target = $region77
    $region76: #{multimodal_moco_forward.3} parent=1 // pred_region
      %137 = dma.done [#allocation12], 2048
    $region77: #{multimodal_moco_forward.3} parent=1 // pred_fallthru
      _
    %v138 = vld [vmem:[%s0] sm:$0xff]
    %v139 = vld [vmem:[#allocation2] sm:$0xff]
    %v140 = vld [vmem:[#allocation2 + $0x8] sm:$0xff]
    %v141 = vld [vmem:[#allocation2 + $0x10] sm:$0xff]
    %v142 = vld [vmem:[#allocation2 + $0x18] sm:$0xff]
    %v143 = vld [vmem:[#allocation2 + $0x20] sm:$0xff]
    %v144 = vld [vmem:[#allocation2 + $0x28] sm:$0xff]
    %v145 = vld [vmem:[#allocation2 + $0x30] sm:$0xff]
    %v146 = vld [vmem:[#allocation2 + $0x38] sm:$0xff]
    %v147 = vld [vmem:[#allocation2 + $0x40] sm:$0xff]
    %v148 = vld [vmem:[#allocation2 + $0x48] sm:$0xff]
    %v149 = vld [vmem:[#allocation2 + $0x50] sm:$0xff]
    %v150 = vld [vmem:[#allocation2 + $0x58] sm:$0xff]
    %v151 = vld [vmem:[#allocation2 + $0x60] sm:$0xff]
    %v152 = vld [vmem:[#allocation2 + $0x68] sm:$0xff]
    %v153 = vld [vmem:[#allocation2 + $0x70] sm:$0xff]
    %v154 = vld [vmem:[#allocation2 + $0x78] sm:$0xff]
    %v155 = vld [vmem:[%s2] sm:$0x1]
    %v157 = vlaneseq
    %v158 = vshrl.u32 %v157, 7
    %v159 = vsub.s32 0, %v158
    %v160 = vrot.slane %v155, %v159
    %162 = vmatprep.subr.mxu0 0.0
    %163 = vmatpush1.msra.mxu0 %v139
    %164 = vmatprep.subr.mxu0 0.0
    %165 = vmatpush1.msra.mxu0 %v140
    %166 = vmatprep.subr.mxu0 0.0
    %167 = vmatpush1.msra.mxu0 %v141
    %168 = vmatprep.subr.mxu0 0.0
    %169 = vmatpush1.msra.mxu0 %v142
    %170 = vmatprep.subr.mxu0 0.0
    %171 = vmatpush1.msra.mxu0 %v143
    %172 = vmatprep.subr.mxu0 0.0
    %173 = vmatpush1.msra.mxu0 %v144
    %174 = vmatprep.subr.mxu0 0.0
    %175 = vmatpush1.msra.mxu0 %v145
    %176 = vmatprep.subr.mxu0 0.0
    %177 = vmatpush1.msra.mxu0 %v146
    %178 = vmatprep.subr.mxu0 0.0
    %179 = vmatpush1.msra.mxu0 %v147
    %180 = vmatprep.subr.mxu0 0.0
    %181 = vmatpush1.msra.mxu0 %v148
    %182 = vmatprep.subr.mxu0 0.0
    %183 = vmatpush1.msra.mxu0 %v149
    %184 = vmatprep.subr.mxu0 0.0
    %185 = vmatpush1.msra.mxu0 %v150
    %186 = vmatprep.subr.mxu0 0.0
    %187 = vmatpush1.msra.mxu0 %v151
    %188 = vmatprep.subr.mxu0 0.0
    %189 = vmatpush1.msra.mxu0 %v152
    %190 = vmatprep.subr.mxu0 0.0
    %191 = vmatpush1.msra.mxu0 %v153
    %192 = vmatprep.subr.mxu0 0.0
    %193 = vmatpush1.msra.mxu0 %v154
    %194 = vmatprep.subr.mxu0 0.0
    %195 = vmatpush1.msra.mxu0 0.0
    %196 = vmatprep.subr.mxu0 0.0
    %197 = vmatpush1.msra.mxu0 0.0
    %198 = vmatprep.subr.mxu0 0.0
    %199 = vmatpush1.msra.mxu0 0.0
    %200 = vmatprep.subr.mxu0 0.0
    %201 = vmatpush1.msra.mxu0 0.0
    %202 = vmatprep.subr.mxu0 0.0
    %203 = vmatpush1.msra.mxu0 0.0
    %204 = vmatprep.subr.mxu0 0.0
    %205 = vmatpush1.msra.mxu0 0.0
    %206 = vmatprep.subr.mxu0 0.0
    %207 = vmatpush1.msra.mxu0 0.0
    %208 = vmatprep.subr.mxu0 0.0
    %209 = vmatpush1.msra.mxu0 0.0
    %210 = vmatprep.subr.mxu0 0.0
    %211 = vmatpush1.msra.mxu0 0.0
    %212 = vmatprep.subr.mxu0 0.0
    %213 = vmatpush1.msra.mxu0 0.0
    %214 = vmatprep.subr.mxu0 0.0
    %215 = vmatpush1.msra.mxu0 0.0
    %216 = vmatprep.subr.mxu0 0.0
    %217 = vmatpush1.msra.mxu0 0.0
    %218 = vmatprep.subr.mxu0 0.0
    %219 = vmatpush1.msra.mxu0 0.0
    %220 = vmatprep.subr.mxu0 0.0
    %221 = vmatpush1.msra.mxu0 0.0
    %222 = vmatprep.subr.mxu0 0.0
    %223 = vmatpush1.msra.mxu0 0.0
    %224 = vmatprep.subr.mxu0 0.0
    %225 = vmatpush1.msra.mxu0 0.0
    %226 = vmatprep.mubr.f32.mxu0 0.0
    %227 = vmatmul.mubr.f32.gmra.mrb[0].mxu0 %v138
    %v228 = vpop.f32.mrb[0].mxu0
    %v229 = vadd.f32 %v160, %v228
    %v230 = vpop.f32.mrb[0].mxu0
    %231 = vdwg.mxu0
    %v232 = vld [vmem:[#allocation7] sm:$0xff]
    %v233 = vld [vmem:[#allocation7 + $0x8] sm:$0xff]
    %v234 = vld [vmem:[#allocation7 + $0x10] sm:$0xff]
    %v235 = vld [vmem:[#allocation7 + $0x18] sm:$0xff]
    %v236 = vld [vmem:[#allocation7 + $0x20] sm:$0xff]
    %v237 = vld [vmem:[#allocation7 + $0x28] sm:$0xff]
    %v238 = vld [vmem:[#allocation7 + $0x30] sm:$0xff]
    %v239 = vld [vmem:[#allocation7 + $0x38] sm:$0xff]
    %v240 = vld [vmem:[#allocation7 + $0x40] sm:$0xff]
    %v241 = vld [vmem:[#allocation7 + $0x48] sm:$0xff]
    %v242 = vld [vmem:[#allocation7 + $0x50] sm:$0xff]
    %v243 = vld [vmem:[#allocation7 + $0x58] sm:$0xff]
    %v244 = vld [vmem:[#allocation7 + $0x60] sm:$0xff]
    %v245 = vld [vmem:[#allocation7 + $0x68] sm:$0xff]
    %v246 = vld [vmem:[#allocation7 + $0x70] sm:$0xff]
    %v247 = vld [vmem:[#allocation7 + $0x78] sm:$0xff]
    %v248 = vld [vmem:[%s6] sm:$0x1]
    %v250 = vlaneseq
    %v251 = vshrl.u32 %v250, 7
    %v252 = vsub.s32 0, %v251
    %v253 = vrot.slane %v248, %v252
    %255 = vmatprep.subr.mxu0 0.0
    %256 = vmatpush1.msra.mxu0 %v232
    %257 = vmatprep.subr.mxu0 0.0
    %258 = vmatpush1.msra.mxu0 %v233
    %259 = vmatprep.subr.mxu0 0.0
    %260 = vmatpush1.msra.mxu0 %v234
    %261 = vmatprep.subr.mxu0 0.0
    %262 = vmatpush1.msra.mxu0 %v235
    %263 = vmatprep.subr.mxu0 0.0
    %264 = vmatpush1.msra.mxu0 %v236
    %265 = vmatprep.subr.mxu0 0.0
    %266 = vmatpush1.msra.mxu0 %v237
    %267 = vmatprep.subr.mxu0 0.0
    %268 = vmatpush1.msra.mxu0 %v238
    %269 = vmatprep.subr.mxu0 0.0
    %270 = vmatpush1.msra.mxu0 %v239
    %271 = vmatprep.subr.mxu0 0.0
    %272 = vmatpush1.msra.mxu0 %v240
    %273 = vmatprep.subr.mxu0 0.0
    %274 = vmatpush1.msra.mxu0 %v241
    %275 = vmatprep.subr.mxu0 0.0
    %276 = vmatpush1.msra.mxu0 %v242
    %277 = vmatprep.subr.mxu0 0.0
    %278 = vmatpush1.msra.mxu0 %v243
    %279 = vmatprep.subr.mxu0 0.0
    %280 = vmatpush1.msra.mxu0 %v244
    %281 = vmatprep.subr.mxu0 0.0
    %282 = vmatpush1.msra.mxu0 %v245
    %283 = vmatprep.subr.mxu0 0.0
    %284 = vmatpush1.msra.mxu0 %v246
    %285 = vmatprep.subr.mxu0 0.0
    %286 = vmatpush1.msra.mxu0 %v247
    %287 = vmatprep.subr.mxu0 0.0
    %288 = vmatpush1.msra.mxu0 0.0
    %289 = vmatprep.subr.mxu0 0.0
    %290 = vmatpush1.msra.mxu0 0.0
    %291 = vmatprep.subr.mxu0 0.0
    %292 = vmatpush1.msra.mxu0 0.0
    %293 = vmatprep.subr.mxu0 0.0
    %294 = vmatpush1.msra.mxu0 0.0
    %295 = vmatprep.subr.mxu0 0.0
    %296 = vmatpush1.msra.mxu0 0.0
    %297 = vmatprep.subr.mxu0 0.0
    %298 = vmatpush1.msra.mxu0 0.0
    %299 = vmatprep.subr.mxu0 0.0
    %300 = vmatpush1.msra.mxu0 0.0
    %301 = vmatprep.subr.mxu0 0.0
    %302 = vmatpush1.msra.mxu0 0.0
    %303 = vmatprep.subr.mxu0 0.0
    %304 = vmatpush1.msra.mxu0 0.0
    %305 = vmatprep.subr.mxu0 0.0
    %306 = vmatpush1.msra.mxu0 0.0
    %307 = vmatprep.subr.mxu0 0.0
    %308 = vmatpush1.msra.mxu0 0.0
    %309 = vmatprep.subr.mxu0 0.0
    %310 = vmatpush1.msra.mxu0 0.0
    %311 = vmatprep.subr.mxu0 0.0
    %312 = vmatpush1.msra.mxu0 0.0
    %313 = vmatprep.subr.mxu0 0.0
    %314 = vmatpush1.msra.mxu0 0.0
    %315 = vmatprep.subr.mxu0 0.0
    %316 = vmatpush1.msra.mxu0 0.0
    %317 = vmatprep.subr.mxu0 0.0
    %318 = vmatpush1.msra.mxu0 0.0
    %319 = vmatprep.mubr.f32.mxu0 0.0
    %320 = vmatmul.mubr.f32.gmra.mrb[0].mxu0 %v229
    %v321 = vpop.f32.mrb[0].mxu0
    %v322 = vadd.f32 %v253, %v321
    %v323 = vpop.f32.mrb[0].mxu0
    %324 = vdwg.mxu0
    %v325 = vmax.f32 %v322, 0.0
    %v326 = vld [vmem:[#allocation8] sm:$0xff]
    %v327 = vld [vmem:[#allocation8 + $0x8] sm:$0xff]
    %v328 = vld [vmem:[#allocation8 + $0x10] sm:$0xff]
    %v329 = vld [vmem:[#allocation8 + $0x18] sm:$0xff]
    %v330 = vld [vmem:[#allocation8 + $0x20] sm:$0xff]
    %v331 = vld [vmem:[#allocation8 + $0x28] sm:$0xff]
    %v332 = vld [vmem:[#allocation8 + $0x30] sm:$0xff]
    %v333 = vld [vmem:[#allocation8 + $0x38] sm:$0xff]
    %v334 = vld [vmem:[#allocation8 + $0x40] sm:$0xff]
    %v335 = vld [vmem:[#allocation8 + $0x48] sm:$0xff]
    %v336 = vld [vmem:[#allocation8 + $0x50] sm:$0xff]
    %v337 = vld [vmem:[#allocation8 + $0x58] sm:$0xff]
    %v338 = vld [vmem:[#allocation8 + $0x60] sm:$0xff]
    %v339 = vld [vmem:[#allocation8 + $0x68] sm:$0xff]
    %v340 = vld [vmem:[#allocation8 + $0x70] sm:$0xff]
    %v341 = vld [vmem:[#allocation8 + $0x78] sm:$0xff]
    %v342 = vld [vmem:[%s8] sm:$0x1]
    %v344 = vlaneseq
    %v345 = vshrl.u32 %v344, 7
    %v346 = vsub.s32 0, %v345
    %v347 = vrot.slane %v342, %v346
    %349 = vmatprep.subr.mxu0 0.0
    %350 = vmatpush1.msra.mxu0 %v326
    %351 = vmatprep.subr.mxu0 0.0
    %352 = vmatpush1.msra.mxu0 %v327
    %353 = vmatprep.subr.mxu0 0.0
    %354 = vmatpush1.msra.mxu0 %v328
    %355 = vmatprep.subr.mxu0 0.0
    %356 = vmatpush1.msra.mxu0 %v329
    %357 = vmatprep.subr.mxu0 0.0
    %358 = vmatpush1.msra.mxu0 %v330
    %359 = vmatprep.subr.mxu0 0.0
    %360 = vmatpush1.msra.mxu0 %v331
    %361 = vmatprep.subr.mxu0 0.0
    %362 = vmatpush1.msra.mxu0 %v332
    %363 = vmatprep.subr.mxu0 0.0
    %364 = vmatpush1.msra.mxu0 %v333
    %365 = vmatprep.subr.mxu0 0.0
    %366 = vmatpush1.msra.mxu0 %v334
    %367 = vmatprep.subr.mxu0 0.0
    %368 = vmatpush1.msra.mxu0 %v335
    %369 = vmatprep.subr.mxu0 0.0
    %370 = vmatpush1.msra.mxu0 %v336
    %371 = vmatprep.subr.mxu0 0.0
    %372 = vmatpush1.msra.mxu0 %v337
    %373 = vmatprep.subr.mxu0 0.0
    %374 = vmatpush1.msra.mxu0 %v338
    %375 = vmatprep.subr.mxu0 0.0
    %376 = vmatpush1.msra.mxu0 %v339
    %377 = vmatprep.subr.mxu0 0.0
    %378 = vmatpush1.msra.mxu0 %v340
    %379 = vmatprep.subr.mxu0 0.0
    %380 = vmatpush1.msra.mxu0 %v341
    %381 = vmatprep.subr.mxu0 0.0
    %382 = vmatpush1.msra.mxu0 0.0
    %383 = vmatprep.subr.mxu0 0.0
    %384 = vmatpush1.msra.mxu0 0.0
    %385 = vmatprep.subr.mxu0 0.0
    %386 = vmatpush1.msra.mxu0 0.0
    %387 = vmatprep.subr.mxu0 0.0
    %388 = vmatpush1.msra.mxu0 0.0
    %389 = vmatprep.subr.mxu0 0.0
    %390 = vmatpush1.msra.mxu0 0.0
    %391 = vmatprep.subr.mxu0 0.0
    %392 = vmatpush1.msra.mxu0 0.0
    %393 = vmatprep.subr.mxu0 0.0
    %394 = vmatpush1.msra.mxu0 0.0
    %395 = vmatprep.subr.mxu0 0.0
    %396 = vmatpush1.msra.mxu0 0.0
    %397 = vmatprep.subr.mxu0 0.0
    %398 = vmatpush1.msra.mxu0 0.0
    %399 = vmatprep.subr.mxu0 0.0
    %400 = vmatpush1.msra.mxu0 0.0
    %401 = vmatprep.subr.mxu0 0.0
    %402 = vmatpush1.msra.mxu0 0.0
    %403 = vmatprep.subr.mxu0 0.0
    %404 = vmatpush1.msra.mxu0 0.0
    %405 = vmatprep.subr.mxu0 0.0
    %406 = vmatpush1.msra.mxu0 0.0
    %407 = vmatprep.subr.mxu0 0.0
    %408 = vmatpush1.msra.mxu0 0.0
    %409 = vmatprep.subr.mxu0 0.0
    %410 = vmatpush1.msra.mxu0 0.0
    %411 = vmatprep.subr.mxu0 0.0
    %412 = vmatpush1.msra.mxu0 0.0
    %413 = vmatprep.mubr.f32.mxu0 0.0
    %414 = vmatmul.mubr.f32.gmra.mrb[0].mxu0 %v325
    %v415 = vpop.f32.mrb[0].mxu0
    %v416 = vadd.f32 %v347, %v415
    %v417 = vpop.f32.mrb[0].mxu0
    %418 = vdwg.mxu0
    %v419 = vmul.f32 %v416, %v416
    %420 = vadd.xlane.f32.xlu0 %v419
    %v421 = vpop.xlane.xlu0 %420
    %v422 = vmax.f32 %v421, 1e-24
    %v423 = vrsqrt.pop %v422
    %v424 = vmul.f32 %v416, %v423
    %425 = vst [vmem:[%s13] sm:$0xff] %v424
    %v426 = vld [vmem:[#allocation5] sm:$0xff]
    %v427 = vld [vmem:[#allocation5 + $0x8] sm:$0xff]
    %v428 = vld [vmem:[#allocation5 + $0x10] sm:$0xff]
    %v429 = vld [vmem:[#allocation5 + $0x18] sm:$0xff]
    %v430 = vld [vmem:[#allocation5 + $0x20] sm:$0xff]
    %v431 = vld [vmem:[#allocation5 + $0x28] sm:$0xff]
    %v432 = vld [vmem:[#allocation5 + $0x30] sm:$0xff]
    %v433 = vld [vmem:[#allocation5 + $0x38] sm:$0xff]
    %v434 = vld [vmem:[#allocation5 + $0x40] sm:$0xff]
    %v435 = vld [vmem:[#allocation5 + $0x48] sm:$0xff]
    %v436 = vld [vmem:[#allocation5 + $0x50] sm:$0xff]
    %v437 = vld [vmem:[#allocation5 + $0x58] sm:$0xff]
    %v438 = vld [vmem:[#allocation5 + $0x60] sm:$0xff]
    %v439 = vld [vmem:[#allocation5 + $0x68] sm:$0xff]
    %v440 = vld [vmem:[#allocation5 + $0x70] sm:$0xff]
    %v441 = vld [vmem:[#allocation5 + $0x78] sm:$0xff]
    %v442 = vmul.f32 %v426, 0.999
    %v443 = vmul.f32 %v427, 0.999
    %v444 = vmul.f32 %v428, 0.999
    %v445 = vmul.f32 %v429, 0.999
    %v446 = vmul.f32 %v430, 0.999
    %v447 = vmul.f32 %v431, 0.999
    %v448 = vmul.f32 %v432, 0.999
    %v449 = vmul.f32 %v433, 0.999
    %v450 = vmul.f32 %v434, 0.999
    %v451 = vmul.f32 %v435, 0.999
    %v452 = vmul.f32 %v436, 0.999
    %v453 = vmul.f32 %v437, 0.999
    %v454 = vmul.f32 %v438, 0.999
    %v455 = vmul.f32 %v439, 0.999
    %v456 = vmul.f32 %v440, 0.999
    %v457 = vmul.f32 %v441, 0.999
    %v458 = vld [vmem:[#allocation2] sm:$0xff]
    %v459 = vld [vmem:[#allocation2 + $0x8] sm:$0xff]
    %v460 = vld [vmem:[#allocation2 + $0x10] sm:$0xff]
    %v461 = vld [vmem:[#allocation2 + $0x18] sm:$0xff]
    %v462 = vld [vmem:[#allocation2 + $0x20] sm:$0xff]
    %v463 = vld [vmem:[#allocation2 + $0x28] sm:$0xff]
    %v464 = vld [vmem:[#allocation2 + $0x30] sm:$0xff]
    %v465 = vld [vmem:[#allocation2 + $0x38] sm:$0xff]
    %v466 = vld [vmem:[#allocation2 + $0x40] sm:$0xff]
    %v467 = vld [vmem:[#allocation2 + $0x48] sm:$0xff]
    %v468 = vld [vmem:[#allocation2 + $0x50] sm:$0xff]
    %v469 = vld [vmem:[#allocation2 + $0x58] sm:$0xff]
    %v470 = vld [vmem:[#allocation2 + $0x60] sm:$0xff]
    %v471 = vld [vmem:[#allocation2 + $0x68] sm:$0xff]
    %v472 = vld [vmem:[#allocation2 + $0x70] sm:$0xff]
    %v473 = vld [vmem:[#allocation2 + $0x78] sm:$0xff]
    %v474 = vmul.f32 %v458, 0.001
    %v475 = vmul.f32 %v459, 0.001
    %v476 = vmul.f32 %v460, 0.001
    %v477 = vmul.f32 %v461, 0.001
    %v478 = vmul.f32 %v462, 0.001
    %v479 = vmul.f32 %v463, 0.001
    %v480 = vmul.f32 %v464, 0.001
    %v481 = vmul.f32 %v465, 0.001
    %v482 = vmul.f32 %v466, 0.001
    %v483 = vmul.f32 %v467, 0.001
    %v484 = vmul.f32 %v468, 0.001
    %v485 = vmul.f32 %v469, 0.001
    %v486 = vmul.f32 %v470, 0.001
    %v487 = vmul.f32 %v471, 0.001
    %v488 = vmul.f32 %v472, 0.001
    %v489 = vmul.f32 %v473, 0.001
    %v490 = vadd.f32 %v442, %v474
    %v491 = vadd.f32 %v443, %v475
    %v492 = vadd.f32 %v444, %v476
    %v493 = vadd.f32 %v445, %v477
    %v494 = vadd.f32 %v446, %v478
    %v495 = vadd.f32 %v447, %v479
    %v496 = vadd.f32 %v448, %v480
    %v497 = vadd.f32 %v449, %v481
    %v498 = vadd.f32 %v450, %v482
    %v499 = vadd.f32 %v451, %v483
    %v500 = vadd.f32 %v452, %v484
    %v501 = vadd.f32 %v453, %v485
    %v502 = vadd.f32 %v454, %v486
    %v503 = vadd.f32 %v455, %v487
    %v504 = vadd.f32 %v456, %v488
    %v505 = vadd.f32 %v457, %v489
    %v506 = vld [vmem:[%s4] sm:$0x1]
    %v507 = vmul.f32 %v506, 0.999
    %v508 = vld [vmem:[%s2] sm:$0x1]
    %v509 = vmul.f32 %v508, 0.001
    %v510 = vadd.f32 %v507, %v509
    %v511 = vld [vmem:[#allocation10] sm:$0xff]
    %v512 = vld [vmem:[#allocation10 + $0x8] sm:$0xff]
    %v513 = vld [vmem:[#allocation10 + $0x10] sm:$0xff]
    %v514 = vld [vmem:[#allocation10 + $0x18] sm:$0xff]
    %v515 = vld [vmem:[#allocation10 + $0x20] sm:$0xff]
    %v516 = vld [vmem:[#allocation10 + $0x28] sm:$0xff]
    %v517 = vld [vmem:[#allocation10 + $0x30] sm:$0xff]
    %v518 = vld [vmem:[#allocation10 + $0x38] sm:$0xff]
    %v519 = vld [vmem:[#allocation10 + $0x40] sm:$0xff]
    %v520 = vld [vmem:[#allocation10 + $0x48] sm:$0xff]
    %v521 = vld [vmem:[#allocation10 + $0x50] sm:$0xff]
    %v522 = vld [vmem:[#allocation10 + $0x58] sm:$0xff]
    %v523 = vld [vmem:[#allocation10 + $0x60] sm:$0xff]
    %v524 = vld [vmem:[#allocation10 + $0x68] sm:$0xff]
    %v525 = vld [vmem:[#allocation10 + $0x70] sm:$0xff]
    %v526 = vld [vmem:[#allocation10 + $0x78] sm:$0xff]
    %v527 = vmul.f32 %v511, 0.999
    %v528 = vmul.f32 %v512, 0.999
    %v529 = vmul.f32 %v513, 0.999
    %v530 = vmul.f32 %v514, 0.999
    %v531 = vmul.f32 %v515, 0.999
    %v532 = vmul.f32 %v516, 0.999
    %v533 = vmul.f32 %v517, 0.999
    %v534 = vmul.f32 %v518, 0.999
    %v535 = vmul.f32 %v519, 0.999
    %v536 = vmul.f32 %v520, 0.999
    %v537 = vmul.f32 %v521, 0.999
    %v538 = vmul.f32 %v522, 0.999
    %v539 = vmul.f32 %v523, 0.999
    %v540 = vmul.f32 %v524, 0.999
    %v541 = vmul.f32 %v525, 0.999
    %v542 = vmul.f32 %v526, 0.999
    %v543 = vld [vmem:[#allocation7] sm:$0xff]
    %v544 = vld [vmem:[#allocation7 + $0x8] sm:$0xff]
    %v545 = vld [vmem:[#allocation7 + $0x10] sm:$0xff]
    %v546 = vld [vmem:[#allocation7 + $0x18] sm:$0xff]
    %v547 = vld [vmem:[#allocation7 + $0x20] sm:$0xff]
    %v548 = vld [vmem:[#allocation7 + $0x28] sm:$0xff]
    %v549 = vld [vmem:[#allocation7 + $0x30] sm:$0xff]
    %v550 = vld [vmem:[#allocation7 + $0x38] sm:$0xff]
    %v551 = vld [vmem:[#allocation7 + $0x40] sm:$0xff]
    %v552 = vld [vmem:[#allocation7 + $0x48] sm:$0xff]
    %v553 = vld [vmem:[#allocation7 + $0x50] sm:$0xff]
    %v554 = vld [vmem:[#allocation7 + $0x58] sm:$0xff]
    %v555 = vld [vmem:[#allocation7 + $0x60] sm:$0xff]
    %v556 = vld [vmem:[#allocation7 + $0x68] sm:$0xff]
    %v557 = vld [vmem:[#allocation7 + $0x70] sm:$0xff]
    %v558 = vld [vmem:[#allocation7 + $0x78] sm:$0xff]
    %v559 = vmul.f32 %v543, 0.001
    %v560 = vmul.f32 %v544, 0.001
    %v561 = vmul.f32 %v545, 0.001
    %v562 = vmul.f32 %v546, 0.001
    %v563 = vmul.f32 %v547, 0.001
    %v564 = vmul.f32 %v548, 0.001
    %v565 = vmul.f32 %v549, 0.001
    %v566 = vmul.f32 %v550, 0.001
    %v567 = vmul.f32 %v551, 0.001
    %v568 = vmul.f32 %v552, 0.001
    %v569 = vmul.f32 %v553, 0.001
    %v570 = vmul.f32 %v554, 0.001
    %v571 = vmul.f32 %v555, 0.001
    %v572 = vmul.f32 %v556, 0.001
    %v573 = vmul.f32 %v557, 0.001
    %v574 = vmul.f32 %v558, 0.001
    %v575 = vadd.f32 %v527, %v559
    %v576 = vadd.f32 %v528, %v560
    %v577 = vadd.f32 %v529, %v561
    %v578 = vadd.f32 %v530, %v562
    %v579 = vadd.f32 %v531, %v563
    %v580 = vadd.f32 %v532, %v564
    %v581 = vadd.f32 %v533, %v565
    %v582 = vadd.f32 %v534, %v566
    %v583 = vadd.f32 %v535, %v567
    %v584 = vadd.f32 %v536, %v568
    %v585 = vadd.f32 %v537, %v569
    %v586 = vadd.f32 %v538, %v570
    %v587 = vadd.f32 %v539, %v571
    %v588 = vadd.f32 %v540, %v572
    %v589 = vadd.f32 %v541, %v573
    %v590 = vadd.f32 %v542, %v574
    %v591 = vld [vmem:[%s10] sm:$0x1]
    %v592 = vmul.f32 %v591, 0.999
    %v593 = vld [vmem:[%s6] sm:$0x1]
    %v594 = vmul.f32 %v593, 0.001
    %v595 = vadd.f32 %v592, %v594
    %v596 = vld [vmem:[#allocation11] sm:$0xff]
    %v597 = vld [vmem:[#allocation11 + $0x8] sm:$0xff]
    %v598 = vld [vmem:[#allocation11 + $0x10] sm:$0xff]
    %v599 = vld [vmem:[#allocation11 + $0x18] sm:$0xff]
    %v600 = vld [vmem:[#allocation11 + $0x20] sm:$0xff]
    %v601 = vld [vmem:[#allocation11 + $0x28] sm:$0xff]
    %v602 = vld [vmem:[#allocation11 + $0x30] sm:$0xff]
    %v603 = vld [vmem:[#allocation11 + $0x38] sm:$0xff]
    %v604 = vld [vmem:[#allocation11 + $0x40] sm:$0xff]
    %v605 = vld [vmem:[#allocation11 + $0x48] sm:$0xff]
    %v606 = vld [vmem:[#allocation11 + $0x50] sm:$0xff]
    %v607 = vld [vmem:[#allocation11 + $0x58] sm:$0xff]
    %v608 = vld [vmem:[#allocation11 + $0x60] sm:$0xff]
    %v609 = vld [vmem:[#allocation11 + $0x68] sm:$0xff]
    %v610 = vld [vmem:[#allocation11 + $0x70] sm:$0xff]
    %v611 = vld [vmem:[#allocation11 + $0x78] sm:$0xff]
    %v612 = vmul.f32 %v596, 0.999
    %v613 = vmul.f32 %v597, 0.999
    %v614 = vmul.f32 %v598, 0.999
    %v615 = vmul.f32 %v599, 0.999
    %v616 = vmul.f32 %v600, 0.999
    %v617 = vmul.f32 %v601, 0.999
    %v618 = vmul.f32 %v602, 0.999
    %v619 = vmul.f32 %v603, 0.999
    %v620 = vmul.f32 %v604, 0.999
    %v621 = vmul.f32 %v605, 0.999
    %v622 = vmul.f32 %v606, 0.999
    %v623 = vmul.f32 %v607, 0.999
    %v624 = vmul.f32 %v608, 0.999
    %v625 = vmul.f32 %v609, 0.999
    %v626 = vmul.f32 %v610, 0.999
    %v627 = vmul.f32 %v611, 0.999
    %v628 = vld [vmem:[#allocation8] sm:$0xff]
    %v629 = vld [vmem:[#allocation8 + $0x8] sm:$0xff]
    %v630 = vld [vmem:[#allocation8 + $0x10] sm:$0xff]
    %v631 = vld [vmem:[#allocation8 + $0x18] sm:$0xff]
    %v632 = vld [vmem:[#allocation8 + $0x20] sm:$0xff]
    %v633 = vld [vmem:[#allocation8 + $0x28] sm:$0xff]
    %v634 = vld [vmem:[#allocation8 + $0x30] sm:$0xff]
    %v635 = vld [vmem:[#allocation8 + $0x38] sm:$0xff]
    %v636 = vld [vmem:[#allocation8 + $0x40] sm:$0xff]
    %v637 = vld [vmem:[#allocation8 + $0x48] sm:$0xff]
    %v638 = vld [vmem:[#allocation8 + $0x50] sm:$0xff]
    %v639 = vld [vmem:[#allocation8 + $0x58] sm:$0xff]
    %v640 = vld [vmem:[#allocation8 + $0x60] sm:$0xff]
    %v641 = vld [vmem:[#allocation8 + $0x68] sm:$0xff]
    %v642 = vld [vmem:[#allocation8 + $0x70] sm:$0xff]
    %v643 = vld [vmem:[#allocation8 + $0x78] sm:$0xff]
    %v644 = vmul.f32 %v628, 0.001
    %v645 = vmul.f32 %v629, 0.001
    %v646 = vmul.f32 %v630, 0.001
    %v647 = vmul.f32 %v631, 0.001
    %v648 = vmul.f32 %v632, 0.001
    %v649 = vmul.f32 %v633, 0.001
    %v650 = vmul.f32 %v634, 0.001
    %v651 = vmul.f32 %v635, 0.001
    %v652 = vmul.f32 %v636, 0.001
    %v653 = vmul.f32 %v637, 0.001
    %v654 = vmul.f32 %v638, 0.001
    %v655 = vmul.f32 %v639, 0.001
    %v656 = vmul.f32 %v640, 0.001
    %v657 = vmul.f32 %v641, 0.001
    %v658 = vmul.f32 %v642, 0.001
    %v659 = vmul.f32 %v643, 0.001
    %v660 = vadd.f32 %v612, %v644
    %v661 = vadd.f32 %v613, %v645
    %v662 = vadd.f32 %v614, %v646
    %v663 = vadd.f32 %v615, %v647
    %v664 = vadd.f32 %v616, %v648
    %v665 = vadd.f32 %v617, %v649
    %v666 = vadd.f32 %v618, %v650
    %v667 = vadd.f32 %v619, %v651
    %v668 = vadd.f32 %v620, %v652
    %v669 = vadd.f32 %v621, %v653
    %v670 = vadd.f32 %v622, %v654
    %v671 = vadd.f32 %v623, %v655
    %v672 = vadd.f32 %v624, %v656
    %v673 = vadd.f32 %v625, %v657
    %v674 = vadd.f32 %v626, %v658
    %v675 = vadd.f32 %v627, %v659
    %v676 = vld [vmem:[%s12] sm:$0x1]
    %v677 = vmul.f32 %v676, 0.999
    %v678 = vld [vmem:[%s8] sm:$0x1]
    %v679 = vmul.f32 %v678, 0.001
    %v680 = vadd.f32 %v677, %v679
    %681 = vst [vmem:[#allocation13] sm:$0xff] %v490
    %682 = vst [vmem:[#allocation13 + $0x8] sm:$0xff] %v491
    %683 = vst [vmem:[#allocation13 + $0x10] sm:$0xff] %v492
    %684 = vst [vmem:[#allocation13 + $0x18] sm:$0xff] %v493
    %685 = vst [vmem:[#allocation13 + $0x20] sm:$0xff] %v494
    %686 = vst [vmem:[#allocation13 + $0x28] sm:$0xff] %v495
    %687 = vst [vmem:[#allocation13 + $0x30] sm:$0xff] %v496
    %688 = vst [vmem:[#allocation13 + $0x38] sm:$0xff] %v497
    %689 = vst [vmem:[#allocation13 + $0x40] sm:$0xff] %v498
    %690 = vst [vmem:[#allocation13 + $0x48] sm:$0xff] %v499
    %691 = vst [vmem:[#allocation13 + $0x50] sm:$0xff] %v500
    %692 = vst [vmem:[#allocation13 + $0x58] sm:$0xff] %v501
    %693 = vst [vmem:[#allocation13 + $0x60] sm:$0xff] %v502
    %694 = vst [vmem:[#allocation13 + $0x68] sm:$0xff] %v503
    %695 = vst [vmem:[#allocation13 + $0x70] sm:$0xff] %v504
    %696 = vst [vmem:[#allocation13 + $0x78] sm:$0xff] %v505
    %697 = vst [vmem:[#allocation14] sm:$0x1] %v510
    %698 = vst [vmem:[#allocation16] sm:$0xff] %v575
    %699 = vst [vmem:[#allocation16 + $0x8] sm:$0xff] %v576
    %700 = vst [vmem:[#allocation16 + $0x10] sm:$0xff] %v577
    %701 = vst [vmem:[#allocation16 + $0x18] sm:$0xff] %v578
    %702 = vst [vmem:[#allocation16 + $0x20] sm:$0xff] %v579
    %703 = vst [vmem:[#allocation16 + $0x28] sm:$0xff] %v580
    %704 = vst [vmem:[#allocation16 + $0x30] sm:$0xff] %v581
    %705 = vst [vmem:[#allocation16 + $0x38] sm:$0xff] %v582
    %706 = vst [vmem:[#allocation16 + $0x40] sm:$0xff] %v583
    %707 = vst [vmem:[#allocation16 + $0x48] sm:$0xff] %v584
    %708 = vst [vmem:[#allocation16 + $0x50] sm:$0xff] %v585
    %709 = vst [vmem:[#allocation16 + $0x58] sm:$0xff] %v586
    %710 = vst [vmem:[#allocation16 + $0x60] sm:$0xff] %v587
    %711 = vst [vmem:[#allocation16 + $0x68] sm:$0xff] %v588
    %712 = vst [vmem:[#allocation16 + $0x70] sm:$0xff] %v589
    %713 = vst [vmem:[#allocation16 + $0x78] sm:$0xff] %v590
    %714 = vst [vmem:[#allocation17] sm:$0x1] %v595
    %715 = vst [vmem:[#allocation19] sm:$0xff] %v660
    %716 = vst [vmem:[#allocation19 + $0x8] sm:$0xff] %v661
    %717 = vst [vmem:[#allocation19 + $0x10] sm:$0xff] %v662
    %718 = vst [vmem:[#allocation19 + $0x18] sm:$0xff] %v663
    %719 = vst [vmem:[#allocation19 + $0x20] sm:$0xff] %v664
    %720 = vst [vmem:[#allocation19 + $0x28] sm:$0xff] %v665
    %721 = vst [vmem:[#allocation19 + $0x30] sm:$0xff] %v666
    %722 = vst [vmem:[#allocation19 + $0x38] sm:$0xff] %v667
    %723 = vst [vmem:[#allocation19 + $0x40] sm:$0xff] %v668
    %724 = vst [vmem:[#allocation19 + $0x48] sm:$0xff] %v669
    %725 = vst [vmem:[#allocation19 + $0x50] sm:$0xff] %v670
    %726 = vst [vmem:[#allocation19 + $0x58] sm:$0xff] %v671
    %727 = vst [vmem:[#allocation19 + $0x60] sm:$0xff] %v672
    %728 = vst [vmem:[#allocation19 + $0x68] sm:$0xff] %v673
    %729 = vst [vmem:[#allocation19 + $0x70] sm:$0xff] %v674
    %730 = vst [vmem:[#allocation19 + $0x78] sm:$0xff] %v675
    %731 = vst [vmem:[#allocation20] sm:$0x1] %v680
    %v733 = vlaneseq
    %v734 = vshrl.u32 %v733, 7
    %v735 = vsub.s32 0, %v734
    %v736 = vrot.slane %v510, %v735
    %738 = vmatprep.subr.mxu0 0.0
    %739 = vmatpush1.msra.mxu0 %v490
    %740 = vmatprep.subr.mxu0 0.0
    %741 = vmatpush1.msra.mxu0 %v491
    %742 = vmatprep.subr.mxu0 0.0
    %743 = vmatpush1.msra.mxu0 %v492
    %744 = vmatprep.subr.mxu0 0.0
    %745 = vmatpush1.msra.mxu0 %v493
    %746 = vmatprep.subr.mxu0 0.0
    %747 = vmatpush1.msra.mxu0 %v494
    %748 = vmatprep.subr.mxu0 0.0
    %749 = vmatpush1.msra.mxu0 %v495
    %750 = vmatprep.subr.mxu0 0.0
    %751 = vmatpush1.msra.mxu0 %v496
    %752 = vmatprep.subr.mxu0 0.0
    %753 = vmatpush1.msra.mxu0 %v497
    %754 = vmatprep.subr.mxu0 0.0
    %755 = vmatpush1.msra.mxu0 %v498
    %756 = vmatprep.subr.mxu0 0.0
    %757 = vmatpush1.msra.mxu0 %v499
    %758 = vmatprep.subr.mxu0 0.0
    %759 = vmatpush1.msra.mxu0 %v500
    %760 = vmatprep.subr.mxu0 0.0
    %761 = vmatpush1.msra.mxu0 %v501
    %762 = vmatprep.subr.mxu0 0.0
    %763 = vmatpush1.msra.mxu0 %v502
    %764 = vmatprep.subr.mxu0 0.0
    %765 = vmatpush1.msra.mxu0 %v503
    %766 = vmatprep.subr.mxu0 0.0
    %767 = vmatpush1.msra.mxu0 %v504
    %768 = vmatprep.subr.mxu0 0.0
    %769 = vmatpush1.msra.mxu0 %v505
    %770 = vmatprep.subr.mxu0 0.0
    %771 = vmatpush1.msra.mxu0 0.0
    %772 = vmatprep.subr.mxu0 0.0
    %773 = vmatpush1.msra.mxu0 0.0
    %774 = vmatprep.subr.mxu0 0.0
    %775 = vmatpush1.msra.mxu0 0.0
    %776 = vmatprep.subr.mxu0 0.0
    %777 = vmatpush1.msra.mxu0 0.0
    %778 = vmatprep.subr.mxu0 0.0
    %779 = vmatpush1.msra.mxu0 0.0
    %780 = vmatprep.subr.mxu0 0.0
    %781 = vmatpush1.msra.mxu0 0.0
    %782 = vmatprep.subr.mxu0 0.0
    %783 = vmatpush1.msra.mxu0 0.0
    %784 = vmatprep.subr.mxu0 0.0
    %785 = vmatpush1.msra.mxu0 0.0
    %786 = vmatprep.subr.mxu0 0.0
    %787 = vmatpush1.msra.mxu0 0.0
    %788 = vmatprep.subr.mxu0 0.0
    %789 = vmatpush1.msra.mxu0 0.0
    %790 = vmatprep.subr.mxu0 0.0
    %791 = vmatpush1.msra.mxu0 0.0
    %792 = vmatprep.subr.mxu0 0.0
    %793 = vmatpush1.msra.mxu0 0.0
    %794 = vmatprep.subr.mxu0 0.0
    %795 = vmatpush1.msra.mxu0 0.0
    %796 = vmatprep.subr.mxu0 0.0
    %797 = vmatpush1.msra.mxu0 0.0
    %798 = vmatprep.subr.mxu0 0.0
    %799 = vmatpush1.msra.mxu0 0.0
    %800 = vmatprep.subr.mxu0 0.0
    %801 = vmatpush1.msra.mxu0 0.0
    %802 = vmatprep.mubr.f32.mxu0 0.0
    %803 = vmatmul.mubr.f32.gmra.mrb[0].mxu0 %v229
    %v804 = vpop.f32.mrb[0].mxu0
    %v805 = vadd.f32 %v736, %v804
    %v806 = vpop.f32.mrb[0].mxu0
    %807 = vdwg.mxu0
    %v809 = vlaneseq
    %v810 = vshrl.u32 %v809, 7
    %v811 = vsub.s32 0, %v810
    %v812 = vrot.slane %v595, %v811
    %814 = vmatprep.subr.mxu0 0.0
    %815 = vmatpush1.msra.mxu0 %v575
    %816 = vmatprep.subr.mxu0 0.0
    %817 = vmatpush1.msra.mxu0 %v576
    %818 = vmatprep.subr.mxu0 0.0
    %819 = vmatpush1.msra.mxu0 %v577
    %820 = vmatprep.subr.mxu0 0.0
    %821 = vmatpush1.msra.mxu0 %v578
    %822 = vmatprep.subr.mxu0 0.0
    %823 = vmatpush1.msra.mxu0 %v579
    %824 = vmatprep.subr.mxu0 0.0
    %825 = vmatpush1.msra.mxu0 %v580
    %826 = vmatprep.subr.mxu0 0.0
    %827 = vmatpush1.msra.mxu0 %v581
    %828 = vmatprep.subr.mxu0 0.0
    %829 = vmatpush1.msra.mxu0 %v582
    %830 = vmatprep.subr.mxu0 0.0
    %831 = vmatpush1.msra.mxu0 %v583
    %832 = vmatprep.subr.mxu0 0.0
    %833 = vmatpush1.msra.mxu0 %v584
    %834 = vmatprep.subr.mxu0 0.0
    %835 = vmatpush1.msra.mxu0 %v585
    %836 = vmatprep.subr.mxu0 0.0
    %837 = vmatpush1.msra.mxu0 %v586
    %838 = vmatprep.subr.mxu0 0.0
    %839 = vmatpush1.msra.mxu0 %v587
    %840 = vmatprep.subr.mxu0 0.0
    %841 = vmatpush1.msra.mxu0 %v588
    %842 = vmatprep.subr.mxu0 0.0
    %843 = vmatpush1.msra.mxu0 %v589
    %844 = vmatprep.subr.mxu0 0.0
    %845 = vmatpush1.msra.mxu0 %v590
    %846 = vmatprep.subr.mxu0 0.0
    %847 = vmatpush1.msra.mxu0 0.0
    %848 = vmatprep.subr.mxu0 0.0
    %849 = vmatpush1.msra.mxu0 0.0
    %850 = vmatprep.subr.mxu0 0.0
    %851 = vmatpush1.msra.mxu0 0.0
    %852 = vmatprep.subr.mxu0 0.0
    %853 = vmatpush1.msra.mxu0 0.0
    %854 = vmatprep.subr.mxu0 0.0
    %855 = vmatpush1.msra.mxu0 0.0
    %856 = vmatprep.subr.mxu0 0.0
    %857 = vmatpush1.msra.mxu0 0.0
    %858 = vmatprep.subr.mxu0 0.0
    %859 = vmatpush1.msra.mxu0 0.0
    %860 = vmatprep.subr.mxu0 0.0
    %861 = vmatpush1.msra.mxu0 0.0
    %862 = vmatprep.subr.mxu0 0.0
    %863 = vmatpush1.msra.mxu0 0.0
    %864 = vmatprep.subr.mxu0 0.0
    %865 = vmatpush1.msra.mxu0 0.0
    %866 = vmatprep.subr.mxu0 0.0
    %867 = vmatpush1.msra.mxu0 0.0
    %868 = vmatprep.subr.mxu0 0.0
    %869 = vmatpush1.msra.mxu0 0.0
    %870 = vmatprep.subr.mxu0 0.0
    %871 = vmatpush1.msra.mxu0 0.0
    %872 = vmatprep.subr.mxu0 0.0
    %873 = vmatpush1.msra.mxu0 0.0
    %874 = vmatprep.subr.mxu0 0.0
    %875 = vmatpush1.msra.mxu0 0.0
    %876 = vmatprep.subr.mxu0 0.0
    %877 = vmatpush1.msra.mxu0 0.0
    %878 = vmatprep.mubr.f32.mxu0 0.0
    %879 = vmatmul.mubr.f32.gmra.mrb[0].mxu0 %v805
    %v880 = vpop.f32.mrb[0].mxu0
    %v881 = vadd.f32 %v812, %v880
    %v882 = vpop.f32.mrb[0].mxu0
    %883 = vdwg.mxu0
    %v884 = vmax.f32 %v881, 0.0
    %v886 = vlaneseq
    %v887 = vshrl.u32 %v886, 7
    %v888 = vsub.s32 0, %v887
    %v889 = vrot.slane %v680, %v888
    %891 = vmatprep.subr.mxu0 0.0
    %892 = vmatpush1.msra.mxu0 %v660
    %893 = vmatprep.subr.mxu0 0.0
    %894 = vmatpush1.msra.mxu0 %v661
    %895 = vmatprep.subr.mxu0 0.0
    %896 = vmatpush1.msra.mxu0 %v662
    %897 = vmatprep.subr.mxu0 0.0
    %898 = vmatpush1.msra.mxu0 %v663
    %899 = vmatprep.subr.mxu0 0.0
    %900 = vmatpush1.msra.mxu0 %v664
    %901 = vmatprep.subr.mxu0 0.0
    %902 = vmatpush1.msra.mxu0 %v665
    %903 = vmatprep.subr.mxu0 0.0
    %904 = vmatpush1.msra.mxu0 %v666
    %905 = vmatprep.subr.mxu0 0.0
    %906 = vmatpush1.msra.mxu0 %v667
    %907 = vmatprep.subr.mxu0 0.0
    %908 = vmatpush1.msra.mxu0 %v668
    %909 = vmatprep.subr.mxu0 0.0
    %910 = vmatpush1.msra.mxu0 %v669
    %911 = vmatprep.subr.mxu0 0.0
    %912 = vmatpush1.msra.mxu0 %v670
    %913 = vmatprep.subr.mxu0 0.0
    %914 = vmatpush1.msra.mxu0 %v671
    %915 = vmatprep.subr.mxu0 0.0
    %916 = vmatpush1.msra.mxu0 %v672
    %917 = vmatprep.subr.mxu0 0.0
    %918 = vmatpush1.msra.mxu0 %v673
    %919 = vmatprep.subr.mxu0 0.0
    %920 = vmatpush1.msra.mxu0 %v674
    %921 = vmatprep.subr.mxu0 0.0
    %922 = vmatpush1.msra.mxu0 %v675
    %923 = vmatprep.subr.mxu0 0.0
    %924 = vmatpush1.msra.mxu0 0.0
    %925 = vmatprep.subr.mxu0 0.0
    %926 = vmatpush1.msra.mxu0 0.0
    %927 = vmatprep.subr.mxu0 0.0
    %928 = vmatpush1.msra.mxu0 0.0
    %929 = vmatprep.subr.mxu0 0.0
    %930 = vmatpush1.msra.mxu0 0.0
    %931 = vmatprep.subr.mxu0 0.0
    %932 = vmatpush1.msra.mxu0 0.0
    %933 = vmatprep.subr.mxu0 0.0
    %934 = vmatpush1.msra.mxu0 0.0
    %935 = vmatprep.subr.mxu0 0.0
    %936 = vmatpush1.msra.mxu0 0.0
    %937 = vmatprep.subr.mxu0 0.0
    %938 = vmatpush1.msra.mxu0 0.0
    %939 = vmatprep.subr.mxu0 0.0
    %940 = vmatpush1.msra.mxu0 0.0
    %941 = vmatprep.subr.mxu0 0.0
    %942 = vmatpush1.msra.mxu0 0.0
    %943 = vmatprep.subr.mxu0 0.0
    %944 = vmatpush1.msra.mxu0 0.0
    %945 = vmatprep.subr.mxu0 0.0
    %946 = vmatpush1.msra.mxu0 0.0
    %947 = vmatprep.subr.mxu0 0.0
    %948 = vmatpush1.msra.mxu0 0.0
    %949 = vmatprep.subr.mxu0 0.0
    %950 = vmatpush1.msra.mxu0 0.0
    %951 = vmatprep.subr.mxu0 0.0
    %952 = vmatpush1.msra.mxu0 0.0
    %953 = vmatprep.subr.mxu0 0.0
    %954 = vmatpush1.msra.mxu0 0.0
    %955 = vmatprep.mubr.f32.mxu0 0.0
    %956 = vmatmul.mubr.f32.gmra.mrb[0].mxu0 %v884
    %v957 = vpop.f32.mrb[0].mxu0
    %v958 = vadd.f32 %v889, %v957
    %v959 = vpop.f32.mrb[0].mxu0
    %960 = vdwg.mxu0
    %v961 = vmul.f32 %v958, %v958
    %962 = vadd.xlane.f32.xlu0 %v961
    %v963 = vpop.xlane.xlu0 %962
    %v964 = vmax.f32 %v963, 1e-24
    %v965 = vrsqrt.pop %v964
    %v966 = vmul.f32 %v958, %v965
    %967 = vst [vmem:[%s14] sm:$0xff] %v966
    // Predicated region
    $region78: #{multimodal_moco_forward.3} parent=1 // pred_check
      _
    $region79: #{multimodal_moco_forward.3} parent=1 // pred_check_branch
      %969 = sbr.rel (0) target = $region81
    $region80: #{multimodal_moco_forward.3} parent=1 // pred_region
      _
    $region81: #{multimodal_moco_forward.3} parent=1 // pred_fallthru
      _
    // Predicated region
    $region82: #{multimodal_moco_forward.3} parent=1 // pred_check
      _
    $region83: #{multimodal_moco_forward.3} parent=1 // pred_check_branch
      %971 = sbr.rel (0) target = $region85
    $region84: #{multimodal_moco_forward.3} parent=1 // pred_region
      _
    $region85: #{multimodal_moco_forward.3} parent=1 // pred_fallthru
      _
    // Predicated region
    $region86: #{multimodal_moco_forward.3} parent=1 // pred_check
      _
    $region87: #{multimodal_moco_forward.3} parent=1 // pred_check_branch
      %973 = sbr.rel (0) target = $region89
    $region88: #{multimodal_moco_forward.3} parent=1 // pred_region
      %s975 = ssub.s32 2048, 2048
      %976 = vsyncadd [#allocation4], %s975
      %s977 = sshll.u32 [#allocation13], 4
      %s978 = int_to_ptr.vmem [resolvable:$true] %s977
      %983 = dma.vmem_to_hbm [thread:$0]  %s978, 2048, %s15, [#allocation4], 128, 128, 8
    $region89: #{multimodal_moco_forward.3} parent=1 // pred_fallthru
      _
    // Predicated region
    $region90: #{multimodal_moco_forward.3} parent=1 // pred_check
      _
    $region91: #{multimodal_moco_forward.3} parent=1 // pred_check_branch
      %985 = sbr.rel (0) target = $region93
    $region92: #{multimodal_moco_forward.3} parent=1 // pred_region
      %s987 = ssub.s32 16, 16
      %988 = vsyncadd [#allocation15], %s987
      %s990 = sshll.u32 [#allocation14], 4
      %s991 = int_to_ptr.vmem [resolvable:$true] %s990
      %993 = dma.vmem_to_hbm [thread:$0]  %s991, 16, %s16, [#allocation15]
    $region93: #{multimodal_moco_forward.3} parent=1 // pred_fallthru
      _
    // Predicated region
    $region94: #{multimodal_moco_forward.3} parent=1 // pred_check
      _
    $region95: #{multimodal_moco_forward.3} parent=1 // pred_check_branch
      %995 = sbr.rel (0) target = $region97
    $region96: #{multimodal_moco_forward.3} parent=1 // pred_region
      %s997 = ssub.s32 2048, 2048
      %998 = vsyncadd [#allocation15], %s997
      %s999 = sshll.u32 [#allocation16], 4
      %s1000 = int_to_ptr.vmem [resolvable:$true] %s999
      %1005 = dma.vmem_to_hbm [thread:$0]  %s1000, 2048, %s17, [#allocation15], 128, 128, 8
    $region97: #{multimodal_moco_forward.3} parent=1 // pred_fallthru
      _
    // Predicated region
    $region98: #{multimodal_moco_forward.3} parent=1 // pred_check
      _
    $region99: #{multimodal_moco_forward.3} parent=1 // pred_check_branch
      %1007 = sbr.rel (0) target = $region101
    $region100: #{multimodal_moco_forward.3} parent=1 // pred_region
      %s1009 = ssub.s32 16, 16
      %1010 = vsyncadd [#allocation18], %s1009
      %s1012 = sshll.u32 [#allocation17], 4
      %s1013 = int_to_ptr.vmem [resolvable:$true] %s1012
      %1015 = dma.vmem_to_hbm [thread:$0]  %s1013, 16, %s18, [#allocation18]
    $region101: #{multimodal_moco_forward.3} parent=1 // pred_fallthru
      _
    // Predicated region
    $region102: #{multimodal_moco_forward.3} parent=1 // pred_check
      _
    $region103: #{multimodal_moco_forward.3} parent=1 // pred_check_branch
      %1017 = sbr.rel (0) target = $region105
    $region104: #{multimodal_moco_forward.3} parent=1 // pred_region
      %s1019 = ssub.s32 2048, 2048
      %1020 = vsyncadd [#allocation18], %s1019
      %s1021 = sshll.u32 [#allocation19], 4
      %s1022 = int_to_ptr.vmem [resolvable:$true] %s1021
      %1027 = dma.vmem_to_hbm [thread:$0]  %s1022, 2048, %s19, [#allocation18], 128, 128, 8
    $region105: #{multimodal_moco_forward.3} parent=1 // pred_fallthru
      _
    // Predicated region
    $region106: #{multimodal_moco_forward.3} parent=1 // pred_check
      _
    $region107: #{multimodal_moco_forward.3} parent=1 // pred_check_branch
      %1029 = sbr.rel (0) target = $region109
    $region108: #{multimodal_moco_forward.3} parent=1 // pred_region
      %s1031 = ssub.s32 16, 16
      %1032 = vsyncadd [#allocation21], %s1031
      %s1034 = sshll.u32 [#allocation20], 4
      %s1035 = int_to_ptr.vmem [resolvable:$true] %s1034
      %1037 = dma.vmem_to_hbm [thread:$0]  %s1035, 16, %s20, [#allocation21]
    $region109: #{multimodal_moco_forward.3} parent=1 // pred_fallthru
      _
    // Predicated region
    $region110: #{multimodal_moco_forward.3} parent=1 // pred_check
      _
    $region111: #{multimodal_moco_forward.3} parent=1 // pred_check_branch
      %1039 = sbr.rel (0) target = $region113
    $region112: #{multimodal_moco_forward.3} parent=1 // pred_region
      _
    $region113: #{multimodal_moco_forward.3} parent=1 // pred_fallthru
      _
    // Predicated region
    $region114: #{multimodal_moco_forward.3} parent=1 // pred_check
      _
    $region115: #{multimodal_moco_forward.3} parent=1 // pred_check_branch
      %1041 = sbr.rel (0) target = $region117
    $region116: #{multimodal_moco_forward.3} parent=1 // pred_region
      _
    $region117: #{multimodal_moco_forward.3} parent=1 // pred_fallthru
      _
    // Predicated region
    $region118: #{multimodal_moco_forward.3} parent=1 // pred_check
      _
    $region119: #{multimodal_moco_forward.3} parent=1 // pred_check_branch
      %1043 = sbr.rel (0) target = $region121
    $region120: #{multimodal_moco_forward.3} parent=1 // pred_region
      %1044 = dma.done [#allocation4], 2048
    $region121: #{multimodal_moco_forward.3} parent=1 // pred_fallthru
      _
    // Predicated region
    $region122: #{multimodal_moco_forward.3} parent=1 // pred_check
      _
    $region123: #{multimodal_moco_forward.3} parent=1 // pred_check_branch
      %1046 = sbr.rel (0) target = $region125
    $region124: #{multimodal_moco_forward.3} parent=1 // pred_region
      %1047 = dma.done [#allocation15], 16
    $region125: #{multimodal_moco_forward.3} parent=1 // pred_fallthru
      _
    // Predicated region
    $region126: #{multimodal_moco_forward.3} parent=1 // pred_check
      _
    $region127: #{multimodal_moco_forward.3} parent=1 // pred_check_branch
      %1049 = sbr.rel (0) target = $region129
    $region128: #{multimodal_moco_forward.3} parent=1 // pred_region
      %1050 = dma.done [#allocation15], 2048
    $region129: #{multimodal_moco_forward.3} parent=1 // pred_fallthru
      _
    // Predicated region
    $region130: #{multimodal_moco_forward.3} parent=1 // pred_check
      _
    $region131: #{multimodal_moco_forward.3} parent=1 // pred_check_branch
      %1052 = sbr.rel (0) target = $region133
    $region132: #{multimodal_moco_forward.3} parent=1 // pred_region
      %1053 = dma.done [#allocation18], 16
    $region133: #{multimodal_moco_forward.3} parent=1 // pred_fallthru
      _
    // Predicated region
    $region134: #{multimodal_moco_forward.3} parent=1 // pred_check
      _
    $region135: #{multimodal_moco_forward.3} parent=1 // pred_check_branch
      %1055 = sbr.rel (0) target = $region137
    $region136: #{multimodal_moco_forward.3} parent=1 // pred_region
      %1056 = dma.done [#allocation18], 2048
    $region137: #{multimodal_moco_forward.3} parent=1 // pred_fallthru
      _
    // Predicated region
    $region138: #{multimodal_moco_forward.3} parent=1 // pred_check
      _
    $region139: #{multimodal_moco_forward.3} parent=1 // pred_check_branch
      %1058 = sbr.rel (0) target = $region141
    $region140: #{multimodal_moco_forward.3} parent=1 // pred_region
      %1059 = dma.done [#allocation21], 16
    $region141: #{multimodal_moco_forward.3} parent=1 // pred_fallthru
      _
    %1060 = vsyncpa [#allocation3], 1
    %1061 = vsyncpa [#allocation6], 1
    %1062 = vsyncpa [#allocation9], 1
    %1063 = vsyncpa [#allocation12], 1
    %1064 = vsyncpa [#allocation4], 1
    %1065 = vsyncpa [#allocation15], 1
    %1066 = vsyncpa [#allocation18], 1
    %1067 = vsyncpa [#allocation21], 1

// kernel: multimodal_moco_forward.4
$region0: #{multimodal_moco_forward.4}
  #allocation0 [shape = 'u32[]', space=smem, size = 0x4, offset = 0x4, fixed_abs, tag = 'smem constant byte address 0x4 - core index']
  #allocation1 [shape = 'u32[144,128]{1,0:T(1,128)}', space=vmem, size = 0x12000, scoped, tag = 'internal scratch']
  %s0 = inlined_call_operand.vmem [shape: f32[8,128], index: 0, kind: input, shape index: {}]
  %s1 = inlined_call_operand.vmem [shape: f32[128,128], index: 1, kind: input, shape index: {}]
  %s2 = inlined_call_operand.vmem [shape: f32[1,128], index: 2, kind: input, shape index: {}]
  %s3 = inlined_call_operand.vmem [shape: f32[128,128], index: 3, kind: input, shape index: {}]
  %s4 = inlined_call_operand.vmem [shape: f32[1,128], index: 4, kind: input, shape index: {}]
  %s5 = inlined_call_operand.vmem [shape: f32[128,128], index: 5, kind: input, shape index: {}]
  %s6 = inlined_call_operand.vmem [shape: f32[1,128], index: 6, kind: input, shape index: {}]
  %s7 = inlined_call_operand.vmem [shape: f32[128,128], index: 7, kind: input, shape index: {}]
  %s8 = inlined_call_operand.vmem [shape: f32[1,128], index: 8, kind: input, shape index: {}]
  %s9 = inlined_call_operand.vmem [shape: f32[128,128], index: 9, kind: input, shape index: {}]
  %s10 = inlined_call_operand.vmem [shape: f32[1,128], index: 10, kind: input, shape index: {}]
  %s11 = inlined_call_operand.vmem [shape: f32[128,128], index: 11, kind: input, shape index: {}]
  %s12 = inlined_call_operand.vmem [shape: f32[1,128], index: 12, kind: input, shape index: {}]
  %s13 = inlined_call_operand.vmem [shape: f32[8,128], index: 13, kind: output, shape index: {0}]
  %s14 = inlined_call_operand.vmem [shape: f32[8,128], index: 14, kind: output, shape index: {1}]
  %s15 = inlined_call_operand.hbm [shape: f32[128,128], index: 15, kind: output, shape index: {2}]
  %s16 = inlined_call_operand.hbm [shape: f32[1,128], index: 16, kind: output, shape index: {3}]
  %s17 = inlined_call_operand.hbm [shape: f32[128,128], index: 17, kind: output, shape index: {4}]
  %s18 = inlined_call_operand.hbm [shape: f32[1,128], index: 18, kind: output, shape index: {5}]
  %s19 = inlined_call_operand.hbm [shape: f32[128,128], index: 19, kind: output, shape index: {6}]
  %s20 = inlined_call_operand.hbm [shape: f32[1,128], index: 20, kind: output, shape index: {7}]
  %21 = xla_tuple %s13, %s14, %s15, %s16, %s17, %s18, %s19, %s20
  %s22 = sld [smem:[#allocation0]]
  $region118: #{multimodal_moco_forward.4} parent=0
    _
  %s24 = ssub.s32 1, %s22
  %s25 = scalar_select 0, %s24, %s22
  $region1: #{multimodal_moco_forward.4} parent=0
    #allocation2 [shape = 'u8[65536]{0}', space=vmem, size = 0x10000, scoped, tag = 'output window, operand 2, single buffered']
    #allocation3 [shape = 's32[1]{0}', space=sflag, size = 0x4, scoped, tag = 'scoped memory for multimodal_moco_forward.4']
    #allocation4 [shape = 'u8[512]{0}', space=vmem, size = 0x400, scoped, tag = 'output window, operand 3, single buffered']
    #allocation5 [shape = 's32[1]{0}', space=sflag, size = 0x4, scoped, tag = 'scoped memory for multimodal_moco_forward.4']
    #allocation6 [shape = 'u8[65536]{0}', space=vmem, size = 0x10000, scoped, tag = 'output window, operand 4, single buffered']
    #allocation7 [shape = 'u8[512]{0}', space=vmem, size = 0x400, scoped, tag = 'output window, operand 5, single buffered']
    #allocation8 [shape = 's32[1]{0}', space=sflag, size = 0x4, scoped, tag = 'scoped memory for multimodal_moco_forward.4']
    #allocation9 [shape = 'u8[65536]{0}', space=vmem, size = 0x10000, scoped, tag = 'output window, operand 6, single buffered']
    #allocation10 [shape = 'u8[512]{0}', space=vmem, size = 0x400, scoped, tag = 'output window, operand 7, single buffered']
    #allocation11 [shape = 's32[1]{0}', space=sflag, size = 0x4, scoped, tag = 'scoped memory for multimodal_moco_forward.4']
    %26 = vsyncpa [#allocation3], 0
    %27 = vsyncpa [#allocation5], 0
    %28 = vsyncpa [#allocation8], 0
    %29 = vsyncpa [#allocation11], 0
    // Predicated region
    $region2: #{multimodal_moco_forward.4} parent=1 // pred_check
      _
    $region3: #{multimodal_moco_forward.4} parent=1 // pred_check_branch
      %31 = sbr.rel (0) target = $region5
    $region4: #{multimodal_moco_forward.4} parent=1 // pred_region
      _
    $region5: #{multimodal_moco_forward.4} parent=1 // pred_fallthru
      _
    // Predicated region
    $region6: #{multimodal_moco_forward.4} parent=1 // pred_check
      _
    $region7: #{multimodal_moco_forward.4} parent=1 // pred_check_branch
      %33 = sbr.rel (0) target = $region9
    $region8: #{multimodal_moco_forward.4} parent=1 // pred_region
      _
    $region9: #{multimodal_moco_forward.4} parent=1 // pred_fallthru
      _
    // Predicated region
    $region10: #{multimodal_moco_forward.4} parent=1 // pred_check
      _
    $region11: #{multimodal_moco_forward.4} parent=1 // pred_check_branch
      %35 = sbr.rel (0) target = $region13
    $region12: #{multimodal_moco_forward.4} parent=1 // pred_region
      _
    $region13: #{multimodal_moco_forward.4} parent=1 // pred_fallthru
      _
    // Predicated region
    $region14: #{multimodal_moco_forward.4} parent=1 // pred_check
      _
    $region15: #{multimodal_moco_forward.4} parent=1 // pred_check_branch
      %37 = sbr.rel (0) target = $region17
    $region16: #{multimodal_moco_forward.4} parent=1 // pred_region
      _
    $region17: #{multimodal_moco_forward.4} parent=1 // pred_fallthru
      _
    // Predicated region
    $region18: #{multimodal_moco_forward.4} parent=1 // pred_check
      _
    $region19: #{multimodal_moco_forward.4} parent=1 // pred_check_branch
      %39 = sbr.rel (0) target = $region21
    $region20: #{multimodal_moco_forward.4} parent=1 // pred_region
      _
    $region21: #{multimodal_moco_forward.4} parent=1 // pred_fallthru
      _
    // Predicated region
    $region22: #{multimodal_moco_forward.4} parent=1 // pred_check
      _
    $region23: #{multimodal_moco_forward.4} parent=1 // pred_check_branch
      %41 = sbr.rel (0) target = $region25
    $region24: #{multimodal_moco_forward.4} parent=1 // pred_region
      _
    $region25: #{multimodal_moco_forward.4} parent=1 // pred_fallthru
      _
    // Predicated region
    $region26: #{multimodal_moco_forward.4} parent=1 // pred_check
      _
    $region27: #{multimodal_moco_forward.4} parent=1 // pred_check_branch
      %43 = sbr.rel (0) target = $region29
    $region28: #{multimodal_moco_forward.4} parent=1 // pred_region
      _
    $region29: #{multimodal_moco_forward.4} parent=1 // pred_fallthru
      _
    // Predicated region
    $region30: #{multimodal_moco_forward.4} parent=1 // pred_check
      _
    $region31: #{multimodal_moco_forward.4} parent=1 // pred_check_branch
      %45 = sbr.rel (0) target = $region33
    $region32: #{multimodal_moco_forward.4} parent=1 // pred_region
      _
    $region33: #{multimodal_moco_forward.4} parent=1 // pred_fallthru
      _
    // Predicated region
    $region34: #{multimodal_moco_forward.4} parent=1 // pred_check
      _
    $region35: #{multimodal_moco_forward.4} parent=1 // pred_check_branch
      %47 = sbr.rel (0) target = $region37
    $region36: #{multimodal_moco_forward.4} parent=1 // pred_region
      _
    $region37: #{multimodal_moco_forward.4} parent=1 // pred_fallthru
      _
    // Predicated region
    $region38: #{multimodal_moco_forward.4} parent=1 // pred_check
      _
    $region39: #{multimodal_moco_forward.4} parent=1 // pred_check_branch
      %49 = sbr.rel (0) target = $region41
    $region40: #{multimodal_moco_forward.4} parent=1 // pred_region
      _
    $region41: #{multimodal_moco_forward.4} parent=1 // pred_fallthru
      _
    // Predicated region
    $region42: #{multimodal_moco_forward.4} parent=1 // pred_check
      _
    $region43: #{multimodal_moco_forward.4} parent=1 // pred_check_branch
      %51 = sbr.rel (0) target = $region45
    $region44: #{multimodal_moco_forward.4} parent=1 // pred_region
      _
    $region45: #{multimodal_moco_forward.4} parent=1 // pred_fallthru
      _
    // Predicated region
    $region46: #{multimodal_moco_forward.4} parent=1 // pred_check
      _
    $region47: #{multimodal_moco_forward.4} parent=1 // pred_check_branch
      %53 = sbr.rel (0) target = $region49
    $region48: #{multimodal_moco_forward.4} parent=1 // pred_region
      _
    $region49: #{multimodal_moco_forward.4} parent=1 // pred_fallthru
      _
    // Predicated region
    $region50: #{multimodal_moco_forward.4} parent=1 // pred_check
      _
    $region51: #{multimodal_moco_forward.4} parent=1 // pred_check_branch
      %55 = sbr.rel (0) target = $region53
    $region52: #{multimodal_moco_forward.4} parent=1 // pred_region
      _
    $region53: #{multimodal_moco_forward.4} parent=1 // pred_fallthru
      _
    %v56 = vld [vmem:[%s0] sm:$0xff]
    %v57 = vld [vmem:[%s1] sm:$0xff]
    %v58 = vld [vmem:[%s1 + $0x8] sm:$0xff]
    %v59 = vld [vmem:[%s1 + $0x10] sm:$0xff]
    %v60 = vld [vmem:[%s1 + $0x18] sm:$0xff]
    %v61 = vld [vmem:[%s1 + $0x20] sm:$0xff]
    %v62 = vld [vmem:[%s1 + $0x28] sm:$0xff]
    %v63 = vld [vmem:[%s1 + $0x30] sm:$0xff]
    %v64 = vld [vmem:[%s1 + $0x38] sm:$0xff]
    %v65 = vld [vmem:[%s1 + $0x40] sm:$0xff]
    %v66 = vld [vmem:[%s1 + $0x48] sm:$0xff]
    %v67 = vld [vmem:[%s1 + $0x50] sm:$0xff]
    %v68 = vld [vmem:[%s1 + $0x58] sm:$0xff]
    %v69 = vld [vmem:[%s1 + $0x60] sm:$0xff]
    %v70 = vld [vmem:[%s1 + $0x68] sm:$0xff]
    %v71 = vld [vmem:[%s1 + $0x70] sm:$0xff]
    %v72 = vld [vmem:[%s1 + $0x78] sm:$0xff]
    %v73 = vld [vmem:[%s2] sm:$0x1]
    %v75 = vlaneseq
    %v76 = vshrl.u32 %v75, 7
    %v77 = vsub.s32 0, %v76
    %v78 = vrot.slane %v73, %v77
    %80 = vmatprep.subr.mxu0 0.0
    %81 = vmatpush1.msra.mxu0 %v57
    %82 = vmatprep.subr.mxu0 0.0
    %83 = vmatpush1.msra.mxu0 %v58
    %84 = vmatprep.subr.mxu0 0.0
    %85 = vmatpush1.msra.mxu0 %v59
    %86 = vmatprep.subr.mxu0 0.0
    %87 = vmatpush1.msra.mxu0 %v60
    %88 = vmatprep.subr.mxu0 0.0
    %89 = vmatpush1.msra.mxu0 %v61
    %90 = vmatprep.subr.mxu0 0.0
    %91 = vmatpush1.msra.mxu0 %v62
    %92 = vmatprep.subr.mxu0 0.0
    %93 = vmatpush1.msra.mxu0 %v63
    %94 = vmatprep.subr.mxu0 0.0
    %95 = vmatpush1.msra.mxu0 %v64
    %96 = vmatprep.subr.mxu0 0.0
    %97 = vmatpush1.msra.mxu0 %v65
    %98 = vmatprep.subr.mxu0 0.0
    %99 = vmatpush1.msra.mxu0 %v66
    %100 = vmatprep.subr.mxu0 0.0
    %101 = vmatpush1.msra.mxu0 %v67
    %102 = vmatprep.subr.mxu0 0.0
    %103 = vmatpush1.msra.mxu0 %v68
    %104 = vmatprep.subr.mxu0 0.0
    %105 = vmatpush1.msra.mxu0 %v69
    %106 = vmatprep.subr.mxu0 0.0
    %107 = vmatpush1.msra.mxu0 %v70
    %108 = vmatprep.subr.mxu0 0.0
    %109 = vmatpush1.msra.mxu0 %v71
    %110 = vmatprep.subr.mxu0 0.0
    %111 = vmatpush1.msra.mxu0 %v72
    %112 = vmatprep.subr.mxu0 0.0
    %113 = vmatpush1.msra.mxu0 0.0
    %114 = vmatprep.subr.mxu0 0.0
    %115 = vmatpush1.msra.mxu0 0.0
    %116 = vmatprep.subr.mxu0 0.0
    %117 = vmatpush1.msra.mxu0 0.0
    %118 = vmatprep.subr.mxu0 0.0
    %119 = vmatpush1.msra.mxu0 0.0
    %120 = vmatprep.subr.mxu0 0.0
    %121 = vmatpush1.msra.mxu0 0.0
    %122 = vmatprep.subr.mxu0 0.0
    %123 = vmatpush1.msra.mxu0 0.0
    %124 = vmatprep.subr.mxu0 0.0
    %125 = vmatpush1.msra.mxu0 0.0
    %126 = vmatprep.subr.mxu0 0.0
    %127 = vmatpush1.msra.mxu0 0.0
    %128 = vmatprep.subr.mxu0 0.0
    %129 = vmatpush1.msra.mxu0 0.0
    %130 = vmatprep.subr.mxu0 0.0
    %131 = vmatpush1.msra.mxu0 0.0
    %132 = vmatprep.subr.mxu0 0.0
    %133 = vmatpush1.msra.mxu0 0.0
    %134 = vmatprep.subr.mxu0 0.0
    %135 = vmatpush1.msra.mxu0 0.0
    %136 = vmatprep.subr.mxu0 0.0
    %137 = vmatpush1.msra.mxu0 0.0
    %138 = vmatprep.subr.mxu0 0.0
    %139 = vmatpush1.msra.mxu0 0.0
    %140 = vmatprep.subr.mxu0 0.0
    %141 = vmatpush1.msra.mxu0 0.0
    %142 = vmatprep.subr.mxu0 0.0
    %143 = vmatpush1.msra.mxu0 0.0
    %144 = vmatprep.mubr.f32.mxu0 0.0
    %145 = vmatmul.mubr.f32.gmra.mrb[0].mxu0 %v56
    %v146 = vpop.f32.mrb[0].mxu0
    %v147 = vadd.f32 %v78, %v146
    %v148 = vpop.f32.mrb[0].mxu0
    %149 = vdwg.mxu0
    %v150 = vld [vmem:[%s5] sm:$0xff]
    %v151 = vld [vmem:[%s5 + $0x8] sm:$0xff]
    %v152 = vld [vmem:[%s5 + $0x10] sm:$0xff]
    %v153 = vld [vmem:[%s5 + $0x18] sm:$0xff]
    %v154 = vld [vmem:[%s5 + $0x20] sm:$0xff]
    %v155 = vld [vmem:[%s5 + $0x28] sm:$0xff]
    %v156 = vld [vmem:[%s5 + $0x30] sm:$0xff]
    %v157 = vld [vmem:[%s5 + $0x38] sm:$0xff]
    %v158 = vld [vmem:[%s5 + $0x40] sm:$0xff]
    %v159 = vld [vmem:[%s5 + $0x48] sm:$0xff]
    %v160 = vld [vmem:[%s5 + $0x50] sm:$0xff]
    %v161 = vld [vmem:[%s5 + $0x58] sm:$0xff]
    %v162 = vld [vmem:[%s5 + $0x60] sm:$0xff]
    %v163 = vld [vmem:[%s5 + $0x68] sm:$0xff]
    %v164 = vld [vmem:[%s5 + $0x70] sm:$0xff]
    %v165 = vld [vmem:[%s5 + $0x78] sm:$0xff]
    %v166 = vld [vmem:[%s6] sm:$0x1]
    %v168 = vlaneseq
    %v169 = vshrl.u32 %v168, 7
    %v170 = vsub.s32 0, %v169
    %v171 = vrot.slane %v166, %v170
    %173 = vmatprep.subr.mxu0 0.0
    %174 = vmatpush1.msra.mxu0 %v150
    %175 = vmatprep.subr.mxu0 0.0
    %176 = vmatpush1.msra.mxu0 %v151
    %177 = vmatprep.subr.mxu0 0.0
    %178 = vmatpush1.msra.mxu0 %v152
    %179 = vmatprep.subr.mxu0 0.0
    %180 = vmatpush1.msra.mxu0 %v153
    %181 = vmatprep.subr.mxu0 0.0
    %182 = vmatpush1.msra.mxu0 %v154
    %183 = vmatprep.subr.mxu0 0.0
    %184 = vmatpush1.msra.mxu0 %v155
    %185 = vmatprep.subr.mxu0 0.0
    %186 = vmatpush1.msra.mxu0 %v156
    %187 = vmatprep.subr.mxu0 0.0
    %188 = vmatpush1.msra.mxu0 %v157
    %189 = vmatprep.subr.mxu0 0.0
    %190 = vmatpush1.msra.mxu0 %v158
    %191 = vmatprep.subr.mxu0 0.0
    %192 = vmatpush1.msra.mxu0 %v159
    %193 = vmatprep.subr.mxu0 0.0
    %194 = vmatpush1.msra.mxu0 %v160
    %195 = vmatprep.subr.mxu0 0.0
    %196 = vmatpush1.msra.mxu0 %v161
    %197 = vmatprep.subr.mxu0 0.0
    %198 = vmatpush1.msra.mxu0 %v162
    %199 = vmatprep.subr.mxu0 0.0
    %200 = vmatpush1.msra.mxu0 %v163
    %201 = vmatprep.subr.mxu0 0.0
    %202 = vmatpush1.msra.mxu0 %v164
    %203 = vmatprep.subr.mxu0 0.0
    %204 = vmatpush1.msra.mxu0 %v165
    %205 = vmatprep.subr.mxu0 0.0
    %206 = vmatpush1.msra.mxu0 0.0
    %207 = vmatprep.subr.mxu0 0.0
    %208 = vmatpush1.msra.mxu0 0.0
    %209 = vmatprep.subr.mxu0 0.0
    %210 = vmatpush1.msra.mxu0 0.0
    %211 = vmatprep.subr.mxu0 0.0
    %212 = vmatpush1.msra.mxu0 0.0
    %213 = vmatprep.subr.mxu0 0.0
    %214 = vmatpush1.msra.mxu0 0.0
    %215 = vmatprep.subr.mxu0 0.0
    %216 = vmatpush1.msra.mxu0 0.0
    %217 = vmatprep.subr.mxu0 0.0
    %218 = vmatpush1.msra.mxu0 0.0
    %219 = vmatprep.subr.mxu0 0.0
    %220 = vmatpush1.msra.mxu0 0.0
    %221 = vmatprep.subr.mxu0 0.0
    %222 = vmatpush1.msra.mxu0 0.0
    %223 = vmatprep.subr.mxu0 0.0
    %224 = vmatpush1.msra.mxu0 0.0
    %225 = vmatprep.subr.mxu0 0.0
    %226 = vmatpush1.msra.mxu0 0.0
    %227 = vmatprep.subr.mxu0 0.0
    %228 = vmatpush1.msra.mxu0 0.0
    %229 = vmatprep.subr.mxu0 0.0
    %230 = vmatpush1.msra.mxu0 0.0
    %231 = vmatprep.subr.mxu0 0.0
    %232 = vmatpush1.msra.mxu0 0.0
    %233 = vmatprep.subr.mxu0 0.0
    %234 = vmatpush1.msra.mxu0 0.0
    %235 = vmatprep.subr.mxu0 0.0
    %236 = vmatpush1.msra.mxu0 0.0
    %237 = vmatprep.mubr.f32.mxu0 0.0
    %238 = vmatmul.mubr.f32.gmra.mrb[0].mxu0 %v147
    %v239 = vpop.f32.mrb[0].mxu0
    %v240 = vadd.f32 %v171, %v239
    %v241 = vpop.f32.mrb[0].mxu0
    %242 = vdwg.mxu0
    %v243 = vmax.f32 %v240, 0.0
    %v244 = vld [vmem:[%s7] sm:$0xff]
    %v245 = vld [vmem:[%s7 + $0x8] sm:$0xff]
    %v246 = vld [vmem:[%s7 + $0x10] sm:$0xff]
    %v247 = vld [vmem:[%s7 + $0x18] sm:$0xff]
    %v248 = vld [vmem:[%s7 + $0x20] sm:$0xff]
    %v249 = vld [vmem:[%s7 + $0x28] sm:$0xff]
    %v250 = vld [vmem:[%s7 + $0x30] sm:$0xff]
    %v251 = vld [vmem:[%s7 + $0x38] sm:$0xff]
    %v252 = vld [vmem:[%s7 + $0x40] sm:$0xff]
    %v253 = vld [vmem:[%s7 + $0x48] sm:$0xff]
    %v254 = vld [vmem:[%s7 + $0x50] sm:$0xff]
    %v255 = vld [vmem:[%s7 + $0x58] sm:$0xff]
    %v256 = vld [vmem:[%s7 + $0x60] sm:$0xff]
    %v257 = vld [vmem:[%s7 + $0x68] sm:$0xff]
    %v258 = vld [vmem:[%s7 + $0x70] sm:$0xff]
    %v259 = vld [vmem:[%s7 + $0x78] sm:$0xff]
    %v260 = vld [vmem:[%s8] sm:$0x1]
    %v262 = vlaneseq
    %v263 = vshrl.u32 %v262, 7
    %v264 = vsub.s32 0, %v263
    %v265 = vrot.slane %v260, %v264
    %267 = vmatprep.subr.mxu0 0.0
    %268 = vmatpush1.msra.mxu0 %v244
    %269 = vmatprep.subr.mxu0 0.0
    %270 = vmatpush1.msra.mxu0 %v245
    %271 = vmatprep.subr.mxu0 0.0
    %272 = vmatpush1.msra.mxu0 %v246
    %273 = vmatprep.subr.mxu0 0.0
    %274 = vmatpush1.msra.mxu0 %v247
    %275 = vmatprep.subr.mxu0 0.0
    %276 = vmatpush1.msra.mxu0 %v248
    %277 = vmatprep.subr.mxu0 0.0
    %278 = vmatpush1.msra.mxu0 %v249
    %279 = vmatprep.subr.mxu0 0.0
    %280 = vmatpush1.msra.mxu0 %v250
    %281 = vmatprep.subr.mxu0 0.0
    %282 = vmatpush1.msra.mxu0 %v251
    %283 = vmatprep.subr.mxu0 0.0
    %284 = vmatpush1.msra.mxu0 %v252
    %285 = vmatprep.subr.mxu0 0.0
    %286 = vmatpush1.msra.mxu0 %v253
    %287 = vmatprep.subr.mxu0 0.0
    %288 = vmatpush1.msra.mxu0 %v254
    %289 = vmatprep.subr.mxu0 0.0
    %290 = vmatpush1.msra.mxu0 %v255
    %291 = vmatprep.subr.mxu0 0.0
    %292 = vmatpush1.msra.mxu0 %v256
    %293 = vmatprep.subr.mxu0 0.0
    %294 = vmatpush1.msra.mxu0 %v257
    %295 = vmatprep.subr.mxu0 0.0
    %296 = vmatpush1.msra.mxu0 %v258
    %297 = vmatprep.subr.mxu0 0.0
    %298 = vmatpush1.msra.mxu0 %v259
    %299 = vmatprep.subr.mxu0 0.0
    %300 = vmatpush1.msra.mxu0 0.0
    %301 = vmatprep.subr.mxu0 0.0
    %302 = vmatpush1.msra.mxu0 0.0
    %303 = vmatprep.subr.mxu0 0.0
    %304 = vmatpush1.msra.mxu0 0.0
    %305 = vmatprep.subr.mxu0 0.0
    %306 = vmatpush1.msra.mxu0 0.0
    %307 = vmatprep.subr.mxu0 0.0
    %308 = vmatpush1.msra.mxu0 0.0
    %309 = vmatprep.subr.mxu0 0.0
    %310 = vmatpush1.msra.mxu0 0.0
    %311 = vmatprep.subr.mxu0 0.0
    %312 = vmatpush1.msra.mxu0 0.0
    %313 = vmatprep.subr.mxu0 0.0
    %314 = vmatpush1.msra.mxu0 0.0
    %315 = vmatprep.subr.mxu0 0.0
    %316 = vmatpush1.msra.mxu0 0.0
    %317 = vmatprep.subr.mxu0 0.0
    %318 = vmatpush1.msra.mxu0 0.0
    %319 = vmatprep.subr.mxu0 0.0
    %320 = vmatpush1.msra.mxu0 0.0
    %321 = vmatprep.subr.mxu0 0.0
    %322 = vmatpush1.msra.mxu0 0.0
    %323 = vmatprep.subr.mxu0 0.0
    %324 = vmatpush1.msra.mxu0 0.0
    %325 = vmatprep.subr.mxu0 0.0
    %326 = vmatpush1.msra.mxu0 0.0
    %327 = vmatprep.subr.mxu0 0.0
    %328 = vmatpush1.msra.mxu0 0.0
    %329 = vmatprep.subr.mxu0 0.0
    %330 = vmatpush1.msra.mxu0 0.0
    %331 = vmatprep.mubr.f32.mxu0 0.0
    %332 = vmatmul.mubr.f32.gmra.mrb[0].mxu0 %v243
    %v333 = vpop.f32.mrb[0].mxu0
    %v334 = vadd.f32 %v265, %v333
    %v335 = vpop.f32.mrb[0].mxu0
    %336 = vdwg.mxu0
    %v337 = vmul.f32 %v334, %v334
    %338 = vadd.xlane.f32.xlu0 %v337
    %v339 = vpop.xlane.xlu0 %338
    %v340 = vmax.f32 %v339, 1e-24
    %v341 = vrsqrt.pop %v340
    %v342 = vmul.f32 %v334, %v341
    %343 = vst [vmem:[%s13] sm:$0xff] %v342
    %v344 = vld [vmem:[%s3] sm:$0xff]
    %v345 = vld [vmem:[%s3 + $0x8] sm:$0xff]
    %v346 = vld [vmem:[%s3 + $0x10] sm:$0xff]
    %v347 = vld [vmem:[%s3 + $0x18] sm:$0xff]
    %v348 = vld [vmem:[%s3 + $0x20] sm:$0xff]
    %v349 = vld [vmem:[%s3 + $0x28] sm:$0xff]
    %v350 = vld [vmem:[%s3 + $0x30] sm:$0xff]
    %v351 = vld [vmem:[%s3 + $0x38] sm:$0xff]
    %v352 = vld [vmem:[%s3 + $0x40] sm:$0xff]
    %v353 = vld [vmem:[%s3 + $0x48] sm:$0xff]
    %v354 = vld [vmem:[%s3 + $0x50] sm:$0xff]
    %v355 = vld [vmem:[%s3 + $0x58] sm:$0xff]
    %v356 = vld [vmem:[%s3 + $0x60] sm:$0xff]
    %v357 = vld [vmem:[%s3 + $0x68] sm:$0xff]
    %v358 = vld [vmem:[%s3 + $0x70] sm:$0xff]
    %v359 = vld [vmem:[%s3 + $0x78] sm:$0xff]
    %v360 = vmul.f32 %v344, 0.999
    %v361 = vmul.f32 %v345, 0.999
    %v362 = vmul.f32 %v346, 0.999
    %v363 = vmul.f32 %v347, 0.999
    %v364 = vmul.f32 %v348, 0.999
    %v365 = vmul.f32 %v349, 0.999
    %v366 = vmul.f32 %v350, 0.999
    %v367 = vmul.f32 %v351, 0.999
    %v368 = vmul.f32 %v352, 0.999
    %v369 = vmul.f32 %v353, 0.999
    %v370 = vmul.f32 %v354, 0.999
    %v371 = vmul.f32 %v355, 0.999
    %v372 = vmul.f32 %v356, 0.999
    %v373 = vmul.f32 %v357, 0.999
    %v374 = vmul.f32 %v358, 0.999
    %v375 = vmul.f32 %v359, 0.999
    %v376 = vld [vmem:[%s1] sm:$0xff]
    %v377 = vld [vmem:[%s1 + $0x8] sm:$0xff]
    %v378 = vld [vmem:[%s1 + $0x10] sm:$0xff]
    %v379 = vld [vmem:[%s1 + $0x18] sm:$0xff]
    %v380 = vld [vmem:[%s1 + $0x20] sm:$0xff]
    %v381 = vld [vmem:[%s1 + $0x28] sm:$0xff]
    %v382 = vld [vmem:[%s1 + $0x30] sm:$0xff]
    %v383 = vld [vmem:[%s1 + $0x38] sm:$0xff]
    %v384 = vld [vmem:[%s1 + $0x40] sm:$0xff]
    %v385 = vld [vmem:[%s1 + $0x48] sm:$0xff]
    %v386 = vld [vmem:[%s1 + $0x50] sm:$0xff]
    %v387 = vld [vmem:[%s1 + $0x58] sm:$0xff]
    %v388 = vld [vmem:[%s1 + $0x60] sm:$0xff]
    %v389 = vld [vmem:[%s1 + $0x68] sm:$0xff]
    %v390 = vld [vmem:[%s1 + $0x70] sm:$0xff]
    %v391 = vld [vmem:[%s1 + $0x78] sm:$0xff]
    %v392 = vmul.f32 %v376, 0.001
    %v393 = vmul.f32 %v377, 0.001
    %v394 = vmul.f32 %v378, 0.001
    %v395 = vmul.f32 %v379, 0.001
    %v396 = vmul.f32 %v380, 0.001
    %v397 = vmul.f32 %v381, 0.001
    %v398 = vmul.f32 %v382, 0.001
    %v399 = vmul.f32 %v383, 0.001
    %v400 = vmul.f32 %v384, 0.001
    %v401 = vmul.f32 %v385, 0.001
    %v402 = vmul.f32 %v386, 0.001
    %v403 = vmul.f32 %v387, 0.001
    %v404 = vmul.f32 %v388, 0.001
    %v405 = vmul.f32 %v389, 0.001
    %v406 = vmul.f32 %v390, 0.001
    %v407 = vmul.f32 %v391, 0.001
    %v408 = vadd.f32 %v360, %v392
    %v409 = vadd.f32 %v361, %v393
    %v410 = vadd.f32 %v362, %v394
    %v411 = vadd.f32 %v363, %v395
    %v412 = vadd.f32 %v364, %v396
    %v413 = vadd.f32 %v365, %v397
    %v414 = vadd.f32 %v366, %v398
    %v415 = vadd.f32 %v367, %v399
    %v416 = vadd.f32 %v368, %v400
    %v417 = vadd.f32 %v369, %v401
    %v418 = vadd.f32 %v370, %v402
    %v419 = vadd.f32 %v371, %v403
    %v420 = vadd.f32 %v372, %v404
    %v421 = vadd.f32 %v373, %v405
    %v422 = vadd.f32 %v374, %v406
    %v423 = vadd.f32 %v375, %v407
    %v424 = vld [vmem:[%s4] sm:$0x1]
    %v425 = vmul.f32 %v424, 0.999
    %v426 = vld [vmem:[%s2] sm:$0x1]
    %v427 = vmul.f32 %v426, 0.001
    %v428 = vadd.f32 %v425, %v427
    %v429 = vld [vmem:[%s9] sm:$0xff]
    %v430 = vld [vmem:[%s9 + $0x8] sm:$0xff]
    %v431 = vld [vmem:[%s9 + $0x10] sm:$0xff]
    %v432 = vld [vmem:[%s9 + $0x18] sm:$0xff]
    %v433 = vld [vmem:[%s9 + $0x20] sm:$0xff]
    %v434 = vld [vmem:[%s9 + $0x28] sm:$0xff]
    %v435 = vld [vmem:[%s9 + $0x30] sm:$0xff]
    %v436 = vld [vmem:[%s9 + $0x38] sm:$0xff]
    %v437 = vld [vmem:[%s9 + $0x40] sm:$0xff]
    %v438 = vld [vmem:[%s9 + $0x48] sm:$0xff]
    %v439 = vld [vmem:[%s9 + $0x50] sm:$0xff]
    %v440 = vld [vmem:[%s9 + $0x58] sm:$0xff]
    %v441 = vld [vmem:[%s9 + $0x60] sm:$0xff]
    %v442 = vld [vmem:[%s9 + $0x68] sm:$0xff]
    %v443 = vld [vmem:[%s9 + $0x70] sm:$0xff]
    %v444 = vld [vmem:[%s9 + $0x78] sm:$0xff]
    %v445 = vmul.f32 %v429, 0.999
    %v446 = vmul.f32 %v430, 0.999
    %v447 = vmul.f32 %v431, 0.999
    %v448 = vmul.f32 %v432, 0.999
    %v449 = vmul.f32 %v433, 0.999
    %v450 = vmul.f32 %v434, 0.999
    %v451 = vmul.f32 %v435, 0.999
    %v452 = vmul.f32 %v436, 0.999
    %v453 = vmul.f32 %v437, 0.999
    %v454 = vmul.f32 %v438, 0.999
    %v455 = vmul.f32 %v439, 0.999
    %v456 = vmul.f32 %v440, 0.999
    %v457 = vmul.f32 %v441, 0.999
    %v458 = vmul.f32 %v442, 0.999
    %v459 = vmul.f32 %v443, 0.999
    %v460 = vmul.f32 %v444, 0.999
    %v461 = vld [vmem:[%s5] sm:$0xff]
    %v462 = vld [vmem:[%s5 + $0x8] sm:$0xff]
    %v463 = vld [vmem:[%s5 + $0x10] sm:$0xff]
    %v464 = vld [vmem:[%s5 + $0x18] sm:$0xff]
    %v465 = vld [vmem:[%s5 + $0x20] sm:$0xff]
    %v466 = vld [vmem:[%s5 + $0x28] sm:$0xff]
    %v467 = vld [vmem:[%s5 + $0x30] sm:$0xff]
    %v468 = vld [vmem:[%s5 + $0x38] sm:$0xff]
    %v469 = vld [vmem:[%s5 + $0x40] sm:$0xff]
    %v470 = vld [vmem:[%s5 + $0x48] sm:$0xff]
    %v471 = vld [vmem:[%s5 + $0x50] sm:$0xff]
    %v472 = vld [vmem:[%s5 + $0x58] sm:$0xff]
    %v473 = vld [vmem:[%s5 + $0x60] sm:$0xff]
    %v474 = vld [vmem:[%s5 + $0x68] sm:$0xff]
    %v475 = vld [vmem:[%s5 + $0x70] sm:$0xff]
    %v476 = vld [vmem:[%s5 + $0x78] sm:$0xff]
    %v477 = vmul.f32 %v461, 0.001
    %v478 = vmul.f32 %v462, 0.001
    %v479 = vmul.f32 %v463, 0.001
    %v480 = vmul.f32 %v464, 0.001
    %v481 = vmul.f32 %v465, 0.001
    %v482 = vmul.f32 %v466, 0.001
    %v483 = vmul.f32 %v467, 0.001
    %v484 = vmul.f32 %v468, 0.001
    %v485 = vmul.f32 %v469, 0.001
    %v486 = vmul.f32 %v470, 0.001
    %v487 = vmul.f32 %v471, 0.001
    %v488 = vmul.f32 %v472, 0.001
    %v489 = vmul.f32 %v473, 0.001
    %v490 = vmul.f32 %v474, 0.001
    %v491 = vmul.f32 %v475, 0.001
    %v492 = vmul.f32 %v476, 0.001
    %v493 = vadd.f32 %v445, %v477
    %v494 = vadd.f32 %v446, %v478
    %v495 = vadd.f32 %v447, %v479
    %v496 = vadd.f32 %v448, %v480
    %v497 = vadd.f32 %v449, %v481
    %v498 = vadd.f32 %v450, %v482
    %v499 = vadd.f32 %v451, %v483
    %v500 = vadd.f32 %v452, %v484
    %v501 = vadd.f32 %v453, %v485
    %v502 = vadd.f32 %v454, %v486
    %v503 = vadd.f32 %v455, %v487
    %v504 = vadd.f32 %v456, %v488
    %v505 = vadd.f32 %v457, %v489
    %v506 = vadd.f32 %v458, %v490
    %v507 = vadd.f32 %v459, %v491
    %v508 = vadd.f32 %v460, %v492
    %v509 = vld [vmem:[%s10] sm:$0x1]
    %v510 = vmul.f32 %v509, 0.999
    %v511 = vld [vmem:[%s6] sm:$0x1]
    %v512 = vmul.f32 %v511, 0.001
    %v513 = vadd.f32 %v510, %v512
    %v514 = vld [vmem:[%s11] sm:$0xff]
    %v515 = vld [vmem:[%s11 + $0x8] sm:$0xff]
    %v516 = vld [vmem:[%s11 + $0x10] sm:$0xff]
    %v517 = vld [vmem:[%s11 + $0x18] sm:$0xff]
    %v518 = vld [vmem:[%s11 + $0x20] sm:$0xff]
    %v519 = vld [vmem:[%s11 + $0x28] sm:$0xff]
    %v520 = vld [vmem:[%s11 + $0x30] sm:$0xff]
    %v521 = vld [vmem:[%s11 + $0x38] sm:$0xff]
    %v522 = vld [vmem:[%s11 + $0x40] sm:$0xff]
    %v523 = vld [vmem:[%s11 + $0x48] sm:$0xff]
    %v524 = vld [vmem:[%s11 + $0x50] sm:$0xff]
    %v525 = vld [vmem:[%s11 + $0x58] sm:$0xff]
    %v526 = vld [vmem:[%s11 + $0x60] sm:$0xff]
    %v527 = vld [vmem:[%s11 + $0x68] sm:$0xff]
    %v528 = vld [vmem:[%s11 + $0x70] sm:$0xff]
    %v529 = vld [vmem:[%s11 + $0x78] sm:$0xff]
    %v530 = vmul.f32 %v514, 0.999
    %v531 = vmul.f32 %v515, 0.999
    %v532 = vmul.f32 %v516, 0.999
    %v533 = vmul.f32 %v517, 0.999
    %v534 = vmul.f32 %v518, 0.999
    %v535 = vmul.f32 %v519, 0.999
    %v536 = vmul.f32 %v520, 0.999
    %v537 = vmul.f32 %v521, 0.999
    %v538 = vmul.f32 %v522, 0.999
    %v539 = vmul.f32 %v523, 0.999
    %v540 = vmul.f32 %v524, 0.999
    %v541 = vmul.f32 %v525, 0.999
    %v542 = vmul.f32 %v526, 0.999
    %v543 = vmul.f32 %v527, 0.999
    %v544 = vmul.f32 %v528, 0.999
    %v545 = vmul.f32 %v529, 0.999
    %v546 = vld [vmem:[%s7] sm:$0xff]
    %v547 = vld [vmem:[%s7 + $0x8] sm:$0xff]
    %v548 = vld [vmem:[%s7 + $0x10] sm:$0xff]
    %v549 = vld [vmem:[%s7 + $0x18] sm:$0xff]
    %v550 = vld [vmem:[%s7 + $0x20] sm:$0xff]
    %v551 = vld [vmem:[%s7 + $0x28] sm:$0xff]
    %v552 = vld [vmem:[%s7 + $0x30] sm:$0xff]
    %v553 = vld [vmem:[%s7 + $0x38] sm:$0xff]
    %v554 = vld [vmem:[%s7 + $0x40] sm:$0xff]
    %v555 = vld [vmem:[%s7 + $0x48] sm:$0xff]
    %v556 = vld [vmem:[%s7 + $0x50] sm:$0xff]
    %v557 = vld [vmem:[%s7 + $0x58] sm:$0xff]
    %v558 = vld [vmem:[%s7 + $0x60] sm:$0xff]
    %v559 = vld [vmem:[%s7 + $0x68] sm:$0xff]
    %v560 = vld [vmem:[%s7 + $0x70] sm:$0xff]
    %v561 = vld [vmem:[%s7 + $0x78] sm:$0xff]
    %v562 = vmul.f32 %v546, 0.001
    %v563 = vmul.f32 %v547, 0.001
    %v564 = vmul.f32 %v548, 0.001
    %v565 = vmul.f32 %v549, 0.001
    %v566 = vmul.f32 %v550, 0.001
    %v567 = vmul.f32 %v551, 0.001
    %v568 = vmul.f32 %v552, 0.001
    %v569 = vmul.f32 %v553, 0.001
    %v570 = vmul.f32 %v554, 0.001
    %v571 = vmul.f32 %v555, 0.001
    %v572 = vmul.f32 %v556, 0.001
    %v573 = vmul.f32 %v557, 0.001
    %v574 = vmul.f32 %v558, 0.001
    %v575 = vmul.f32 %v559, 0.001
    %v576 = vmul.f32 %v560, 0.001
    %v577 = vmul.f32 %v561, 0.001
    %v578 = vadd.f32 %v530, %v562
    %v579 = vadd.f32 %v531, %v563
    %v580 = vadd.f32 %v532, %v564
    %v581 = vadd.f32 %v533, %v565
    %v582 = vadd.f32 %v534, %v566
    %v583 = vadd.f32 %v535, %v567
    %v584 = vadd.f32 %v536, %v568
    %v585 = vadd.f32 %v537, %v569
    %v586 = vadd.f32 %v538, %v570
    %v587 = vadd.f32 %v539, %v571
    %v588 = vadd.f32 %v540, %v572
    %v589 = vadd.f32 %v541, %v573
    %v590 = vadd.f32 %v542, %v574
    %v591 = vadd.f32 %v543, %v575
    %v592 = vadd.f32 %v544, %v576
    %v593 = vadd.f32 %v545, %v577
    %v594 = vld [vmem:[%s12] sm:$0x1]
    %v595 = vmul.f32 %v594, 0.999
    %v596 = vld [vmem:[%s8] sm:$0x1]
    %v597 = vmul.f32 %v596, 0.001
    %v598 = vadd.f32 %v595, %v597
    %599 = vst [vmem:[#allocation2] sm:$0xff] %v408
    %600 = vst [vmem:[#allocation2 + $0x8] sm:$0xff] %v409
    %601 = vst [vmem:[#allocation2 + $0x10] sm:$0xff] %v410
    %602 = vst [vmem:[#allocation2 + $0x18] sm:$0xff] %v411
    %603 = vst [vmem:[#allocation2 + $0x20] sm:$0xff] %v412
    %604 = vst [vmem:[#allocation2 + $0x28] sm:$0xff] %v413
    %605 = vst [vmem:[#allocation2 + $0x30] sm:$0xff] %v414
    %606 = vst [vmem:[#allocation2 + $0x38] sm:$0xff] %v415
    %607 = vst [vmem:[#allocation2 + $0x40] sm:$0xff] %v416
    %608 = vst [vmem:[#allocation2 + $0x48] sm:$0xff] %v417
    %609 = vst [vmem:[#allocation2 + $0x50] sm:$0xff] %v418
    %610 = vst [vmem:[#allocation2 + $0x58] sm:$0xff] %v419
    %611 = vst [vmem:[#allocation2 + $0x60] sm:$0xff] %v420
    %612 = vst [vmem:[#allocation2 + $0x68] sm:$0xff] %v421
    %613 = vst [vmem:[#allocation2 + $0x70] sm:$0xff] %v422
    %614 = vst [vmem:[#allocation2 + $0x78] sm:$0xff] %v423
    %615 = vst [vmem:[#allocation4] sm:$0x1] %v428
    %616 = vst [vmem:[#allocation6] sm:$0xff] %v493
    %617 = vst [vmem:[#allocation6 + $0x8] sm:$0xff] %v494
    %618 = vst [vmem:[#allocation6 + $0x10] sm:$0xff] %v495
    %619 = vst [vmem:[#allocation6 + $0x18] sm:$0xff] %v496
    %620 = vst [vmem:[#allocation6 + $0x20] sm:$0xff] %v497
    %621 = vst [vmem:[#allocation6 + $0x28] sm:$0xff] %v498
    %622 = vst [vmem:[#allocation6 + $0x30] sm:$0xff] %v499
    %623 = vst [vmem:[#allocation6 + $0x38] sm:$0xff] %v500
    %624 = vst [vmem:[#allocation6 + $0x40] sm:$0xff] %v501
    %625 = vst [vmem:[#allocation6 + $0x48] sm:$0xff] %v502
    %626 = vst [vmem:[#allocation6 + $0x50] sm:$0xff] %v503
    %627 = vst [vmem:[#allocation6 + $0x58] sm:$0xff] %v504
    %628 = vst [vmem:[#allocation6 + $0x60] sm:$0xff] %v505
    %629 = vst [vmem:[#allocation6 + $0x68] sm:$0xff] %v506
    %630 = vst [vmem:[#allocation6 + $0x70] sm:$0xff] %v507
    %631 = vst [vmem:[#allocation6 + $0x78] sm:$0xff] %v508
    %632 = vst [vmem:[#allocation7] sm:$0x1] %v513
    %633 = vst [vmem:[#allocation9] sm:$0xff] %v578
    %634 = vst [vmem:[#allocation9 + $0x8] sm:$0xff] %v579
    %635 = vst [vmem:[#allocation9 + $0x10] sm:$0xff] %v580
    %636 = vst [vmem:[#allocation9 + $0x18] sm:$0xff] %v581
    %637 = vst [vmem:[#allocation9 + $0x20] sm:$0xff] %v582
    %638 = vst [vmem:[#allocation9 + $0x28] sm:$0xff] %v583
    %639 = vst [vmem:[#allocation9 + $0x30] sm:$0xff] %v584
    %640 = vst [vmem:[#allocation9 + $0x38] sm:$0xff] %v585
    %641 = vst [vmem:[#allocation9 + $0x40] sm:$0xff] %v586
    %642 = vst [vmem:[#allocation9 + $0x48] sm:$0xff] %v587
    %643 = vst [vmem:[#allocation9 + $0x50] sm:$0xff] %v588
    %644 = vst [vmem:[#allocation9 + $0x58] sm:$0xff] %v589
    %645 = vst [vmem:[#allocation9 + $0x60] sm:$0xff] %v590
    %646 = vst [vmem:[#allocation9 + $0x68] sm:$0xff] %v591
    %647 = vst [vmem:[#allocation9 + $0x70] sm:$0xff] %v592
    %648 = vst [vmem:[#allocation9 + $0x78] sm:$0xff] %v593
    %649 = vst [vmem:[#allocation10] sm:$0x1] %v598
    %v651 = vlaneseq
    %v652 = vshrl.u32 %v651, 7
    %v653 = vsub.s32 0, %v652
    %v654 = vrot.slane %v428, %v653
    %656 = vmatprep.subr.mxu0 0.0
    %657 = vmatpush1.msra.mxu0 %v408
    %658 = vmatprep.subr.mxu0 0.0
    %659 = vmatpush1.msra.mxu0 %v409
    %660 = vmatprep.subr.mxu0 0.0
    %661 = vmatpush1.msra.mxu0 %v410
    %662 = vmatprep.subr.mxu0 0.0
    %663 = vmatpush1.msra.mxu0 %v411
    %664 = vmatprep.subr.mxu0 0.0
    %665 = vmatpush1.msra.mxu0 %v412
    %666 = vmatprep.subr.mxu0 0.0
    %667 = vmatpush1.msra.mxu0 %v413
    %668 = vmatprep.subr.mxu0 0.0
    %669 = vmatpush1.msra.mxu0 %v414
    %670 = vmatprep.subr.mxu0 0.0
    %671 = vmatpush1.msra.mxu0 %v415
    %672 = vmatprep.subr.mxu0 0.0
    %673 = vmatpush1.msra.mxu0 %v416
    %674 = vmatprep.subr.mxu0 0.0
    %675 = vmatpush1.msra.mxu0 %v417
    %676 = vmatprep.subr.mxu0 0.0
    %677 = vmatpush1.msra.mxu0 %v418
    %678 = vmatprep.subr.mxu0 0.0
    %679 = vmatpush1.msra.mxu0 %v419
    %680 = vmatprep.subr.mxu0 0.0
    %681 = vmatpush1.msra.mxu0 %v420
    %682 = vmatprep.subr.mxu0 0.0
    %683 = vmatpush1.msra.mxu0 %v421
    %684 = vmatprep.subr.mxu0 0.0
    %685 = vmatpush1.msra.mxu0 %v422
    %686 = vmatprep.subr.mxu0 0.0
    %687 = vmatpush1.msra.mxu0 %v423
    %688 = vmatprep.subr.mxu0 0.0
    %689 = vmatpush1.msra.mxu0 0.0
    %690 = vmatprep.subr.mxu0 0.0
    %691 = vmatpush1.msra.mxu0 0.0
    %692 = vmatprep.subr.mxu0 0.0
    %693 = vmatpush1.msra.mxu0 0.0
    %694 = vmatprep.subr.mxu0 0.0
    %695 = vmatpush1.msra.mxu0 0.0
    %696 = vmatprep.subr.mxu0 0.0
    %697 = vmatpush1.msra.mxu0 0.0
    %698 = vmatprep.subr.mxu0 0.0
    %699 = vmatpush1.msra.mxu0 0.0
    %700 = vmatprep.subr.mxu0 0.0
    %701 = vmatpush1.msra.mxu0 0.0
    %702 = vmatprep.subr.mxu0 0.0
    %703 = vmatpush1.msra.mxu0 0.0
    %704 = vmatprep.subr.mxu0 0.0
    %705 = vmatpush1.msra.mxu0 0.0
    %706 = vmatprep.subr.mxu0 0.0
    %707 = vmatpush1.msra.mxu0 0.0
    %708 = vmatprep.subr.mxu0 0.0
    %709 = vmatpush1.msra.mxu0 0.0
    %710 = vmatprep.subr.mxu0 0.0
    %711 = vmatpush1.msra.mxu0 0.0
    %712 = vmatprep.subr.mxu0 0.0
    %713 = vmatpush1.msra.mxu0 0.0
    %714 = vmatprep.subr.mxu0 0.0
    %715 = vmatpush1.msra.mxu0 0.0
    %716 = vmatprep.subr.mxu0 0.0
    %717 = vmatpush1.msra.mxu0 0.0
    %718 = vmatprep.subr.mxu0 0.0
    %719 = vmatpush1.msra.mxu0 0.0
    %720 = vmatprep.mubr.f32.mxu0 0.0
    %721 = vmatmul.mubr.f32.gmra.mrb[0].mxu0 %v147
    %v722 = vpop.f32.mrb[0].mxu0
    %v723 = vadd.f32 %v654, %v722
    %v724 = vpop.f32.mrb[0].mxu0
    %725 = vdwg.mxu0
    %v727 = vlaneseq
    %v728 = vshrl.u32 %v727, 7
    %v729 = vsub.s32 0, %v728
    %v730 = vrot.slane %v513, %v729
    %732 = vmatprep.subr.mxu0 0.0
    %733 = vmatpush1.msra.mxu0 %v493
    %734 = vmatprep.subr.mxu0 0.0
    %735 = vmatpush1.msra.mxu0 %v494
    %736 = vmatprep.subr.mxu0 0.0
    %737 = vmatpush1.msra.mxu0 %v495
    %738 = vmatprep.subr.mxu0 0.0
    %739 = vmatpush1.msra.mxu0 %v496
    %740 = vmatprep.subr.mxu0 0.0
    %741 = vmatpush1.msra.mxu0 %v497
    %742 = vmatprep.subr.mxu0 0.0
    %743 = vmatpush1.msra.mxu0 %v498
    %744 = vmatprep.subr.mxu0 0.0
    %745 = vmatpush1.msra.mxu0 %v499
    %746 = vmatprep.subr.mxu0 0.0
    %747 = vmatpush1.msra.mxu0 %v500
    %748 = vmatprep.subr.mxu0 0.0
    %749 = vmatpush1.msra.mxu0 %v501
    %750 = vmatprep.subr.mxu0 0.0
    %751 = vmatpush1.msra.mxu0 %v502
    %752 = vmatprep.subr.mxu0 0.0
    %753 = vmatpush1.msra.mxu0 %v503
    %754 = vmatprep.subr.mxu0 0.0
    %755 = vmatpush1.msra.mxu0 %v504
    %756 = vmatprep.subr.mxu0 0.0
    %757 = vmatpush1.msra.mxu0 %v505
    %758 = vmatprep.subr.mxu0 0.0
    %759 = vmatpush1.msra.mxu0 %v506
    %760 = vmatprep.subr.mxu0 0.0
    %761 = vmatpush1.msra.mxu0 %v507
    %762 = vmatprep.subr.mxu0 0.0
    %763 = vmatpush1.msra.mxu0 %v508
    %764 = vmatprep.subr.mxu0 0.0
    %765 = vmatpush1.msra.mxu0 0.0
    %766 = vmatprep.subr.mxu0 0.0
    %767 = vmatpush1.msra.mxu0 0.0
    %768 = vmatprep.subr.mxu0 0.0
    %769 = vmatpush1.msra.mxu0 0.0
    %770 = vmatprep.subr.mxu0 0.0
    %771 = vmatpush1.msra.mxu0 0.0
    %772 = vmatprep.subr.mxu0 0.0
    %773 = vmatpush1.msra.mxu0 0.0
    %774 = vmatprep.subr.mxu0 0.0
    %775 = vmatpush1.msra.mxu0 0.0
    %776 = vmatprep.subr.mxu0 0.0
    %777 = vmatpush1.msra.mxu0 0.0
    %778 = vmatprep.subr.mxu0 0.0
    %779 = vmatpush1.msra.mxu0 0.0
    %780 = vmatprep.subr.mxu0 0.0
    %781 = vmatpush1.msra.mxu0 0.0
    %782 = vmatprep.subr.mxu0 0.0
    %783 = vmatpush1.msra.mxu0 0.0
    %784 = vmatprep.subr.mxu0 0.0
    %785 = vmatpush1.msra.mxu0 0.0
    %786 = vmatprep.subr.mxu0 0.0
    %787 = vmatpush1.msra.mxu0 0.0
    %788 = vmatprep.subr.mxu0 0.0
    %789 = vmatpush1.msra.mxu0 0.0
    %790 = vmatprep.subr.mxu0 0.0
    %791 = vmatpush1.msra.mxu0 0.0
    %792 = vmatprep.subr.mxu0 0.0
    %793 = vmatpush1.msra.mxu0 0.0
    %794 = vmatprep.subr.mxu0 0.0
    %795 = vmatpush1.msra.mxu0 0.0
    %796 = vmatprep.mubr.f32.mxu0 0.0
    %797 = vmatmul.mubr.f32.gmra.mrb[0].mxu0 %v723
    %v798 = vpop.f32.mrb[0].mxu0
    %v799 = vadd.f32 %v730, %v798
    %v800 = vpop.f32.mrb[0].mxu0
    %801 = vdwg.mxu0
    %v802 = vmax.f32 %v799, 0.0
    %v804 = vlaneseq
    %v805 = vshrl.u32 %v804, 7
    %v806 = vsub.s32 0, %v805
    %v807 = vrot.slane %v598, %v806
    %809 = vmatprep.subr.mxu0 0.0
    %810 = vmatpush1.msra.mxu0 %v578
    %811 = vmatprep.subr.mxu0 0.0
    %812 = vmatpush1.msra.mxu0 %v579
    %813 = vmatprep.subr.mxu0 0.0
    %814 = vmatpush1.msra.mxu0 %v580
    %815 = vmatprep.subr.mxu0 0.0
    %816 = vmatpush1.msra.mxu0 %v581
    %817 = vmatprep.subr.mxu0 0.0
    %818 = vmatpush1.msra.mxu0 %v582
    %819 = vmatprep.subr.mxu0 0.0
    %820 = vmatpush1.msra.mxu0 %v583
    %821 = vmatprep.subr.mxu0 0.0
    %822 = vmatpush1.msra.mxu0 %v584
    %823 = vmatprep.subr.mxu0 0.0
    %824 = vmatpush1.msra.mxu0 %v585
    %825 = vmatprep.subr.mxu0 0.0
    %826 = vmatpush1.msra.mxu0 %v586
    %827 = vmatprep.subr.mxu0 0.0
    %828 = vmatpush1.msra.mxu0 %v587
    %829 = vmatprep.subr.mxu0 0.0
    %830 = vmatpush1.msra.mxu0 %v588
    %831 = vmatprep.subr.mxu0 0.0
    %832 = vmatpush1.msra.mxu0 %v589
    %833 = vmatprep.subr.mxu0 0.0
    %834 = vmatpush1.msra.mxu0 %v590
    %835 = vmatprep.subr.mxu0 0.0
    %836 = vmatpush1.msra.mxu0 %v591
    %837 = vmatprep.subr.mxu0 0.0
    %838 = vmatpush1.msra.mxu0 %v592
    %839 = vmatprep.subr.mxu0 0.0
    %840 = vmatpush1.msra.mxu0 %v593
    %841 = vmatprep.subr.mxu0 0.0
    %842 = vmatpush1.msra.mxu0 0.0
    %843 = vmatprep.subr.mxu0 0.0
    %844 = vmatpush1.msra.mxu0 0.0
    %845 = vmatprep.subr.mxu0 0.0
    %846 = vmatpush1.msra.mxu0 0.0
    %847 = vmatprep.subr.mxu0 0.0
    %848 = vmatpush1.msra.mxu0 0.0
    %849 = vmatprep.subr.mxu0 0.0
    %850 = vmatpush1.msra.mxu0 0.0
    %851 = vmatprep.subr.mxu0 0.0
    %852 = vmatpush1.msra.mxu0 0.0
    %853 = vmatprep.subr.mxu0 0.0
    %854 = vmatpush1.msra.mxu0 0.0
    %855 = vmatprep.subr.mxu0 0.0
    %856 = vmatpush1.msra.mxu0 0.0
    %857 = vmatprep.subr.mxu0 0.0
    %858 = vmatpush1.msra.mxu0 0.0
    %859 = vmatprep.subr.mxu0 0.0
    %860 = vmatpush1.msra.mxu0 0.0
    %861 = vmatprep.subr.mxu0 0.0
    %862 = vmatpush1.msra.mxu0 0.0
    %863 = vmatprep.subr.mxu0 0.0
    %864 = vmatpush1.msra.mxu0 0.0
    %865 = vmatprep.subr.mxu0 0.0
    %866 = vmatpush1.msra.mxu0 0.0
    %867 = vmatprep.subr.mxu0 0.0
    %868 = vmatpush1.msra.mxu0 0.0
    %869 = vmatprep.subr.mxu0 0.0
    %870 = vmatpush1.msra.mxu0 0.0
    %871 = vmatprep.subr.mxu0 0.0
    %872 = vmatpush1.msra.mxu0 0.0
    %873 = vmatprep.mubr.f32.mxu0 0.0
    %874 = vmatmul.mubr.f32.gmra.mrb[0].mxu0 %v802
    %v875 = vpop.f32.mrb[0].mxu0
    %v876 = vadd.f32 %v807, %v875
    %v877 = vpop.f32.mrb[0].mxu0
    %878 = vdwg.mxu0
    %v879 = vmul.f32 %v876, %v876
    %880 = vadd.xlane.f32.xlu0 %v879
    %v881 = vpop.xlane.xlu0 %880
    %v882 = vmax.f32 %v881, 1e-24
    %v883 = vrsqrt.pop %v882
    %v884 = vmul.f32 %v876, %v883
    %885 = vst [vmem:[%s14] sm:$0xff] %v884
    // Predicated region
    $region54: #{multimodal_moco_forward.4} parent=1 // pred_check
      _
    $region55: #{multimodal_moco_forward.4} parent=1 // pred_check_branch
      %887 = sbr.rel (0) target = $region57
    $region56: #{multimodal_moco_forward.4} parent=1 // pred_region
      _
    $region57: #{multimodal_moco_forward.4} parent=1 // pred_fallthru
      _
    // Predicated region
    $region58: #{multimodal_moco_forward.4} parent=1 // pred_check
      _
    $region59: #{multimodal_moco_forward.4} parent=1 // pred_check_branch
      %889 = sbr.rel (0) target = $region61
    $region60: #{multimodal_moco_forward.4} parent=1 // pred_region
      _
    $region61: #{multimodal_moco_forward.4} parent=1 // pred_fallthru
      _
    // Predicated region
    $region62: #{multimodal_moco_forward.4} parent=1 // pred_check
      _
    $region63: #{multimodal_moco_forward.4} parent=1 // pred_check_branch
      %891 = sbr.rel (0) target = $region65
    $region64: #{multimodal_moco_forward.4} parent=1 // pred_region
      %s893 = ssub.s32 2048, 2048
      %894 = vsyncadd [#allocation3], %s893
      %s895 = sshll.u32 [#allocation2], 4
      %s896 = int_to_ptr.vmem [resolvable:$true] %s895
      %901 = dma.vmem_to_hbm [thread:$0]  %s896, 2048, %s15, [#allocation3], 128, 128, 8
    $region65: #{multimodal_moco_forward.4} parent=1 // pred_fallthru
      _
    // Predicated region
    $region66: #{multimodal_moco_forward.4} parent=1 // pred_check
      _
    $region67: #{multimodal_moco_forward.4} parent=1 // pred_check_branch
      %903 = sbr.rel (0) target = $region69
    $region68: #{multimodal_moco_forward.4} parent=1 // pred_region
      %s905 = ssub.s32 16, 16
      %906 = vsyncadd [#allocation5], %s905
      %s908 = sshll.u32 [#allocation4], 4
      %s909 = int_to_ptr.vmem [resolvable:$true] %s908
      %911 = dma.vmem_to_hbm [thread:$0]  %s909, 16, %s16, [#allocation5]
    $region69: #{multimodal_moco_forward.4} parent=1 // pred_fallthru
      _
    // Predicated region
    $region70: #{multimodal_moco_forward.4} parent=1 // pred_check
      _
    $region71: #{multimodal_moco_forward.4} parent=1 // pred_check_branch
      %913 = sbr.rel (0) target = $region73
    $region72: #{multimodal_moco_forward.4} parent=1 // pred_region
      %s915 = ssub.s32 2048, 2048
      %916 = vsyncadd [#allocation5], %s915
      %s917 = sshll.u32 [#allocation6], 4
      %s918 = int_to_ptr.vmem [resolvable:$true] %s917
      %923 = dma.vmem_to_hbm [thread:$0]  %s918, 2048, %s17, [#allocation5], 128, 128, 8
    $region73: #{multimodal_moco_forward.4} parent=1 // pred_fallthru
      _
    // Predicated region
    $region74: #{multimodal_moco_forward.4} parent=1 // pred_check
      _
    $region75: #{multimodal_moco_forward.4} parent=1 // pred_check_branch
      %925 = sbr.rel (0) target = $region77
    $region76: #{multimodal_moco_forward.4} parent=1 // pred_region
      %s927 = ssub.s32 16, 16
      %928 = vsyncadd [#allocation8], %s927
      %s930 = sshll.u32 [#allocation7], 4
      %s931 = int_to_ptr.vmem [resolvable:$true] %s930
      %933 = dma.vmem_to_hbm [thread:$0]  %s931, 16, %s18, [#allocation8]
    $region77: #{multimodal_moco_forward.4} parent=1 // pred_fallthru
      _
    // Predicated region
    $region78: #{multimodal_moco_forward.4} parent=1 // pred_check
      _
    $region79: #{multimodal_moco_forward.4} parent=1 // pred_check_branch
      %935 = sbr.rel (0) target = $region81
    $region80: #{multimodal_moco_forward.4} parent=1 // pred_region
      %s937 = ssub.s32 2048, 2048
      %938 = vsyncadd [#allocation8], %s937
      %s939 = sshll.u32 [#allocation9], 4
      %s940 = int_to_ptr.vmem [resolvable:$true] %s939
      %945 = dma.vmem_to_hbm [thread:$0]  %s940, 2048, %s19, [#allocation8], 128, 128, 8
    $region81: #{multimodal_moco_forward.4} parent=1 // pred_fallthru
      _
    // Predicated region
    $region82: #{multimodal_moco_forward.4} parent=1 // pred_check
      _
    $region83: #{multimodal_moco_forward.4} parent=1 // pred_check_branch
      %947 = sbr.rel (0) target = $region85
    $region84: #{multimodal_moco_forward.4} parent=1 // pred_region
      %s949 = ssub.s32 16, 16
      %950 = vsyncadd [#allocation11], %s949
      %s952 = sshll.u32 [#allocation10], 4
      %s953 = int_to_ptr.vmem [resolvable:$true] %s952
      %955 = dma.vmem_to_hbm [thread:$0]  %s953, 16, %s20, [#allocation11]
    $region85: #{multimodal_moco_forward.4} parent=1 // pred_fallthru
      _
    // Predicated region
    $region86: #{multimodal_moco_forward.4} parent=1 // pred_check
      _
    $region87: #{multimodal_moco_forward.4} parent=1 // pred_check_branch
      %957 = sbr.rel (0) target = $region89
    $region88: #{multimodal_moco_forward.4} parent=1 // pred_region
      _
    $region89: #{multimodal_moco_forward.4} parent=1 // pred_fallthru
      _
    // Predicated region
    $region90: #{multimodal_moco_forward.4} parent=1 // pred_check
      _
    $region91: #{multimodal_moco_forward.4} parent=1 // pred_check_branch
      %959 = sbr.rel (0) target = $region93
    $region92: #{multimodal_moco_forward.4} parent=1 // pred_region
      _
    $region93: #{multimodal_moco_forward.4} parent=1 // pred_fallthru
      _
    // Predicated region
    $region94: #{multimodal_moco_forward.4} parent=1 // pred_check
      _
    $region95: #{multimodal_moco_forward.4} parent=1 // pred_check_branch
      %961 = sbr.rel (0) target = $region97
    $region96: #{multimodal_moco_forward.4} parent=1 // pred_region
      %962 = dma.done [#allocation3], 2048
    $region97: #{multimodal_moco_forward.4} parent=1 // pred_fallthru
      _
    // Predicated region
    $region98: #{multimodal_moco_forward.4} parent=1 // pred_check
      _
    $region99: #{multimodal_moco_forward.4} parent=1 // pred_check_branch
      %964 = sbr.rel (0) target = $region101
    $region100: #{multimodal_moco_forward.4} parent=1 // pred_region
      %965 = dma.done [#allocation5], 16
    $region101: #{multimodal_moco_forward.4} parent=1 // pred_fallthru
      _
    // Predicated region
    $region102: #{multimodal_moco_forward.4} parent=1 // pred_check
      _
    $region103: #{multimodal_moco_forward.4} parent=1 // pred_check_branch
      %967 = sbr.rel (0) target = $region105
    $region104: #{multimodal_moco_forward.4} parent=1 // pred_region
      %968 = dma.done [#allocation5], 2048
    $region105: #{multimodal_moco_forward.4} parent=1 // pred_fallthru
      _
    // Predicated region
    $region106: #{multimodal_moco_forward.4} parent=1 // pred_check
      _
    $region107: #{multimodal_moco_forward.4} parent=1 // pred_check_branch
      %970 = sbr.rel (0) target = $region109
    $region108: #{multimodal_moco_forward.4} parent=1 // pred_region
      %971 = dma.done [#allocation8], 16
    $region109: #{multimodal_moco_forward.4} parent=1 // pred_fallthru
      _
    // Predicated region
    $region110: #{multimodal_moco_forward.4} parent=1 // pred_check
      _
    $region111: #{multimodal_moco_forward.4} parent=1 // pred_check_branch
      %973 = sbr.rel (0) target = $region113
    $region112: #{multimodal_moco_forward.4} parent=1 // pred_region
      %974 = dma.done [#allocation8], 2048
    $region113: #{multimodal_moco_forward.4} parent=1 // pred_fallthru
      _
    // Predicated region
    $region114: #{multimodal_moco_forward.4} parent=1 // pred_check
      _
    $region115: #{multimodal_moco_forward.4} parent=1 // pred_check_branch
      %976 = sbr.rel (0) target = $region117
    $region116: #{multimodal_moco_forward.4} parent=1 // pred_region
      %977 = dma.done [#allocation11], 16
    $region117: #{multimodal_moco_forward.4} parent=1 // pred_fallthru
      _
    %978 = vsyncpa [#allocation3], 1
    %979 = vsyncpa [#allocation5], 1
    %980 = vsyncpa [#allocation8], 1
    %981 = vsyncpa [#allocation11], 1

</llo_original>
